<compile_context>
chip_gen: v7x
topology: tpu7x:2x2x1
jax: 0.10.0
libtpu: 0.0.40
codegen_flags: <defaults>
</compile_context>

<pallas_src>
import functools

import jax
import jax.numpy as jnp
from jax.experimental import pallas as pl
from jax.experimental.pallas import tpu as pltpu

EPS = 1e-5  # PyTorch BatchNorm2d default eps


# ----------------------------------------------------------------------------
# Fused Pallas kernel: BN1 -> ReLU -> conv1x1(+BN2 scale) -> +bias -> ReLU
#                      -> conv3x3 (pad=1) as 9 shifted matmuls
# ----------------------------------------------------------------------------
def _bottleneck_kernel(H, W, Fin, Cmid, Fout,
                       x_ref, s1_ref, b1_ref, w1_ref, b2_ref, w2_ref,
                       o_ref, zpad_ref):
    # Zero-padded scratch for the intermediate (padding must be applied AFTER
    # the pointwise stage, so it cannot be done on the input).
    zpad_ref[...] = jnp.zeros_like(zpad_ref)

    # Stage 1: BN1 (f32) -> ReLU -> 1x1 conv on the MXU (bf16 in, f32 acc).
    x = x_ref[...].reshape(H * W, Fin)                       # f32
    h = jnp.maximum(x * s1_ref[...] + b1_ref[...], 0.0)
    z = jnp.dot(h.astype(jnp.bfloat16), w1_ref[...],
                preferred_element_type=jnp.float32)          # [H*W, Cmid]
    z = jnp.maximum(z + b2_ref[...], 0.0)                    # BN2 bias + ReLU
    zpad_ref[:, 1:H + 1, 1:W + 1, :] = (
        z.astype(zpad_ref.dtype).reshape(1, H, W, Cmid))

    # Stage 2: 3x3 conv, padding=1, stride=1 == sum of 9 shifted matmuls.
    acc = jnp.zeros((H * W, Fout), jnp.float32)
    for di in range(3):
        for dj in range(3):
            win = zpad_ref[:, di:di + H, dj:dj + W, :].reshape(H * W, Cmid)
            tap = di * 3 + dj
            wk = w2_ref[tap * Cmid:(tap + 1) * Cmid, :]      # [Cmid, Fout] bf16
            acc += jnp.dot(win, wk, preferred_element_type=jnp.float32)

    o_ref[...] = acc.reshape(1, H, W, Fout).astype(o_ref.dtype)


# ----------------------------------------------------------------------------
# Wrapper: parameter folding, layout, pallas_call, concat
# ----------------------------------------------------------------------------
def bottleneck_densenet_forward(params, x_nchw):
    g1, be1, m1, v1 = params["bn1"]
    g2, be2, m2, v2 = params["bn2"]
    w1 = params["conv1_w"]            # [Cmid, Fin, 1, 1]
    w2 = params["conv2_w"]            # [Fout, Cmid, 3, 3]

    Cmid, Fin = w1.shape[0], w1.shape[1]
    Fout = w2.shape[0]
    B, _, H, W = x_nchw.shape

    # Fold BatchNorm (eval mode) into scale/bias; fold BN2 scale into w1.
    s1 = g1 / jnp.sqrt(v1 + EPS)
    bb1 = be1 - m1 * s1
    s2 = g2 / jnp.sqrt(v2 + EPS)
    bb2 = be2 - m2 * s2

    # 1x1 conv as matmul weight [Fin, Cmid], BN2 scale folded into columns.
    w1m = (jnp.transpose(w1.reshape(Cmid, Fin), (1, 0))
           * s2[None, :]).astype(jnp.bfloat16)
    # 3x3 conv weight -> [9*Cmid, Fout]; row order = (di*3+dj)*Cmid + cin.
    w2m = jnp.transpose(w2, (2, 3, 1, 0)).reshape(9 * Cmid, Fout)
    w2m = w2m.astype(jnp.bfloat16)

    x_nhwc = jnp.transpose(x_nchw, (0, 2, 3, 1))   # NCHW -> NHWC (lane = C)

    kernel = functools.partial(_bottleneck_kernel, H, W, Fin, Cmid, Fout)
    conv_out = pl.pallas_call(
        kernel,
        out_shape=jax.ShapeDtypeStruct((B, H, W, Fout), jnp.float32),
        grid=(B,),
        in_specs=[
            pl.BlockSpec((1, H, W, Fin), lambda b: (b, 0, 0, 0)),   # x
            pl.BlockSpec((1, Fin), lambda b: (0, 0)),               # BN1 scale
            pl.BlockSpec((1, Fin), lambda b: (0, 0)),               # BN1 bias
            pl.BlockSpec((Fin, Cmid), lambda b: (0, 0)),            # w1 (folded)
            pl.BlockSpec((1, Cmid), lambda b: (0, 0)),              # BN2 bias
            pl.BlockSpec((9 * Cmid, Fout), lambda b: (0, 0)),       # w2
        ],
        out_specs=pl.BlockSpec((1, H, W, Fout), lambda b: (b, 0, 0, 0)),
        scratch_shapes=[pltpu.VMEM((1, H + 2, W + 2, Cmid), jnp.bfloat16)],
        compiler_params=pltpu.CompilerParams(
            dimension_semantics=("parallel",),
        ),
    )(x_nhwc, s1.reshape(1, Fin), bb1.reshape(1, Fin), w1m,
      bb2.reshape(1, Cmid), w2m)

    # torch.cat([conv_out, residual], dim=1)
    out_nhwc = jnp.concatenate([conv_out, x_nhwc], axis=-1)
    return jnp.transpose(out_nhwc, (0, 3, 1, 2))   # back to NCHW


# ----------------------------------------------------------------------------
# Pure-JAX reference (for a loose numerical sanity check; bf16 MXU tolerance)
# ----------------------------------------------------------------------------
def reference_forward(params, x):
    g1, be1, m1, v1 = params["bn1"]
    g2, be2, m2, v2 = params["bn2"]
    w1 = params["conv1_w"]
    w2 = params["conv2_w"]

    def bn(t, g, b, m, v):
        inv = 1.0 / jnp.sqrt(v + EPS)
        return (t - m[None, :, None, None]) * inv[None, :, None, None] \
            * g[None, :, None, None] + b[None, :, None, None]

    h = jnp.maximum(bn(x, g1, be1, m1, v1), 0.0)
    y = jax.lax.conv_general_dilated(
        h, w1, (1, 1), "VALID", dimension_numbers=("NCHW", "OIHW", "NCHW"))
    z = jnp.maximum(bn(y, g2, be2, m2, v2), 0.0)
    c = jax.lax.conv_general_dilated(
        z, w2, (1, 1), ((1, 1), (1, 1)),
        dimension_numbers=("NCHW", "OIHW", "NCHW"))
    return jnp.concatenate([c, x], axis=1)


# ----------------------------------------------------------------------------
if __name__ == "__main__":
    B, Fin, H, W = 2, 32, 16, 16
    Fout = 16
    Cmid = 4 * Fout          # BottleNeck_DenseNet.expansion = 4

    keys = jax.random.split(jax.random.PRNGKey(0), 11)
    params = {
        "bn1": (1.0 + 0.1 * jax.random.normal(keys[0], (Fin,), jnp.float32),
                0.1 * jax.random.normal(keys[1], (Fin,), jnp.float32),
                0.1 * jax.random.normal(keys[2], (Fin,), jnp.float32),
                jnp.abs(1.0 + 0.1 * jax.random.normal(keys[3], (Fin,),
                                                      jnp.float32))),
        "conv1_w": jax.random.normal(keys[4], (Cmid, Fin, 1, 1), jnp.float32)
                   * (2.0 / Fin) ** 0.5,
        "bn2": (1.0 + 0.1 * jax.random.normal(keys[5], (Cmid,), jnp.float32),
                0.1 * jax.random.normal(keys[6], (Cmid,), jnp.float32),
                0.1 * jax.random.normal(keys[7], (Cmid,), jnp.float32),
                jnp.abs(1.0 + 0.1 * jax.random.normal(keys[8], (Cmid,),
                                                      jnp.float32))),
        "conv2_w": jax.random.normal(keys[9], (Fout, Cmid, 3, 3), jnp.float32)
                   * (2.0 / (9 * Cmid)) ** 0.5,
    }
    x = jax.random.normal(keys[10], (B, Fin, H, W), jnp.float32)

    out = jax.jit(bottleneck_densenet_forward)(params, x)
    out = jax.block_until_ready(out)

    assert out.shape == (B, Fout + Fin, H, W), out.shape
    assert bool(jnp.all(jnp.isfinite(out)))

    # Loose tolerance: the kernel runs the MXU matmuls in bf16 (f32 accum).
    ref = reference_forward(params, x)
    err = float(jnp.max(jnp.abs(out - ref)))
    scale = float(jnp.max(jnp.abs(ref))) + 1.0
    assert err <= 3e-2 * scale, (err, scale)

    print("KERNEL_OK")
</pallas_src>

<mosaic_0001>
module attributes {stable_mosaic.version = 11 : i64} {
  func.func @_bottleneck_kernel(%arg0: i32, %arg1: memref<1x16x16x32xf32, #tpu.memory_space<vmem>>, %arg2: memref<1x32xf32, #tpu.memory_space<vmem>>, %arg3: memref<1x32xf32, #tpu.memory_space<vmem>>, %arg4: memref<32x64xbf16, #tpu.memory_space<vmem>>, %arg5: memref<1x64xf32, #tpu.memory_space<vmem>>, %arg6: memref<576x16xbf16, #tpu.memory_space<vmem>>, %arg7: memref<1x16x16x16xf32, #tpu.memory_space<vmem>>, %arg8: memref<1x18x18x64xbf16, #tpu.memory_space<vmem>>) attributes {dimension_semantics = [#tpu.dimension_semantics<parallel>], iteration_bounds = array<i64: 2>, scalar_prefetch = 0 : i64, scratch_operands = 1 : i64, tpu.core_type = #tpu.core_type<tc>, window_params = [{transform_indices = @transform_0, window_bounds = array<i64: 1, 16, 16, 32>}, {pipeline_mode = #tpu.pipeline_mode<synchronous>, transform_indices = @transform_1, window_bounds = array<i64: 1, 32>}, {pipeline_mode = #tpu.pipeline_mode<synchronous>, transform_indices = @transform_2, window_bounds = array<i64: 1, 32>}, {pipeline_mode = #tpu.pipeline_mode<synchronous>, transform_indices = @transform_3, window_bounds = array<i64: 32, 64>}, {pipeline_mode = #tpu.pipeline_mode<synchronous>, transform_indices = @transform_4, window_bounds = array<i64: 1, 64>}, {pipeline_mode = #tpu.pipeline_mode<synchronous>, transform_indices = @transform_5, window_bounds = array<i64: 576, 16>}, {transform_indices = @transform_6, window_bounds = array<i64: 1, 16, 16, 16>}]} {
    %cst = arith.constant 0.000000e+00 : bf16
    %0 = vector.broadcast %cst : bf16 to vector<1x18x18x64xbf16>
    %c0 = arith.constant 0 : index
    %c0_0 = arith.constant 0 : index
    %c0_1 = arith.constant 0 : index
    %c0_2 = arith.constant 0 : index
    %1 = vector.load %arg8[%c0, %c0_0, %c0_1, %c0_2] : memref<1x18x18x64xbf16, #tpu.memory_space<vmem>>, vector<1x18x18x64xbf16>
    tpu.vector_store %arg8[%c0, %c0_0, %c0_1, %c0_2], %0 {strides = array<i32>} : memref<1x18x18x64xbf16, #tpu.memory_space<vmem>>, vector<1x18x18x64xbf16>,
    %c0_3 = arith.constant 0 : index
    %c0_4 = arith.constant 0 : index
    %c0_5 = arith.constant 0 : index
    %c0_6 = arith.constant 0 : index
    %2 = vector.load %arg1[%c0_3, %c0_4, %c0_5, %c0_6] : memref<1x16x16x32xf32, #tpu.memory_space<vmem>>, vector<1x16x16x32xf32>
    %3 = vector.shape_cast %2 : vector<1x16x16x32xf32> to vector<256x32xf32>
    %c0_7 = arith.constant 0 : index
    %c0_8 = arith.constant 0 : index
    %4 = vector.load %arg2[%c0_7, %c0_8] : memref<1x32xf32, #tpu.memory_space<vmem>>, vector<1x32xf32>
    %5 = vector.broadcast %4 : vector<1x32xf32> to vector<256x32xf32>
    %6 = arith.mulf %3, %5 : vector<256x32xf32>
    %c0_9 = arith.constant 0 : index
    %c0_10 = arith.constant 0 : index
    %7 = vector.load %arg3[%c0_9, %c0_10] : memref<1x32xf32, #tpu.memory_space<vmem>>, vector<1x32xf32>
    %8 = vector.broadcast %7 : vector<1x32xf32> to vector<256x32xf32>
    %9 = arith.addf %6, %8 : vector<256x32xf32>
    %cst_11 = arith.constant 0.000000e+00 : f32
    %10 = vector.broadcast %cst_11 : f32 to vector<256x32xf32>
    %11 = arith.maximumf %9, %10 : vector<256x32xf32>
    %12 = arith.truncf %11 : vector<256x32xf32> to vector<256x32xbf16>
    %c0_12 = arith.constant 0 : index
    %c0_13 = arith.constant 0 : index
    %13 = vector.load %arg4[%c0_12, %c0_13] : memref<32x64xbf16, #tpu.memory_space<vmem>>, vector<32x64xbf16>
    %cst_14 = arith.constant dense<0.000000e+00> : vector<256x64xf32>
    %14 = tpu.matmul %12, %13, %cst_14 {dimension_numbers = #tpu.dot_dimension_numbers<[1], [0], [0], [1], [0, 0, 1, 1], [], []>} : vector<256x32xbf16>, vector<32x64xbf16>, vector<256x64xf32> -> vector<256x64xf32>
    %c0_15 = arith.constant 0 : index
    %c0_16 = arith.constant 0 : index
    %15 = vector.load %arg5[%c0_15, %c0_16] : memref<1x64xf32, #tpu.memory_space<vmem>>, vector<1x64xf32>
    %16 = vector.broadcast %15 : vector<1x64xf32> to vector<256x64xf32>
    %17 = arith.addf %14, %16 : vector<256x64xf32>
    %cst_17 = arith.constant 0.000000e+00 : f32
    %18 = vector.broadcast %cst_17 : f32 to vector<256x64xf32>
    %19 = arith.maximumf %17, %18 : vector<256x64xf32>
    %20 = arith.truncf %19 : vector<256x64xf32> to vector<256x64xbf16>
    %21 = vector.shape_cast %20 : vector<256x64xbf16> to vector<1x16x16x64xbf16>
    %c0_18 = arith.constant 0 : index
    %c1 = arith.constant 1 : index
    %c1_19 = arith.constant 1 : index
    %c0_20 = arith.constant 0 : index
    %22 = vector.load %arg8[%c0_18, %c1, %c1_19, %c0_20] : memref<1x18x18x64xbf16, #tpu.memory_space<vmem>>, vector<1x16x16x64xbf16>
    tpu.vector_store %arg8[%c0_18, %c1, %c1_19, %c0_20], %21 {strides = array<i32>} : memref<1x18x18x64xbf16, #tpu.memory_space<vmem>>, vector<1x16x16x64xbf16>,
    %cst_21 = arith.constant 0.000000e+00 : f32
    %23 = vector.broadcast %cst_21 : f32 to vector<256x16xf32>
    %c0_22 = arith.constant 0 : index
    %c0_23 = arith.constant 0 : index
    %c0_24 = arith.constant 0 : index
    %c0_25 = arith.constant 0 : index
    %24 = vector.load %arg8[%c0_22, %c0_23, %c0_24, %c0_25] : memref<1x18x18x64xbf16, #tpu.memory_space<vmem>>, vector<1x16x16x64xbf16>
    %25 = vector.shape_cast %24 : vector<1x16x16x64xbf16> to vector<256x64xbf16>
    %c0_26 = arith.constant 0 : index
    %c0_27 = arith.constant 0 : index
    %26 = vector.load %arg6[%c0_26, %c0_27] : memref<576x16xbf16, #tpu.memory_space<vmem>>, vector<64x16xbf16>
    %cst_28 = arith.constant dense<0.000000e+00> : vector<256x16xf32>
    %27 = tpu.matmul %25, %26, %cst_28 {dimension_numbers = #tpu.dot_dimension_numbers<[1], [0], [0], [1], [0, 0, 1, 1], [], []>} : vector<256x64xbf16>, vector<64x16xbf16>, vector<256x16xf32> -> vector<256x16xf32>
    %28 = arith.addf %23, %27 : vector<256x16xf32>
    %c0_29 = arith.constant 0 : index
    %c0_30 = arith.constant 0 : index
    %c1_31 = arith.constant 1 : index
    %c0_32 = arith.constant 0 : index
    %29 = vector.load %arg8[%c0_29, %c0_30, %c1_31, %c0_32] : memref<1x18x18x64xbf16, #tpu.memory_space<vmem>>, vector<1x16x16x64xbf16>
    %30 = vector.shape_cast %29 : vector<1x16x16x64xbf16> to vector<256x64xbf16>
    %c64 = arith.constant 64 : index
    %c0_33 = arith.constant 0 : index
    %31 = vector.load %arg6[%c64, %c0_33] : memref<576x16xbf16, #tpu.memory_space<vmem>>, vector<64x16xbf16>
    %cst_34 = arith.constant dense<0.000000e+00> : vector<256x16xf32>
    %32 = tpu.matmul %30, %31, %cst_34 {dimension_numbers = #tpu.dot_dimension_numbers<[1], [0], [0], [1], [0, 0, 1, 1], [], []>} : vector<256x64xbf16>, vector<64x16xbf16>, vector<256x16xf32> -> vector<256x16xf32>
    %33 = arith.addf %28, %32 : vector<256x16xf32>
    %c0_35 = arith.constant 0 : index
    %c0_36 = arith.constant 0 : index
    %c2 = arith.constant 2 : index
    %c0_37 = arith.constant 0 : index
    %34 = vector.load %arg8[%c0_35, %c0_36, %c2, %c0_37] : memref<1x18x18x64xbf16, #tpu.memory_space<vmem>>, vector<1x16x16x64xbf16>
    %35 = vector.shape_cast %34 : vector<1x16x16x64xbf16> to vector<256x64xbf16>
    %c128 = arith.constant 128 : index
    %c0_38 = arith.constant 0 : index
    %36 = vector.load %arg6[%c128, %c0_38] : memref<576x16xbf16, #tpu.memory_space<vmem>>, vector<64x16xbf16>
    %cst_39 = arith.constant dense<0.000000e+00> : vector<256x16xf32>
    %37 = tpu.matmul %35, %36, %cst_39 {dimension_numbers = #tpu.dot_dimension_numbers<[1], [0], [0], [1], [0, 0, 1, 1], [], []>} : vector<256x64xbf16>, vector<64x16xbf16>, vector<256x16xf32> -> vector<256x16xf32>
    %38 = arith.addf %33, %37 : vector<256x16xf32>
    %c0_40 = arith.constant 0 : index
    %c1_41 = arith.constant 1 : index
    %c0_42 = arith.constant 0 : index
    %c0_43 = arith.constant 0 : index
    %39 = vector.load %arg8[%c0_40, %c1_41, %c0_42, %c0_43] : memref<1x18x18x64xbf16, #tpu.memory_space<vmem>>, vector<1x16x16x64xbf16>
    %40 = vector.shape_cast %39 : vector<1x16x16x64xbf16> to vector<256x64xbf16>
    %c192 = arith.constant 192 : index
    %c0_44 = arith.constant 0 : index
    %41 = vector.load %arg6[%c192, %c0_44] : memref<576x16xbf16, #tpu.memory_space<vmem>>, vector<64x16xbf16>
    %cst_45 = arith.constant dense<0.000000e+00> : vector<256x16xf32>
    %42 = tpu.matmul %40, %41, %cst_45 {dimension_numbers = #tpu.dot_dimension_numbers<[1], [0], [0], [1], [0, 0, 1, 1], [], []>} : vector<256x64xbf16>, vector<64x16xbf16>, vector<256x16xf32> -> vector<256x16xf32>
    %43 = arith.addf %38, %42 : vector<256x16xf32>
    %c0_46 = arith.constant 0 : index
    %c1_47 = arith.constant 1 : index
    %c1_48 = arith.constant 1 : index
    %c0_49 = arith.constant 0 : index
    %44 = vector.load %arg8[%c0_46, %c1_47, %c1_48, %c0_49] : memref<1x18x18x64xbf16, #tpu.memory_space<vmem>>, vector<1x16x16x64xbf16>
    %45 = vector.shape_cast %44 : vector<1x16x16x64xbf16> to vector<256x64xbf16>
    %c256 = arith.constant 256 : index
    %c0_50 = arith.constant 0 : index
    %46 = vector.load %arg6[%c256, %c0_50] : memref<576x16xbf16, #tpu.memory_space<vmem>>, vector<64x16xbf16>
    %cst_51 = arith.constant dense<0.000000e+00> : vector<256x16xf32>
    %47 = tpu.matmul %45, %46, %cst_51 {dimension_numbers = #tpu.dot_dimension_numbers<[1], [0], [0], [1], [0, 0, 1, 1], [], []>} : vector<256x64xbf16>, vector<64x16xbf16>, vector<256x16xf32> -> vector<256x16xf32>
    %48 = arith.addf %43, %47 : vector<256x16xf32>
    %c0_52 = arith.constant 0 : index
    %c1_53 = arith.constant 1 : index
    %c2_54 = arith.constant 2 : index
    %c0_55 = arith.constant 0 : index
    %49 = vector.load %arg8[%c0_52, %c1_53, %c2_54, %c0_55] : memref<1x18x18x64xbf16, #tpu.memory_space<vmem>>, vector<1x16x16x64xbf16>
    %50 = vector.shape_cast %49 : vector<1x16x16x64xbf16> to vector<256x64xbf16>
    %c320 = arith.constant 320 : index
    %c0_56 = arith.constant 0 : index
    %51 = vector.load %arg6[%c320, %c0_56] : memref<576x16xbf16, #tpu.memory_space<vmem>>, vector<64x16xbf16>
    %cst_57 = arith.constant dense<0.000000e+00> : vector<256x16xf32>
    %52 = tpu.matmul %50, %51, %cst_57 {dimension_numbers = #tpu.dot_dimension_numbers<[1], [0], [0], [1], [0, 0, 1, 1], [], []>} : vector<256x64xbf16>, vector<64x16xbf16>, vector<256x16xf32> -> vector<256x16xf32>
    %53 = arith.addf %48, %52 : vector<256x16xf32>
    %c0_58 = arith.constant 0 : index
    %c2_59 = arith.constant 2 : index
    %c0_60 = arith.constant 0 : index
    %c0_61 = arith.constant 0 : index
    %54 = vector.load %arg8[%c0_58, %c2_59, %c0_60, %c0_61] : memref<1x18x18x64xbf16, #tpu.memory_space<vmem>>, vector<1x16x16x64xbf16>
    %55 = vector.shape_cast %54 : vector<1x16x16x64xbf16> to vector<256x64xbf16>
    %c384 = arith.constant 384 : index
    %c0_62 = arith.constant 0 : index
    %56 = vector.load %arg6[%c384, %c0_62] : memref<576x16xbf16, #tpu.memory_space<vmem>>, vector<64x16xbf16>
    %cst_63 = arith.constant dense<0.000000e+00> : vector<256x16xf32>
    %57 = tpu.matmul %55, %56, %cst_63 {dimension_numbers = #tpu.dot_dimension_numbers<[1], [0], [0], [1], [0, 0, 1, 1], [], []>} : vector<256x64xbf16>, vector<64x16xbf16>, vector<256x16xf32> -> vector<256x16xf32>
    %58 = arith.addf %53, %57 : vector<256x16xf32>
    %c0_64 = arith.constant 0 : index
    %c2_65 = arith.constant 2 : index
    %c1_66 = arith.constant 1 : index
    %c0_67 = arith.constant 0 : index
    %59 = vector.load %arg8[%c0_64, %c2_65, %c1_66, %c0_67] : memref<1x18x18x64xbf16, #tpu.memory_space<vmem>>, vector<1x16x16x64xbf16>
    %60 = vector.shape_cast %59 : vector<1x16x16x64xbf16> to vector<256x64xbf16>
    %c448 = arith.constant 448 : index
    %c0_68 = arith.constant 0 : index
    %61 = vector.load %arg6[%c448, %c0_68] : memref<576x16xbf16, #tpu.memory_space<vmem>>, vector<64x16xbf16>
    %cst_69 = arith.constant dense<0.000000e+00> : vector<256x16xf32>
    %62 = tpu.matmul %60, %61, %cst_69 {dimension_numbers = #tpu.dot_dimension_numbers<[1], [0], [0], [1], [0, 0, 1, 1], [], []>} : vector<256x64xbf16>, vector<64x16xbf16>, vector<256x16xf32> -> vector<256x16xf32>
    %63 = arith.addf %58, %62 : vector<256x16xf32>
    %c0_70 = arith.constant 0 : index
    %c2_71 = arith.constant 2 : index
    %c2_72 = arith.constant 2 : index
    %c0_73 = arith.constant 0 : index
    %64 = vector.load %arg8[%c0_70, %c2_71, %c2_72, %c0_73] : memref<1x18x18x64xbf16, #tpu.memory_space<vmem>>, vector<1x16x16x64xbf16>
    %65 = vector.shape_cast %64 : vector<1x16x16x64xbf16> to vector<256x64xbf16>
    %c512 = arith.constant 512 : index
    %c0_74 = arith.constant 0 : index
    %66 = vector.load %arg6[%c512, %c0_74] : memref<576x16xbf16, #tpu.memory_space<vmem>>, vector<64x16xbf16>
    %cst_75 = arith.constant dense<0.000000e+00> : vector<256x16xf32>
    %67 = tpu.matmul %65, %66, %cst_75 {dimension_numbers = #tpu.dot_dimension_numbers<[1], [0], [0], [1], [0, 0, 1, 1], [], []>} : vector<256x64xbf16>, vector<64x16xbf16>, vector<256x16xf32> -> vector<256x16xf32>
    %68 = arith.addf %63, %67 : vector<256x16xf32>
    %69 = vector.shape_cast %68 : vector<256x16xf32> to vector<1x16x16x16xf32>
    %c0_76 = arith.constant 0 : index
    %c0_77 = arith.constant 0 : index
    %c0_78 = arith.constant 0 : index
    %c0_79 = arith.constant 0 : index
    %70 = vector.load %arg7[%c0_76, %c0_77, %c0_78, %c0_79] : memref<1x16x16x16xf32, #tpu.memory_space<vmem>>, vector<1x16x16x16xf32>
    tpu.vector_store %arg7[%c0_76, %c0_77, %c0_78, %c0_79], %69 {strides = array<i32>} : memref<1x16x16x16xf32, #tpu.memory_space<vmem>>, vector<1x16x16x16xf32>,
    return
  }
  func.func @transform_0(%arg0: i32) -> (i32, i32, i32, i32) {
    %c0_i32 = arith.constant 0 : i32
    %c0_i32_0 = arith.constant 0 : i32
    %c0_i32_1 = arith.constant 0 : i32
    %c0_i32_2 = arith.constant 0 : i32
    return %arg0, %c0_i32, %c0_i32_0, %c0_i32_1 : i32, i32, i32, i32
  }
  func.func @transform_1(%arg0: i32) -> (i32, i32) {
    %c0_i32 = arith.constant 0 : i32
    %c0_i32_0 = arith.constant 0 : i32
    %c0_i32_1 = arith.constant 0 : i32
    return %c0_i32, %c0_i32_0 : i32, i32
  }
  func.func @transform_2(%arg0: i32) -> (i32, i32) {
    %c0_i32 = arith.constant 0 : i32
    %c0_i32_0 = arith.constant 0 : i32
    %c0_i32_1 = arith.constant 0 : i32
    return %c0_i32, %c0_i32_0 : i32, i32
  }
  func.func @transform_3(%arg0: i32) -> (i32, i32) {
    %c0_i32 = arith.constant 0 : i32
    %c0_i32_0 = arith.constant 0 : i32
    %c0_i32_1 = arith.constant 0 : i32
    return %c0_i32, %c0_i32_0 : i32, i32
  }
  func.func @transform_4(%arg0: i32) -> (i32, i32) {
    %c0_i32 = arith.constant 0 : i32
    %c0_i32_0 = arith.constant 0 : i32
    %c0_i32_1 = arith.constant 0 : i32
    return %c0_i32, %c0_i32_0 : i32, i32
  }
  func.func @transform_5(%arg0: i32) -> (i32, i32) {
    %c0_i32 = arith.constant 0 : i32
    %c0_i32_0 = arith.constant 0 : i32
    %c0_i32_1 = arith.constant 0 : i32
    return %c0_i32, %c0_i32_0 : i32, i32
  }
  func.func @transform_6(%arg0: i32) -> (i32, i32, i32, i32) {
    %c0_i32 = arith.constant 0 : i32
    %c0_i32_0 = arith.constant 0 : i32
    %c0_i32_1 = arith.constant 0 : i32
    %c0_i32_2 = arith.constant 0 : i32
    return %arg0, %c0_i32, %c0_i32_0, %c0_i32_1 : i32, i32, i32, i32
  }
}

</mosaic_0001>

<llo_original>
// kernel: bottleneck_densenet_forward.1
$region0: #{bottleneck_densenet_forward.1}
  #allocation0 [shape = 'u32[]', space=smem, size = 0x4, offset = 0x4, fixed_abs, tag = 'smem constant byte address 0x4 - core index']
  #allocation1 [shape = 'u32[144,128]{1,0:T(1,128)}', space=vmem, size = 0x12000, scoped, tag = 'internal scratch']
  #allocation2 [shape = 'bf16[1,18,18,64]{3,2,1,0:T(8,128)(2,1)}', space=vmem, size = 0x1b000, scoped, tag = 'scratch operand']
  %s0 = inlined_call_operand.vmem [shape: f32[2,16,16,32], index: 0, kind: input, shape index: {}]
  %s1 = inlined_call_operand.vmem [shape: f32[1,32], index: 1, kind: input, shape index: {}]
  %s2 = inlined_call_operand.vmem [shape: f32[1,32], index: 2, kind: input, shape index: {}]
  %s3 = inlined_call_operand.vmem [shape: bf16[32,64], index: 3, kind: input, shape index: {}]
  %s4 = inlined_call_operand.vmem [shape: f32[1,64], index: 4, kind: input, shape index: {}]
  %s5 = inlined_call_operand.vmem [shape: bf16[576,16], index: 5, kind: input, shape index: {}]
  %s6 = inlined_call_operand.vmem [shape: f32[2,16,16,16], index: 6, kind: output, shape index: {}]
  %s7 = sld [smem:[#allocation0]]
  $region57: #{bottleneck_densenet_forward.1} parent=0
    _
  %s9 = ssub.s32 1, %s7
  %s10 = scalar_select 0, %s9, %s7
  loop: start=0, step=1, limit=4
  $region2: #{bottleneck_densenet_forward.1} parent=0 // loop_pre_header
    _
  $region3: #{bottleneck_densenet_forward.1} parent=0 // loop_header
    %s12 = sphi 0, %s16
    %p13 = scmp.ge.s32.totalorder %s12, 4
    %s22 = sphi 0, %s24
    %s25 = sphi 0, %s22
    %s26 = sphi 0, %s25
    %s42 = sphi 0, %s26
    %s46 = sphi 0, %s46
    %s48 = sphi 0, %s46
    %s49 = sphi 0, %s48
    %s63 = sphi 0, %s49
    %s67 = sphi 0, %s67
    %s69 = sphi 0, %s67
    %s70 = sphi 0, %s69
    %s84 = sphi 0, %s70
    %s88 = sphi 0, %s88
    %s90 = sphi 0, %s88
    %s91 = sphi 0, %s90
    %s105 = sphi 0, %s91
    %s109 = sphi 0, %s109
    %s111 = sphi 0, %s109
    %s112 = sphi 0, %s111
    %s126 = sphi 0, %s112
    %s130 = sphi 0, %s130
    %s132 = sphi 0, %s130
    %s133 = sphi 0, %s132
    %s147 = sphi 0, %s133
    %s153 = sphi 0, %s155
    %s156 = sphi 0, %s153
    %s157 = sphi 0, %s156
    %s173 = sphi 0, %s157
  $region4: #{bottleneck_densenet_forward.1} parent=0 // loop_header_branch
    %15 = sbr.rel (%p13) target = $region8
  $region5: #{bottleneck_densenet_forward.1} parent=0 // loop_body
    %s17 = ssub.s32 %s12, 1
    %s18 = ssub.s32 %s12, 2
    %s19 = sadd.s32 %s12, 1
    %s20 = ssub.s32 %s12, %s19
    %p21 = scmp.eq.s32.totalorder %s20, 0
    %s23 = sadd.s32 %s22, 1
    %s24 = scalar_select %p21, %s22, %s23
    %p27 = pneg %p21
    %p28 = scmp.eq.s32.totalorder %s12, 1
    %p29 = por %p27, %p28
    %p30 = scmp.ne.s32.totalorder %s22, %s25
    %p31 = scmp.eq.s32.totalorder %s12, 0
    %p32 = por %p30, %p31
    %p33 = scmp.ne.s32.totalorder %s22, %s25
    %p34 = scmp.eq.s32.totalorder %s17, 1
    %p35 = por %p33, %p34
    %p36 = scmp.ne.s32.totalorder %s25, %s26
    %p37 = scmp.eq.s32.totalorder %s17, 0
    %p38 = por %p36, %p37
    %p39 = scmp.ne.s32.totalorder %s25, %s26
    %p40 = scmp.eq.s32.totalorder %s18, 1
    %p41 = por %p39, %p40
    %p43 = scmp.ne.s32.totalorder %s26, %s42
    %p44 = scmp.eq.s32.totalorder %s18, 0
    %p45 = por %p43, %p44
    %s47 = sadd.s32 %s46, 1
    %p50 = scmp.eq.s32.totalorder %s12, 1
    %p51 = scmp.ne.s32.totalorder %s46, %s48
    %p52 = scmp.eq.s32.totalorder %s12, 0
    %p53 = por %p51, %p52
    %p54 = scmp.ne.s32.totalorder %s46, %s48
    %p55 = scmp.eq.s32.totalorder %s17, 1
    %p56 = por %p54, %p55
    %p57 = scmp.ne.s32.totalorder %s48, %s49
    %p58 = scmp.eq.s32.totalorder %s17, 0
    %p59 = por %p57, %p58
    %p60 = scmp.ne.s32.totalorder %s48, %s49
    %p61 = scmp.eq.s32.totalorder %s18, 1
    %p62 = por %p60, %p61
    %p64 = scmp.ne.s32.totalorder %s49, %s63
    %p65 = scmp.eq.s32.totalorder %s18, 0
    %p66 = por %p64, %p65
    %s68 = sadd.s32 %s67, 1
    %p71 = scmp.eq.s32.totalorder %s12, 1
    %p72 = scmp.ne.s32.totalorder %s67, %s69
    %p73 = scmp.eq.s32.totalorder %s12, 0
    %p74 = por %p72, %p73
    %p75 = scmp.ne.s32.totalorder %s67, %s69
    %p76 = scmp.eq.s32.totalorder %s17, 1
    %p77 = por %p75, %p76
    %p78 = scmp.ne.s32.totalorder %s69, %s70
    %p79 = scmp.eq.s32.totalorder %s17, 0
    %p80 = por %p78, %p79
    %p81 = scmp.ne.s32.totalorder %s69, %s70
    %p82 = scmp.eq.s32.totalorder %s18, 1
    %p83 = por %p81, %p82
    %p85 = scmp.ne.s32.totalorder %s70, %s84
    %p86 = scmp.eq.s32.totalorder %s18, 0
    %p87 = por %p85, %p86
    %s89 = sadd.s32 %s88, 1
    %p92 = scmp.eq.s32.totalorder %s12, 1
    %p93 = scmp.ne.s32.totalorder %s88, %s90
    %p94 = scmp.eq.s32.totalorder %s12, 0
    %p95 = por %p93, %p94
    %p96 = scmp.ne.s32.totalorder %s88, %s90
    %p97 = scmp.eq.s32.totalorder %s17, 1
    %p98 = por %p96, %p97
    %p99 = scmp.ne.s32.totalorder %s90, %s91
    %p100 = scmp.eq.s32.totalorder %s17, 0
    %p101 = por %p99, %p100
    %p102 = scmp.ne.s32.totalorder %s90, %s91
    %p103 = scmp.eq.s32.totalorder %s18, 1
    %p104 = por %p102, %p103
    %p106 = scmp.ne.s32.totalorder %s91, %s105
    %p107 = scmp.eq.s32.totalorder %s18, 0
    %p108 = por %p106, %p107
    %s110 = sadd.s32 %s109, 1
    %p113 = scmp.eq.s32.totalorder %s12, 1
    %p114 = scmp.ne.s32.totalorder %s109, %s111
    %p115 = scmp.eq.s32.totalorder %s12, 0
    %p116 = por %p114, %p115
    %p117 = scmp.ne.s32.totalorder %s109, %s111
    %p118 = scmp.eq.s32.totalorder %s17, 1
    %p119 = por %p117, %p118
    %p120 = scmp.ne.s32.totalorder %s111, %s112
    %p121 = scmp.eq.s32.totalorder %s17, 0
    %p122 = por %p120, %p121
    %p123 = scmp.ne.s32.totalorder %s111, %s112
    %p124 = scmp.eq.s32.totalorder %s18, 1
    %p125 = por %p123, %p124
    %p127 = scmp.ne.s32.totalorder %s112, %s126
    %p128 = scmp.eq.s32.totalorder %s18, 0
    %p129 = por %p127, %p128
    %s131 = sadd.s32 %s130, 1
    %p134 = scmp.eq.s32.totalorder %s12, 1
    %p135 = scmp.ne.s32.totalorder %s130, %s132
    %p136 = scmp.eq.s32.totalorder %s12, 0
    %p137 = por %p135, %p136
    %p138 = scmp.ne.s32.totalorder %s130, %s132
    %p139 = scmp.eq.s32.totalorder %s17, 1
    %p140 = por %p138, %p139
    %p141 = scmp.ne.s32.totalorder %s132, %s133
    %p142 = scmp.eq.s32.totalorder %s17, 0
    %p143 = por %p141, %p142
    %p144 = scmp.ne.s32.totalorder %s132, %s133
    %p145 = scmp.eq.s32.totalorder %s18, 1
    %p146 = por %p144, %p145
    %p148 = scmp.ne.s32.totalorder %s133, %s147
    %p149 = scmp.eq.s32.totalorder %s18, 0
    %p150 = por %p148, %p149
    %s151 = ssub.s32 %s12, %s19
    %p152 = scmp.eq.s32.totalorder %s151, 0
    %s154 = sadd.s32 %s153, 1
    %s155 = scalar_select %p152, %s153, %s154
    %p158 = pneg %p152
    %p159 = scmp.eq.s32.totalorder %s12, 1
    %p160 = por %p158, %p159
    %p161 = scmp.ne.s32.totalorder %s153, %s156
    %p162 = scmp.eq.s32.totalorder %s12, 0
    %p163 = por %p161, %p162
    %p164 = scmp.ne.s32.totalorder %s153, %s156
    %p165 = scmp.eq.s32.totalorder %s17, 1
    %p166 = por %p164, %p165
    %p167 = scmp.ne.s32.totalorder %s156, %s157
    %p168 = scmp.eq.s32.totalorder %s17, 0
    %p169 = por %p167, %p168
    %p170 = scmp.ne.s32.totalorder %s156, %s157
    %p171 = scmp.eq.s32.totalorder %s18, 1
    %p172 = por %p170, %p171
    %p174 = scmp.ne.s32.totalorder %s157, %s173
    %p175 = scmp.eq.s32.totalorder %s18, 0
    %p176 = por %p174, %p175
    %p177 = scmp.le.s32.totalorder 1, %s12
    %p178 = scmp.lt.s32.totalorder %s12, 3
    %p179 = pnand %p177, %p178
    %p180 = pneg %p179
    // Predicated region
    $region9: #{bottleneck_densenet_forward.1} parent=5 // pred_check
      _
    $region10: #{bottleneck_densenet_forward.1} parent=5 // pred_check_branch
      %182 = sbr.rel (%p179) target = $region12
    $region11: #{bottleneck_densenet_forward.1} parent=5 // pred_region
      %s183 = ssub.s32 %s12, 1
      // Predicated region
      $region13: #{bottleneck_densenet_forward.1} parent=11 // pred_check
        %p184 = pneg %p59
      $region14: #{bottleneck_densenet_forward.1} parent=11 // pred_check_branch
        %186 = sbr.rel (%p184) target = $region16
      $region15: #{bottleneck_densenet_forward.1} parent=11 // pred_region
        _
      $region16: #{bottleneck_densenet_forward.1} parent=11 // pred_fallthru
        _
      // Predicated region
      $region17: #{bottleneck_densenet_forward.1} parent=11 // pred_check
        %p187 = pneg %p80
      $region18: #{bottleneck_densenet_forward.1} parent=11 // pred_check_branch
        %189 = sbr.rel (%p187) target = $region20
      $region19: #{bottleneck_densenet_forward.1} parent=11 // pred_region
        _
      $region20: #{bottleneck_densenet_forward.1} parent=11 // pred_fallthru
        _
      // Predicated region
      $region21: #{bottleneck_densenet_forward.1} parent=11 // pred_check
        %p190 = pneg %p101
      $region22: #{bottleneck_densenet_forward.1} parent=11 // pred_check_branch
        %192 = sbr.rel (%p190) target = $region24
      $region23: #{bottleneck_densenet_forward.1} parent=11 // pred_region
        _
      $region24: #{bottleneck_densenet_forward.1} parent=11 // pred_fallthru
        _
      // Predicated region
      $region25: #{bottleneck_densenet_forward.1} parent=11 // pred_check
        %p193 = pneg %p122
      $region26: #{bottleneck_densenet_forward.1} parent=11 // pred_check_branch
        %195 = sbr.rel (%p193) target = $region28
      $region27: #{bottleneck_densenet_forward.1} parent=11 // pred_region
        _
      $region28: #{bottleneck_densenet_forward.1} parent=11 // pred_fallthru
        _
      // Predicated region
      $region29: #{bottleneck_densenet_forward.1} parent=11 // pred_check
        %p196 = pneg %p143
      $region30: #{bottleneck_densenet_forward.1} parent=11 // pred_check_branch
        %198 = sbr.rel (%p196) target = $region32
      $region31: #{bottleneck_densenet_forward.1} parent=11 // pred_region
        _
      $region32: #{bottleneck_densenet_forward.1} parent=11 // pred_fallthru
        _
    $region12: #{bottleneck_densenet_forward.1} parent=5 // pred_fallthru
      _
    %p199 = scmp.lt.s32.totalorder %s12, 2
    // Predicated region
    $region33: #{bottleneck_densenet_forward.1} parent=5 // pred_check
      %p200 = pneg %p199
    $region34: #{bottleneck_densenet_forward.1} parent=5 // pred_check_branch
      %202 = sbr.rel (%p200) target = $region36
    $region35: #{bottleneck_densenet_forward.1} parent=5 // pred_region
      // Predicated region
      $region37: #{bottleneck_densenet_forward.1} parent=35 // pred_check
        %p203 = pneg %p32
      $region38: #{bottleneck_densenet_forward.1} parent=35 // pred_check_branch
        %205 = sbr.rel (%p203) target = $region40
      $region39: #{bottleneck_densenet_forward.1} parent=35 // pred_region
        %p206 = scmp.lt.s32.totalorder %s12, 1
        %s207 = scalar_select %p206, %s12, 1
        %s208 = smul.addr %s207, 32
        %s209 = smul.addr %s208, 8
        %s210 = scalar_lea.vmem %s0, %s209
      $region40: #{bottleneck_densenet_forward.1} parent=35 // pred_fallthru
        _
    $region36: #{bottleneck_densenet_forward.1} parent=5 // pred_fallthru
      _
    %p211 = scmp.le.s32.totalorder 1, %s12
    %p212 = scmp.lt.s32.totalorder %s12, 3
    %p213 = pnand %p211, %p212
    %p214 = pneg %p213
    // Predicated region
    $region41: #{bottleneck_densenet_forward.1} parent=5 // pred_check
      _
    $region42: #{bottleneck_densenet_forward.1} parent=5 // pred_check_branch
      %216 = sbr.rel (%p213) target = $region44
    $region43: #{bottleneck_densenet_forward.1} parent=5 // pred_region
      %s217 = ssub.s32 %s12, 1
      %p218 = scmp.lt.s32.totalorder %s17, 1
      %s219 = scalar_select %p218, %s17, 1
      %s220 = smul.addr %s219, 32
      %s221 = smul.addr %s220, 8
      %s222 = scalar_lea.vmem %s0, %s221
      %p223 = pneg %p38
      %p224 = pneg %p35
      %p225 = pneg %p59
      %p226 = pneg %p56
      %p227 = pneg %p80
      %p228 = pneg %p77
      %p229 = pneg %p101
      %p230 = pneg %p98
      %p231 = pneg %p122
      %p232 = pneg %p119
      %p233 = pneg %p143
      %p234 = pneg %p140
      %p235 = pneg %p169
      %p236 = pneg %p166
      %p237 = scmp.lt.s32.totalorder %s17, 1
      %s238 = scalar_select %p237, %s17, 1
      %s239 = smul.addr %s238, 32
      %s240 = smul.addr %s239, 8
      %s241 = scalar_lea.vmem %s6, %s240
      %p242 = scmp.lt.s32.totalorder %s17, 1
      %s243 = scalar_select %p242, %s17, 1
      %s244 = smul.addr %s243, 32
      %s245 = smul.addr %s244, 8
      %s246 = scalar_lea.vmem %s0, %s245
      %p247 = scmp.lt.s32.totalorder %s17, 1
      %s248 = scalar_select %p247, %s17, 1
      %s249 = smul.addr %s248, 32
      %s250 = smul.addr %s249, 8
      %s251 = scalar_lea.vmem %s6, %s250
      %vm253 = vcmask 519168
      %254 = vst.msk [vmem:[#allocation2] sm:$0xf] %vm253, 0
      %255 = vst.msk [vmem:[#allocation2 + $0x4] sm:$0xf] %vm253, 0
      %vm256 = vcmask 516096
      %257 = vst.msk [vmem:[#allocation2 + $0x8] sm:$0x1] %vm256, 0
      %258 = vst.msk [vmem:[#allocation2 + $0xc] sm:$0xf] %vm253, 0
      %259 = vst.msk [vmem:[#allocation2 + $0x10] sm:$0xf] %vm253, 0
      %260 = vst.msk [vmem:[#allocation2 + $0x14] sm:$0x1] %vm256, 0
      %261 = vst.msk [vmem:[#allocation2 + $0x18] sm:$0xf] %vm253, 0
      %262 = vst.msk [vmem:[#allocation2 + $0x1c] sm:$0xf] %vm253, 0
      %263 = vst.msk [vmem:[#allocation2 + $0x20] sm:$0x1] %vm256, 0
      %264 = vst.msk [vmem:[#allocation2 + $0x24] sm:$0xf] %vm253, 0
      %265 = vst.msk [vmem:[#allocation2 + $0x28] sm:$0xf] %vm253, 0
      %266 = vst.msk [vmem:[#allocation2 + $0x2c] sm:$0x1] %vm256, 0
      %267 = vst.msk [vmem:[#allocation2 + $0x30] sm:$0xf] %vm253, 0
      %268 = vst.msk [vmem:[#allocation2 + $0x34] sm:$0xf] %vm253, 0
      %269 = vst.msk [vmem:[#allocation2 + $0x38] sm:$0x1] %vm256, 0
      %270 = vst.msk [vmem:[#allocation2 + $0x3c] sm:$0xf] %vm253, 0
      %271 = vst.msk [vmem:[#allocation2 + $0x40] sm:$0xf] %vm253, 0
      %272 = vst.msk [vmem:[#allocation2 + $0x44] sm:$0x1] %vm256, 0
      %273 = vst.msk [vmem:[#allocation2 + $0x48] sm:$0xf] %vm253, 0
      %274 = vst.msk [vmem:[#allocation2 + $0x4c] sm:$0xf] %vm253, 0
      %275 = vst.msk [vmem:[#allocation2 + $0x50] sm:$0x1] %vm256, 0
      %276 = vst.msk [vmem:[#allocation2 + $0x54] sm:$0xf] %vm253, 0
      %277 = vst.msk [vmem:[#allocation2 + $0x58] sm:$0xf] %vm253, 0
      %278 = vst.msk [vmem:[#allocation2 + $0x5c] sm:$0x1] %vm256, 0
      %279 = vst.msk [vmem:[#allocation2 + $0x60] sm:$0xf] %vm253, 0
      %280 = vst.msk [vmem:[#allocation2 + $0x64] sm:$0xf] %vm253, 0
      %281 = vst.msk [vmem:[#allocation2 + $0x68] sm:$0x1] %vm256, 0
      %282 = vst.msk [vmem:[#allocation2 + $0x6c] sm:$0xf] %vm253, 0
      %283 = vst.msk [vmem:[#allocation2 + $0x70] sm:$0xf] %vm253, 0
      %284 = vst.msk [vmem:[#allocation2 + $0x74] sm:$0x1] %vm256, 0
      %285 = vst.msk [vmem:[#allocation2 + $0x78] sm:$0xf] %vm253, 0
      %286 = vst.msk [vmem:[#allocation2 + $0x7c] sm:$0xf] %vm253, 0
      %287 = vst.msk [vmem:[#allocation2 + $0x80] sm:$0x1] %vm256, 0
      %288 = vst.msk [vmem:[#allocation2 + $0x84] sm:$0xf] %vm253, 0
      %289 = vst.msk [vmem:[#allocation2 + $0x88] sm:$0xf] %vm253, 0
      %290 = vst.msk [vmem:[#allocation2 + $0x8c] sm:$0x1] %vm256, 0
      %291 = vst.msk [vmem:[#allocation2 + $0x90] sm:$0xf] %vm253, 0
      %292 = vst.msk [vmem:[#allocation2 + $0x94] sm:$0xf] %vm253, 0
      %293 = vst.msk [vmem:[#allocation2 + $0x98] sm:$0x1] %vm256, 0
      %294 = vst.msk [vmem:[#allocation2 + $0x9c] sm:$0xf] %vm253, 0
      %295 = vst.msk [vmem:[#allocation2 + $0xa0] sm:$0xf] %vm253, 0
      %296 = vst.msk [vmem:[#allocation2 + $0xa4] sm:$0x1] %vm256, 0
      %297 = vst.msk [vmem:[#allocation2 + $0xa8] sm:$0xf] %vm253, 0
      %298 = vst.msk [vmem:[#allocation2 + $0xac] sm:$0xf] %vm253, 0
      %299 = vst.msk [vmem:[#allocation2 + $0xb0] sm:$0x1] %vm256, 0
      %300 = vst.msk [vmem:[#allocation2 + $0xb4] sm:$0xf] %vm253, 0
      %301 = vst.msk [vmem:[#allocation2 + $0xb8] sm:$0xf] %vm253, 0
      %302 = vst.msk [vmem:[#allocation2 + $0xbc] sm:$0x1] %vm256, 0
      %303 = vst.msk [vmem:[#allocation2 + $0xc0] sm:$0xf] %vm253, 0
      %304 = vst.msk [vmem:[#allocation2 + $0xc4] sm:$0xf] %vm253, 0
      %305 = vst.msk [vmem:[#allocation2 + $0xc8] sm:$0x1] %vm256, 0
      %306 = vst.msk [vmem:[#allocation2 + $0xcc] sm:$0xf] %vm253, 0
      %307 = vst.msk [vmem:[#allocation2 + $0xd0] sm:$0xf] %vm253, 0
      %308 = vst.msk [vmem:[#allocation2 + $0xd4] sm:$0x1] %vm256, 0
      %v309 = vld [vmem:[%s246] sm:$0xff]
      %v310 = vld [vmem:[%s246 + $0x8] sm:$0xff]
      %v311 = vld [vmem:[%s246 + $0x10] sm:$0xff]
      %v312 = vld [vmem:[%s246 + $0x18] sm:$0xff]
      %v313 = vld [vmem:[%s246 + $0x20] sm:$0xff]
      %v314 = vld [vmem:[%s246 + $0x28] sm:$0xff]
      %v315 = vld [vmem:[%s246 + $0x30] sm:$0xff]
      %v316 = vld [vmem:[%s246 + $0x38] sm:$0xff]
      %v317 = vld [vmem:[%s246 + $0x40] sm:$0xff]
      %v318 = vld [vmem:[%s246 + $0x48] sm:$0xff]
      %v319 = vld [vmem:[%s246 + $0x50] sm:$0xff]
      %v320 = vld [vmem:[%s246 + $0x58] sm:$0xff]
      %v321 = vld [vmem:[%s246 + $0x60] sm:$0xff]
      %v322 = vld [vmem:[%s246 + $0x68] sm:$0xff]
      %v323 = vld [vmem:[%s246 + $0x70] sm:$0xff]
      %v324 = vld [vmem:[%s246 + $0x78] sm:$0xff]
      %v325 = vld [vmem:[%s246 + $0x80] sm:$0xff]
      %v326 = vld [vmem:[%s246 + $0x88] sm:$0xff]
      %v327 = vld [vmem:[%s246 + $0x90] sm:$0xff]
      %v328 = vld [vmem:[%s246 + $0x98] sm:$0xff]
      %v329 = vld [vmem:[%s246 + $0xa0] sm:$0xff]
      %v330 = vld [vmem:[%s246 + $0xa8] sm:$0xff]
      %v331 = vld [vmem:[%s246 + $0xb0] sm:$0xff]
      %v332 = vld [vmem:[%s246 + $0xb8] sm:$0xff]
      %v333 = vld [vmem:[%s246 + $0xc0] sm:$0xff]
      %v334 = vld [vmem:[%s246 + $0xc8] sm:$0xff]
      %v335 = vld [vmem:[%s246 + $0xd0] sm:$0xff]
      %v336 = vld [vmem:[%s246 + $0xd8] sm:$0xff]
      %v337 = vld [vmem:[%s246 + $0xe0] sm:$0xff]
      %v338 = vld [vmem:[%s246 + $0xe8] sm:$0xff]
      %v339 = vld [vmem:[%s246 + $0xf0] sm:$0xff]
      %v340 = vld [vmem:[%s246 + $0xf8] sm:$0xff]
      %v341 = vld [vmem:[%s1] sm:$0x1]
      %v343 = vlaneseq
      %v344 = vshrl.u32 %v343, 7
      %v345 = vsub.s32 0, %v344
      %v346 = vrot.slane %v341, %v345
      %v348 = vmul.f32 %v309, %v346
      %v349 = vmul.f32 %v310, %v346
      %v350 = vmul.f32 %v311, %v346
      %v351 = vmul.f32 %v312, %v346
      %v352 = vmul.f32 %v313, %v346
      %v353 = vmul.f32 %v314, %v346
      %v354 = vmul.f32 %v315, %v346
      %v355 = vmul.f32 %v316, %v346
      %v356 = vmul.f32 %v317, %v346
      %v357 = vmul.f32 %v318, %v346
      %v358 = vmul.f32 %v319, %v346
      %v359 = vmul.f32 %v320, %v346
      %v360 = vmul.f32 %v321, %v346
      %v361 = vmul.f32 %v322, %v346
      %v362 = vmul.f32 %v323, %v346
      %v363 = vmul.f32 %v324, %v346
      %v364 = vmul.f32 %v325, %v346
      %v365 = vmul.f32 %v326, %v346
      %v366 = vmul.f32 %v327, %v346
      %v367 = vmul.f32 %v328, %v346
      %v368 = vmul.f32 %v329, %v346
      %v369 = vmul.f32 %v330, %v346
      %v370 = vmul.f32 %v331, %v346
      %v371 = vmul.f32 %v332, %v346
      %v372 = vmul.f32 %v333, %v346
      %v373 = vmul.f32 %v334, %v346
      %v374 = vmul.f32 %v335, %v346
      %v375 = vmul.f32 %v336, %v346
      %v376 = vmul.f32 %v337, %v346
      %v377 = vmul.f32 %v338, %v346
      %v378 = vmul.f32 %v339, %v346
      %v379 = vmul.f32 %v340, %v346
      %v380 = vld [vmem:[%s2] sm:$0x1]
      %v382 = vlaneseq
      %v383 = vshrl.u32 %v382, 7
      %v384 = vsub.s32 0, %v383
      %v385 = vrot.slane %v380, %v384
      %v387 = vadd.f32 %v348, %v385
      %v388 = vadd.f32 %v349, %v385
      %v389 = vadd.f32 %v350, %v385
      %v390 = vadd.f32 %v351, %v385
      %v391 = vadd.f32 %v352, %v385
      %v392 = vadd.f32 %v353, %v385
      %v393 = vadd.f32 %v354, %v385
      %v394 = vadd.f32 %v355, %v385
      %v395 = vadd.f32 %v356, %v385
      %v396 = vadd.f32 %v357, %v385
      %v397 = vadd.f32 %v358, %v385
      %v398 = vadd.f32 %v359, %v385
      %v399 = vadd.f32 %v360, %v385
      %v400 = vadd.f32 %v361, %v385
      %v401 = vadd.f32 %v362, %v385
      %v402 = vadd.f32 %v363, %v385
      %v403 = vadd.f32 %v364, %v385
      %v404 = vadd.f32 %v365, %v385
      %v405 = vadd.f32 %v366, %v385
      %v406 = vadd.f32 %v367, %v385
      %v407 = vadd.f32 %v368, %v385
      %v408 = vadd.f32 %v369, %v385
      %v409 = vadd.f32 %v370, %v385
      %v410 = vadd.f32 %v371, %v385
      %v411 = vadd.f32 %v372, %v385
      %v412 = vadd.f32 %v373, %v385
      %v413 = vadd.f32 %v374, %v385
      %v414 = vadd.f32 %v375, %v385
      %v415 = vadd.f32 %v376, %v385
      %v416 = vadd.f32 %v377, %v385
      %v417 = vadd.f32 %v378, %v385
      %v418 = vadd.f32 %v379, %v385
      %v419 = vmax.f32 %v387, 0.0
      %v420 = vmax.f32 %v388, 0.0
      %v421 = vmax.f32 %v389, 0.0
      %v422 = vmax.f32 %v390, 0.0
      %v423 = vmax.f32 %v391, 0.0
      %v424 = vmax.f32 %v392, 0.0
      %v425 = vmax.f32 %v393, 0.0
      %v426 = vmax.f32 %v394, 0.0
      %v427 = vmax.f32 %v395, 0.0
      %v428 = vmax.f32 %v396, 0.0
      %v429 = vmax.f32 %v397, 0.0
      %v430 = vmax.f32 %v398, 0.0
      %v431 = vmax.f32 %v399, 0.0
      %v432 = vmax.f32 %v400, 0.0
      %v433 = vmax.f32 %v401, 0.0
      %v434 = vmax.f32 %v402, 0.0
      %v435 = vmax.f32 %v403, 0.0
      %v436 = vmax.f32 %v404, 0.0
      %v437 = vmax.f32 %v405, 0.0
      %v438 = vmax.f32 %v406, 0.0
      %v439 = vmax.f32 %v407, 0.0
      %v440 = vmax.f32 %v408, 0.0
      %v441 = vmax.f32 %v409, 0.0
      %v442 = vmax.f32 %v410, 0.0
      %v443 = vmax.f32 %v411, 0.0
      %v444 = vmax.f32 %v412, 0.0
      %v445 = vmax.f32 %v413, 0.0
      %v446 = vmax.f32 %v414, 0.0
      %v447 = vmax.f32 %v415, 0.0
      %v448 = vmax.f32 %v416, 0.0
      %v449 = vmax.f32 %v417, 0.0
      %v450 = vmax.f32 %v418, 0.0
      %v451 = vpack.c.bf16 %v420, %v419
      %v452 = vpack.c.bf16 %v422, %v421
      %v453 = vpack.c.bf16 %v424, %v423
      %v454 = vpack.c.bf16 %v426, %v425
      %v455 = vpack.c.bf16 %v428, %v427
      %v456 = vpack.c.bf16 %v430, %v429
      %v457 = vpack.c.bf16 %v432, %v431
      %v458 = vpack.c.bf16 %v434, %v433
      %v459 = vpack.c.bf16 %v436, %v435
      %v460 = vpack.c.bf16 %v438, %v437
      %v461 = vpack.c.bf16 %v440, %v439
      %v462 = vpack.c.bf16 %v442, %v441
      %v463 = vpack.c.bf16 %v444, %v443
      %v464 = vpack.c.bf16 %v446, %v445
      %v465 = vpack.c.bf16 %v448, %v447
      %v466 = vpack.c.bf16 %v450, %v449
      %v467 = vld [vmem:[%s3] sm:$0xf]
      %v468 = vld [vmem:[%s3 + $0x4] sm:$0xf]
      %v469 = vld [vmem:[%s3 + $0x8] sm:$0xf]
      %v470 = vld [vmem:[%s3 + $0xc] sm:$0xf]
      %v471 = vld [vmem:[%s4] sm:$0x1]
      %v473 = vlaneseq
      %v474 = vshrl.u32 %v473, 7
      %v475 = vsub.s32 0, %v474
      %v476 = vrot.slane %v471, %v475
      %v482 = vunpack.c.l.b16 %v467
      %v483 = vunpack.c.l.b16 %v468
      %v484 = vunpack.c.l.b16 %v469
      %v485 = vunpack.c.l.b16 %v470
      %v486 = vpack.c.b16 %v483, %v482
      %v487 = vpack.c.b16 %v485, %v484
      %vm490 = vcmask 261120
      %v492 = vsel %vm490, %v451, 0
      %v495 = vsel %vm490, %v452, 0
      %v498 = vsel %vm490, %v453, 0
      %v501 = vsel %vm490, %v454, 0
      %v504 = vsel %vm490, %v455, 0
      %v507 = vsel %vm490, %v456, 0
      %v510 = vsel %vm490, %v457, 0
      %v513 = vsel %vm490, %v458, 0
      %v516 = vsel %vm490, %v459, 0
      %v519 = vsel %vm490, %v460, 0
      %v522 = vsel %vm490, %v461, 0
      %v525 = vsel %vm490, %v462, 0
      %v528 = vsel %vm490, %v463, 0
      %v531 = vsel %vm490, %v464, 0
      %v534 = vsel %vm490, %v465, 0
      %v537 = vsel %vm490, %v466, 0
      %539 = vmatprep.subr.bf16.mxu0 0
      %540 = vmatpush1.bf16.msra.mxu0 %v486
      %541 = vmatprep.subr.bf16.mxu0 0
      %542 = vmatpush1.bf16.msra.mxu0 %v487
      %543 = vmatprep.subr.bf16.mxu0 0
      %544 = vmatpush1.bf16.msra.mxu0 0
      %545 = vmatprep.subr.bf16.mxu0 0
      %546 = vmatpush1.bf16.msra.mxu0 0
      %547 = vmatprep.subr.bf16.mxu0 0
      %548 = vmatpush1.bf16.msra.mxu0 0
      %549 = vmatprep.subr.bf16.mxu0 0
      %550 = vmatpush1.bf16.msra.mxu0 0
      %551 = vmatprep.subr.bf16.mxu0 0
      %552 = vmatpush1.bf16.msra.mxu0 0
      %553 = vmatprep.subr.bf16.mxu0 0
      %554 = vmatpush1.bf16.msra.mxu0 0
      %555 = vmatprep.subr.bf16.mxu0 0
      %556 = vmatpush1.bf16.msra.mxu0 0
      %557 = vmatprep.subr.bf16.mxu0 0
      %558 = vmatpush1.bf16.msra.mxu0 0
      %559 = vmatprep.subr.bf16.mxu0 0
      %560 = vmatpush1.bf16.msra.mxu0 0
      %561 = vmatprep.subr.bf16.mxu0 0
      %562 = vmatpush1.bf16.msra.mxu0 0
      %563 = vmatprep.subr.bf16.mxu0 0
      %564 = vmatpush1.bf16.msra.mxu0 0
      %565 = vmatprep.subr.bf16.mxu0 0
      %566 = vmatpush1.bf16.msra.mxu0 0
      %567 = vmatprep.subr.bf16.mxu0 0
      %568 = vmatpush1.bf16.msra.mxu0 0
      %569 = vmatprep.subr.bf16.mxu0 0
      %570 = vmatpush1.bf16.msra.mxu0 0
      %571 = vmatprep.mubr.bf16.mxu0 0
      %572 = vmatmul.mubr.bf16.gmra.mrb[0].mxu0 %v492
      %v573 = vpop.f32.mrb[0].mxu0
      %v574 = vadd.f32 %v476, %v573
      %v575 = vpop.f32.mrb[0].mxu0
      %v576 = vpop.f32.mrb[0].mxu0
      %v577 = vadd.f32 %v476, %v576
      %v578 = vpop.f32.mrb[0].mxu0
      %579 = vmatprep.mubr.bf16.mxu0 0
      %580 = vmatmul.mubr.bf16.gmra.mrb[0].mxu0 %v495
      %v581 = vpop.f32.mrb[0].mxu0
      %v582 = vadd.f32 %v476, %v581
      %v583 = vpop.f32.mrb[0].mxu0
      %v584 = vpop.f32.mrb[0].mxu0
      %v585 = vadd.f32 %v476, %v584
      %v586 = vpop.f32.mrb[0].mxu0
      %587 = vmatprep.mubr.bf16.mxu0 0
      %588 = vmatmul.mubr.bf16.gmra.mrb[0].mxu0 %v498
      %v589 = vpop.f32.mrb[0].mxu0
      %v590 = vadd.f32 %v476, %v589
      %v591 = vpop.f32.mrb[0].mxu0
      %v592 = vpop.f32.mrb[0].mxu0
      %v593 = vadd.f32 %v476, %v592
      %v594 = vpop.f32.mrb[0].mxu0
      %595 = vmatprep.mubr.bf16.mxu0 0
      %596 = vmatmul.mubr.bf16.gmra.mrb[0].mxu0 %v501
      %v597 = vpop.f32.mrb[0].mxu0
      %v598 = vadd.f32 %v476, %v597
      %v599 = vpop.f32.mrb[0].mxu0
      %v600 = vpop.f32.mrb[0].mxu0
      %v601 = vadd.f32 %v476, %v600
      %v602 = vpop.f32.mrb[0].mxu0
      %603 = vmatprep.mubr.bf16.mxu0 0
      %604 = vmatmul.mubr.bf16.gmra.mrb[0].mxu0 %v504
      %v605 = vpop.f32.mrb[0].mxu0
      %v606 = vadd.f32 %v476, %v605
      %v607 = vpop.f32.mrb[0].mxu0
      %v608 = vpop.f32.mrb[0].mxu0
      %v609 = vadd.f32 %v476, %v608
      %v610 = vpop.f32.mrb[0].mxu0
      %611 = vmatprep.mubr.bf16.mxu0 0
      %612 = vmatmul.mubr.bf16.gmra.mrb[0].mxu0 %v507
      %v613 = vpop.f32.mrb[0].mxu0
      %v614 = vadd.f32 %v476, %v613
      %v615 = vpop.f32.mrb[0].mxu0
      %v616 = vpop.f32.mrb[0].mxu0
      %v617 = vadd.f32 %v476, %v616
      %v618 = vpop.f32.mrb[0].mxu0
      %619 = vmatprep.mubr.bf16.mxu0 0
      %620 = vmatmul.mubr.bf16.gmra.mrb[0].mxu0 %v510
      %v621 = vpop.f32.mrb[0].mxu0
      %v622 = vadd.f32 %v476, %v621
      %v623 = vpop.f32.mrb[0].mxu0
      %v624 = vpop.f32.mrb[0].mxu0
      %v625 = vadd.f32 %v476, %v624
      %v626 = vpop.f32.mrb[0].mxu0
      %627 = vmatprep.mubr.bf16.mxu0 0
      %628 = vmatmul.mubr.bf16.gmra.mrb[0].mxu0 %v513
      %v629 = vpop.f32.mrb[0].mxu0
      %v630 = vadd.f32 %v476, %v629
      %v631 = vpop.f32.mrb[0].mxu0
      %v632 = vpop.f32.mrb[0].mxu0
      %v633 = vadd.f32 %v476, %v632
      %v634 = vpop.f32.mrb[0].mxu0
      %635 = vmatprep.mubr.bf16.mxu0 0
      %636 = vmatmul.mubr.bf16.gmra.mrb[0].mxu0 %v516
      %v637 = vpop.f32.mrb[0].mxu0
      %v638 = vadd.f32 %v476, %v637
      %v639 = vpop.f32.mrb[0].mxu0
      %v640 = vpop.f32.mrb[0].mxu0
      %v641 = vadd.f32 %v476, %v640
      %v642 = vpop.f32.mrb[0].mxu0
      %643 = vmatprep.mubr.bf16.mxu0 0
      %644 = vmatmul.mubr.bf16.gmra.mrb[0].mxu0 %v519
      %v645 = vpop.f32.mrb[0].mxu0
      %v646 = vadd.f32 %v476, %v645
      %v647 = vpop.f32.mrb[0].mxu0
      %v648 = vpop.f32.mrb[0].mxu0
      %v649 = vadd.f32 %v476, %v648
      %v650 = vpop.f32.mrb[0].mxu0
      %651 = vmatprep.mubr.bf16.mxu0 0
      %652 = vmatmul.mubr.bf16.gmra.mrb[0].mxu0 %v522
      %v653 = vpop.f32.mrb[0].mxu0
      %v654 = vadd.f32 %v476, %v653
      %v655 = vpop.f32.mrb[0].mxu0
      %v656 = vpop.f32.mrb[0].mxu0
      %v657 = vadd.f32 %v476, %v656
      %v658 = vpop.f32.mrb[0].mxu0
      %659 = vmatprep.mubr.bf16.mxu0 0
      %660 = vmatmul.mubr.bf16.gmra.mrb[0].mxu0 %v525
      %v661 = vpop.f32.mrb[0].mxu0
      %v662 = vadd.f32 %v476, %v661
      %v663 = vpop.f32.mrb[0].mxu0
      %v664 = vpop.f32.mrb[0].mxu0
      %v665 = vadd.f32 %v476, %v664
      %v666 = vpop.f32.mrb[0].mxu0
      %667 = vmatprep.mubr.bf16.mxu0 0
      %668 = vmatmul.mubr.bf16.gmra.mrb[0].mxu0 %v528
      %v669 = vpop.f32.mrb[0].mxu0
      %v670 = vadd.f32 %v476, %v669
      %v671 = vpop.f32.mrb[0].mxu0
      %v672 = vpop.f32.mrb[0].mxu0
      %v673 = vadd.f32 %v476, %v672
      %v674 = vpop.f32.mrb[0].mxu0
      %675 = vmatprep.mubr.bf16.mxu0 0
      %676 = vmatmul.mubr.bf16.gmra.mrb[0].mxu0 %v531
      %v677 = vpop.f32.mrb[0].mxu0
      %v678 = vadd.f32 %v476, %v677
      %v679 = vpop.f32.mrb[0].mxu0
      %v680 = vpop.f32.mrb[0].mxu0
      %v681 = vadd.f32 %v476, %v680
      %v682 = vpop.f32.mrb[0].mxu0
      %683 = vmatprep.mubr.bf16.mxu0 0
      %684 = vmatmul.mubr.bf16.gmra.mrb[0].mxu0 %v534
      %v685 = vpop.f32.mrb[0].mxu0
      %v686 = vadd.f32 %v476, %v685
      %v687 = vpop.f32.mrb[0].mxu0
      %v688 = vpop.f32.mrb[0].mxu0
      %v689 = vadd.f32 %v476, %v688
      %v690 = vpop.f32.mrb[0].mxu0
      %691 = vmatprep.mubr.bf16.mxu0 0
      %692 = vmatmul.mubr.bf16.gmra.mrb[0].mxu0 %v537
      %v693 = vpop.f32.mrb[0].mxu0
      %v694 = vadd.f32 %v476, %v693
      %v695 = vpop.f32.mrb[0].mxu0
      %v696 = vpop.f32.mrb[0].mxu0
      %v697 = vadd.f32 %v476, %v696
      %v698 = vpop.f32.mrb[0].mxu0
      %699 = vdwg.mxu0
      %v700 = vmax.f32 %v574, 0.0
      %v701 = vmax.f32 %v577, 0.0
      %v702 = vmax.f32 %v582, 0.0
      %v703 = vmax.f32 %v585, 0.0
      %v704 = vmax.f32 %v590, 0.0
      %v705 = vmax.f32 %v593, 0.0
      %v706 = vmax.f32 %v598, 0.0
      %v707 = vmax.f32 %v601, 0.0
      %v708 = vmax.f32 %v606, 0.0
      %v709 = vmax.f32 %v609, 0.0
      %v710 = vmax.f32 %v614, 0.0
      %v711 = vmax.f32 %v617, 0.0
      %v712 = vmax.f32 %v622, 0.0
      %v713 = vmax.f32 %v625, 0.0
      %v714 = vmax.f32 %v630, 0.0
      %v715 = vmax.f32 %v633, 0.0
      %v716 = vmax.f32 %v638, 0.0
      %v717 = vmax.f32 %v641, 0.0
      %v718 = vmax.f32 %v646, 0.0
      %v719 = vmax.f32 %v649, 0.0
      %v720 = vmax.f32 %v654, 0.0
      %v721 = vmax.f32 %v657, 0.0
      %v722 = vmax.f32 %v662, 0.0
      %v723 = vmax.f32 %v665, 0.0
      %v724 = vmax.f32 %v670, 0.0
      %v725 = vmax.f32 %v673, 0.0
      %v726 = vmax.f32 %v678, 0.0
      %v727 = vmax.f32 %v681, 0.0
      %v728 = vmax.f32 %v686, 0.0
      %v729 = vmax.f32 %v689, 0.0
      %v730 = vmax.f32 %v694, 0.0
      %v731 = vmax.f32 %v697, 0.0
      %v732 = vpack.c.bf16 %v701, %v700
      %v733 = vpack.c.bf16 %v703, %v702
      %v734 = vpack.c.bf16 %v705, %v704
      %v735 = vpack.c.bf16 %v707, %v706
      %v736 = vpack.c.bf16 %v709, %v708
      %v737 = vpack.c.bf16 %v711, %v710
      %v738 = vpack.c.bf16 %v713, %v712
      %v739 = vpack.c.bf16 %v715, %v714
      %v740 = vpack.c.bf16 %v717, %v716
      %v741 = vpack.c.bf16 %v719, %v718
      %v742 = vpack.c.bf16 %v721, %v720
      %v743 = vpack.c.bf16 %v723, %v722
      %v744 = vpack.c.bf16 %v725, %v724
      %v745 = vpack.c.bf16 %v727, %v726
      %v746 = vpack.c.bf16 %v729, %v728
      %v747 = vpack.c.bf16 %v731, %v730
      %v764 = vunpack.c.l.b16 %v732
      %v765 = vunpack.c.h.b16 %v732
      %v766 = vunpack.c.l.b16 %v733
      %v767 = vunpack.c.h.b16 %v733
      %v768 = vunpack.c.l.b16 %v734
      %v769 = vunpack.c.h.b16 %v734
      %v770 = vunpack.c.l.b16 %v735
      %v771 = vunpack.c.h.b16 %v735
      %v772 = vunpack.c.l.b16 %v736
      %v773 = vunpack.c.h.b16 %v736
      %v774 = vunpack.c.l.b16 %v737
      %v775 = vunpack.c.h.b16 %v737
      %v776 = vunpack.c.l.b16 %v738
      %v777 = vunpack.c.h.b16 %v738
      %v778 = vunpack.c.l.b16 %v739
      %v779 = vunpack.c.h.b16 %v739
      %v780 = vunpack.c.l.b16 %v740
      %v781 = vunpack.c.h.b16 %v740
      %v782 = vunpack.c.l.b16 %v741
      %v783 = vunpack.c.h.b16 %v741
      %v784 = vunpack.c.l.b16 %v742
      %v785 = vunpack.c.h.b16 %v742
      %v786 = vunpack.c.l.b16 %v743
      %v787 = vunpack.c.h.b16 %v743
      %v788 = vunpack.c.l.b16 %v744
      %v789 = vunpack.c.h.b16 %v744
      %v790 = vunpack.c.l.b16 %v745
      %v791 = vunpack.c.h.b16 %v745
      %v792 = vunpack.c.l.b16 %v746
      %v793 = vunpack.c.h.b16 %v746
      %v794 = vunpack.c.l.b16 %v747
      %v795 = vunpack.c.h.b16 %v747
      %v796 = vpack.c.b16 %v764, %v764
      %v797 = vpack.c.b16 %v765, %v765
      %v798 = vpack.c.b16 %v766, %v766
      %v799 = vpack.c.b16 %v767, %v767
      %v800 = vpack.c.b16 %v768, %v768
      %v801 = vpack.c.b16 %v769, %v769
      %v802 = vpack.c.b16 %v770, %v770
      %v803 = vpack.c.b16 %v771, %v771
      %v804 = vpack.c.b16 %v772, %v772
      %v805 = vpack.c.b16 %v773, %v773
      %v806 = vpack.c.b16 %v774, %v774
      %v807 = vpack.c.b16 %v775, %v775
      %v808 = vpack.c.b16 %v776, %v776
      %v809 = vpack.c.b16 %v777, %v777
      %v810 = vpack.c.b16 %v778, %v778
      %v811 = vpack.c.b16 %v779, %v779
      %v812 = vpack.c.b16 %v780, %v780
      %v813 = vpack.c.b16 %v781, %v781
      %v814 = vpack.c.b16 %v782, %v782
      %v815 = vpack.c.b16 %v783, %v783
      %v816 = vpack.c.b16 %v784, %v784
      %v817 = vpack.c.b16 %v785, %v785
      %v818 = vpack.c.b16 %v786, %v786
      %v819 = vpack.c.b16 %v787, %v787
      %v820 = vpack.c.b16 %v788, %v788
      %v821 = vpack.c.b16 %v789, %v789
      %v822 = vpack.c.b16 %v790, %v790
      %v823 = vpack.c.b16 %v791, %v791
      %v824 = vpack.c.b16 %v792, %v792
      %v825 = vpack.c.b16 %v793, %v793
      %v826 = vpack.c.b16 %v794, %v794
      %v827 = vpack.c.b16 %v795, %v795
      %vm828 = vsmask.f32 256
      %vm829 = vsmask.f32 4368
      %vm830 = vmor %vm828, %vm829
      %v832 = vshrl.u32 %v796, 16
      %v834 = vrot.slane %v832, 7
      %v835 = vshll.u32 %v796, 16
      %v837 = vor.u32 %v834, %v835
      %v838 = vrot.slane %v834, 4
      %v840 = vshrl.u32 %v797, 16
      %v842 = vrot.slane %v840, 7
      %v843 = vshll.u32 %v797, 16
      %v845 = vor.u32 %v842, %v843
      %v846 = vsel %vm830, %v838, %v845
      %v847 = vrot.slane %v842, 4
      %v849 = vshrl.u32 %v798, 16
      %v851 = vrot.slane %v849, 7
      %v852 = vshll.u32 %v798, 16
      %v854 = vor.u32 %v851, %v852
      %v855 = vrot.slane %v851, 4
      %v857 = vshrl.u32 %v799, 16
      %v859 = vrot.slane %v857, 7
      %v860 = vshll.u32 %v799, 16
      %v862 = vor.u32 %v859, %v860
      %v863 = vsel %vm830, %v855, %v862
      %v864 = vrot.slane %v859, 4
      %v866 = vshrl.u32 %v800, 16
      %v868 = vrot.slane %v866, 7
      %v869 = vshll.u32 %v800, 16
      %v871 = vor.u32 %v868, %v869
      %v872 = vrot.slane %v868, 4
      %v874 = vshrl.u32 %v801, 16
      %v876 = vrot.slane %v874, 7
      %v877 = vshll.u32 %v801, 16
      %v879 = vor.u32 %v876, %v877
      %v880 = vsel %vm830, %v872, %v879
      %v881 = vrot.slane %v876, 4
      %v883 = vshrl.u32 %v802, 16
      %v885 = vrot.slane %v883, 7
      %v886 = vshll.u32 %v802, 16
      %v888 = vor.u32 %v885, %v886
      %v889 = vrot.slane %v885, 4
      %v891 = vshrl.u32 %v803, 16
      %v893 = vrot.slane %v891, 7
      %v894 = vshll.u32 %v803, 16
      %v896 = vor.u32 %v893, %v894
      %v897 = vsel %vm830, %v889, %v896
      %v898 = vrot.slane %v893, 4
      %v900 = vshrl.u32 %v804, 16
      %v902 = vrot.slane %v900, 7
      %v903 = vshll.u32 %v804, 16
      %v905 = vor.u32 %v902, %v903
      %v906 = vrot.slane %v902, 4
      %v908 = vshrl.u32 %v805, 16
      %v910 = vrot.slane %v908, 7
      %v911 = vshll.u32 %v805, 16
      %v913 = vor.u32 %v910, %v911
      %v914 = vsel %vm830, %v906, %v913
      %v915 = vrot.slane %v910, 4
      %v917 = vshrl.u32 %v806, 16
      %v919 = vrot.slane %v917, 7
      %v920 = vshll.u32 %v806, 16
      %v922 = vor.u32 %v919, %v920
      %v923 = vrot.slane %v919, 4
      %v925 = vshrl.u32 %v807, 16
      %v927 = vrot.slane %v925, 7
      %v928 = vshll.u32 %v807, 16
      %v930 = vor.u32 %v927, %v928
      %v931 = vsel %vm830, %v923, %v930
      %v932 = vrot.slane %v927, 4
      %v934 = vshrl.u32 %v808, 16
      %v936 = vrot.slane %v934, 7
      %v937 = vshll.u32 %v808, 16
      %v939 = vor.u32 %v936, %v937
      %v940 = vrot.slane %v936, 4
      %v942 = vshrl.u32 %v809, 16
      %v944 = vrot.slane %v942, 7
      %v945 = vshll.u32 %v809, 16
      %v947 = vor.u32 %v944, %v945
      %v948 = vsel %vm830, %v940, %v947
      %v949 = vrot.slane %v944, 4
      %v951 = vshrl.u32 %v810, 16
      %v953 = vrot.slane %v951, 7
      %v954 = vshll.u32 %v810, 16
      %v956 = vor.u32 %v953, %v954
      %v957 = vrot.slane %v953, 4
      %v959 = vshrl.u32 %v811, 16
      %v961 = vrot.slane %v959, 7
      %v962 = vshll.u32 %v811, 16
      %v964 = vor.u32 %v961, %v962
      %v965 = vsel %vm830, %v957, %v964
      %v966 = vrot.slane %v961, 4
      %v968 = vshrl.u32 %v812, 16
      %v970 = vrot.slane %v968, 7
      %v971 = vshll.u32 %v812, 16
      %v973 = vor.u32 %v970, %v971
      %v974 = vrot.slane %v970, 4
      %v976 = vshrl.u32 %v813, 16
      %v978 = vrot.slane %v976, 7
      %v979 = vshll.u32 %v813, 16
      %v981 = vor.u32 %v978, %v979
      %v982 = vsel %vm830, %v974, %v981
      %v983 = vrot.slane %v978, 4
      %v985 = vshrl.u32 %v814, 16
      %v987 = vrot.slane %v985, 7
      %v988 = vshll.u32 %v814, 16
      %v990 = vor.u32 %v987, %v988
      %v991 = vrot.slane %v987, 4
      %v993 = vshrl.u32 %v815, 16
      %v995 = vrot.slane %v993, 7
      %v996 = vshll.u32 %v815, 16
      %v998 = vor.u32 %v995, %v996
      %v999 = vsel %vm830, %v991, %v998
      %v1000 = vrot.slane %v995, 4
      %v1002 = vshrl.u32 %v816, 16
      %v1004 = vrot.slane %v1002, 7
      %v1005 = vshll.u32 %v816, 16
      %v1007 = vor.u32 %v1004, %v1005
      %v1008 = vrot.slane %v1004, 4
      %v1010 = vshrl.u32 %v817, 16
      %v1012 = vrot.slane %v1010, 7
      %v1013 = vshll.u32 %v817, 16
      %v1015 = vor.u32 %v1012, %v1013
      %v1016 = vsel %vm830, %v1008, %v1015
      %v1017 = vrot.slane %v1012, 4
      %v1019 = vshrl.u32 %v818, 16
      %v1021 = vrot.slane %v1019, 7
      %v1022 = vshll.u32 %v818, 16
      %v1024 = vor.u32 %v1021, %v1022
      %v1025 = vrot.slane %v1021, 4
      %v1027 = vshrl.u32 %v819, 16
      %v1029 = vrot.slane %v1027, 7
      %v1030 = vshll.u32 %v819, 16
      %v1032 = vor.u32 %v1029, %v1030
      %v1033 = vsel %vm830, %v1025, %v1032
      %v1034 = vrot.slane %v1029, 4
      %v1036 = vshrl.u32 %v820, 16
      %v1038 = vrot.slane %v1036, 7
      %v1039 = vshll.u32 %v820, 16
      %v1041 = vor.u32 %v1038, %v1039
      %v1042 = vrot.slane %v1038, 4
      %v1044 = vshrl.u32 %v821, 16
      %v1046 = vrot.slane %v1044, 7
      %v1047 = vshll.u32 %v821, 16
      %v1049 = vor.u32 %v1046, %v1047
      %v1050 = vsel %vm830, %v1042, %v1049
      %v1051 = vrot.slane %v1046, 4
      %v1053 = vshrl.u32 %v822, 16
      %v1055 = vrot.slane %v1053, 7
      %v1056 = vshll.u32 %v822, 16
      %v1058 = vor.u32 %v1055, %v1056
      %v1059 = vrot.slane %v1055, 4
      %v1061 = vshrl.u32 %v823, 16
      %v1063 = vrot.slane %v1061, 7
      %v1064 = vshll.u32 %v823, 16
      %v1066 = vor.u32 %v1063, %v1064
      %v1067 = vsel %vm830, %v1059, %v1066
      %v1068 = vrot.slane %v1063, 4
      %v1070 = vshrl.u32 %v824, 16
      %v1072 = vrot.slane %v1070, 7
      %v1073 = vshll.u32 %v824, 16
      %v1075 = vor.u32 %v1072, %v1073
      %v1076 = vrot.slane %v1072, 4
      %v1078 = vshrl.u32 %v825, 16
      %v1080 = vrot.slane %v1078, 7
      %v1081 = vshll.u32 %v825, 16
      %v1083 = vor.u32 %v1080, %v1081
      %v1084 = vsel %vm830, %v1076, %v1083
      %v1085 = vrot.slane %v1080, 4
      %v1087 = vshrl.u32 %v826, 16
      %v1089 = vrot.slane %v1087, 7
      %v1090 = vshll.u32 %v826, 16
      %v1092 = vor.u32 %v1089, %v1090
      %v1093 = vrot.slane %v1089, 4
      %v1095 = vshrl.u32 %v827, 16
      %v1097 = vrot.slane %v1095, 7
      %v1098 = vshll.u32 %v827, 16
      %v1100 = vor.u32 %v1097, %v1098
      %v1101 = vsel %vm830, %v1093, %v1100
      %v1102 = vrot.slane %v1097, 4
      %s1151 = scalar_lea.vmem [#allocation2], 12
      %vm1152 = vcmask 519168
      %vm1153 = vsmask.f32 7938
      %vm1154 = vmand %vm1152, %vm1153
      %v1155 = vld [vmem:[%s1151] sm:$0xf]
      %v1156 = vsel %vm1154, %v837, %v1155
      %1157 = vst [vmem:[%s1151] sm:$0xf] %v1156
      %1158 = vst.msk [vmem:[%s1151 + $0x4] sm:$0xf] %vm253, %v846
      %vm1159 = vcmask 516096
      %vm1160 = vmand %vm1159, %vm828
      %v1161 = vld [vmem:[%s1151 + $0x8] sm:$0x1]
      %v1162 = vsel %vm1160, %v847, %v1161
      %1163 = vst [vmem:[%s1151 + $0x8] sm:$0x1] %v1162
      %v1164 = vld [vmem:[%s1151 + $0xc] sm:$0xf]
      %v1165 = vsel %vm1154, %v854, %v1164
      %1166 = vst [vmem:[%s1151 + $0xc] sm:$0xf] %v1165
      %1167 = vst.msk [vmem:[%s1151 + $0x10] sm:$0xf] %vm253, %v863
      %v1168 = vld [vmem:[%s1151 + $0x14] sm:$0x1]
      %v1169 = vsel %vm1160, %v864, %v1168
      %1170 = vst [vmem:[%s1151 + $0x14] sm:$0x1] %v1169
      %v1171 = vld [vmem:[%s1151 + $0x18] sm:$0xf]
      %v1172 = vsel %vm1154, %v871, %v1171
      %1173 = vst [vmem:[%s1151 + $0x18] sm:$0xf] %v1172
      %1174 = vst.msk [vmem:[%s1151 + $0x1c] sm:$0xf] %vm253, %v880
      %v1175 = vld [vmem:[%s1151 + $0x20] sm:$0x1]
      %v1176 = vsel %vm1160, %v881, %v1175
      %1177 = vst [vmem:[%s1151 + $0x20] sm:$0x1] %v1176
      %v1178 = vld [vmem:[%s1151 + $0x24] sm:$0xf]
      %v1179 = vsel %vm1154, %v888, %v1178
      %1180 = vst [vmem:[%s1151 + $0x24] sm:$0xf] %v1179
      %1181 = vst.msk [vmem:[%s1151 + $0x28] sm:$0xf] %vm253, %v897
      %v1182 = vld [vmem:[%s1151 + $0x2c] sm:$0x1]
      %v1183 = vsel %vm1160, %v898, %v1182
      %1184 = vst [vmem:[%s1151 + $0x2c] sm:$0x1] %v1183
      %v1185 = vld [vmem:[%s1151 + $0x30] sm:$0xf]
      %v1186 = vsel %vm1154, %v905, %v1185
      %1187 = vst [vmem:[%s1151 + $0x30] sm:$0xf] %v1186
      %1188 = vst.msk [vmem:[%s1151 + $0x34] sm:$0xf] %vm253, %v914
      %v1189 = vld [vmem:[%s1151 + $0x38] sm:$0x1]
      %v1190 = vsel %vm1160, %v915, %v1189
      %1191 = vst [vmem:[%s1151 + $0x38] sm:$0x1] %v1190
      %v1192 = vld [vmem:[%s1151 + $0x3c] sm:$0xf]
      %v1193 = vsel %vm1154, %v922, %v1192
      %1194 = vst [vmem:[%s1151 + $0x3c] sm:$0xf] %v1193
      %1195 = vst.msk [vmem:[%s1151 + $0x40] sm:$0xf] %vm253, %v931
      %v1196 = vld [vmem:[%s1151 + $0x44] sm:$0x1]
      %v1197 = vsel %vm1160, %v932, %v1196
      %1198 = vst [vmem:[%s1151 + $0x44] sm:$0x1] %v1197
      %v1199 = vld [vmem:[%s1151 + $0x48] sm:$0xf]
      %v1200 = vsel %vm1154, %v939, %v1199
      %1201 = vst [vmem:[%s1151 + $0x48] sm:$0xf] %v1200
      %1202 = vst.msk [vmem:[%s1151 + $0x4c] sm:$0xf] %vm253, %v948
      %v1203 = vld [vmem:[%s1151 + $0x50] sm:$0x1]
      %v1204 = vsel %vm1160, %v949, %v1203
      %1205 = vst [vmem:[%s1151 + $0x50] sm:$0x1] %v1204
      %v1206 = vld [vmem:[%s1151 + $0x54] sm:$0xf]
      %v1207 = vsel %vm1154, %v956, %v1206
      %1208 = vst [vmem:[%s1151 + $0x54] sm:$0xf] %v1207
      %1209 = vst.msk [vmem:[%s1151 + $0x58] sm:$0xf] %vm253, %v965
      %v1210 = vld [vmem:[%s1151 + $0x5c] sm:$0x1]
      %v1211 = vsel %vm1160, %v966, %v1210
      %1212 = vst [vmem:[%s1151 + $0x5c] sm:$0x1] %v1211
      %v1213 = vld [vmem:[%s1151 + $0x60] sm:$0xf]
      %v1214 = vsel %vm1154, %v973, %v1213
      %1215 = vst [vmem:[%s1151 + $0x60] sm:$0xf] %v1214
      %1216 = vst.msk [vmem:[%s1151 + $0x64] sm:$0xf] %vm253, %v982
      %v1217 = vld [vmem:[%s1151 + $0x68] sm:$0x1]
      %v1218 = vsel %vm1160, %v983, %v1217
      %1219 = vst [vmem:[%s1151 + $0x68] sm:$0x1] %v1218
      %v1220 = vld [vmem:[%s1151 + $0x6c] sm:$0xf]
      %v1221 = vsel %vm1154, %v990, %v1220
      %1222 = vst [vmem:[%s1151 + $0x6c] sm:$0xf] %v1221
      %1223 = vst.msk [vmem:[%s1151 + $0x70] sm:$0xf] %vm253, %v999
      %v1224 = vld [vmem:[%s1151 + $0x74] sm:$0x1]
      %v1225 = vsel %vm1160, %v1000, %v1224
      %1226 = vst [vmem:[%s1151 + $0x74] sm:$0x1] %v1225
      %v1227 = vld [vmem:[%s1151 + $0x78] sm:$0xf]
      %v1228 = vsel %vm1154, %v1007, %v1227
      %1229 = vst [vmem:[%s1151 + $0x78] sm:$0xf] %v1228
      %1230 = vst.msk [vmem:[%s1151 + $0x7c] sm:$0xf] %vm253, %v1016
      %v1231 = vld [vmem:[%s1151 + $0x80] sm:$0x1]
      %v1232 = vsel %vm1160, %v1017, %v1231
      %1233 = vst [vmem:[%s1151 + $0x80] sm:$0x1] %v1232
      %v1234 = vld [vmem:[%s1151 + $0x84] sm:$0xf]
      %v1235 = vsel %vm1154, %v1024, %v1234
      %1236 = vst [vmem:[%s1151 + $0x84] sm:$0xf] %v1235
      %1237 = vst.msk [vmem:[%s1151 + $0x88] sm:$0xf] %vm253, %v1033
      %v1238 = vld [vmem:[%s1151 + $0x8c] sm:$0x1]
      %v1239 = vsel %vm1160, %v1034, %v1238
      %1240 = vst [vmem:[%s1151 + $0x8c] sm:$0x1] %v1239
      %v1241 = vld [vmem:[%s1151 + $0x90] sm:$0xf]
      %v1242 = vsel %vm1154, %v1041, %v1241
      %1243 = vst [vmem:[%s1151 + $0x90] sm:$0xf] %v1242
      %1244 = vst.msk [vmem:[%s1151 + $0x94] sm:$0xf] %vm253, %v1050
      %v1245 = vld [vmem:[%s1151 + $0x98] sm:$0x1]
      %v1246 = vsel %vm1160, %v1051, %v1245
      %1247 = vst [vmem:[%s1151 + $0x98] sm:$0x1] %v1246
      %v1248 = vld [vmem:[%s1151 + $0x9c] sm:$0xf]
      %v1249 = vsel %vm1154, %v1058, %v1248
      %1250 = vst [vmem:[%s1151 + $0x9c] sm:$0xf] %v1249
      %1251 = vst.msk [vmem:[%s1151 + $0xa0] sm:$0xf] %vm253, %v1067
      %v1252 = vld [vmem:[%s1151 + $0xa4] sm:$0x1]
      %v1253 = vsel %vm1160, %v1068, %v1252
      %1254 = vst [vmem:[%s1151 + $0xa4] sm:$0x1] %v1253
      %v1255 = vld [vmem:[%s1151 + $0xa8] sm:$0xf]
      %v1256 = vsel %vm1154, %v1075, %v1255
      %1257 = vst [vmem:[%s1151 + $0xa8] sm:$0xf] %v1256
      %1258 = vst.msk [vmem:[%s1151 + $0xac] sm:$0xf] %vm253, %v1084
      %v1259 = vld [vmem:[%s1151 + $0xb0] sm:$0x1]
      %v1260 = vsel %vm1160, %v1085, %v1259
      %1261 = vst [vmem:[%s1151 + $0xb0] sm:$0x1] %v1260
      %v1262 = vld [vmem:[%s1151 + $0xb4] sm:$0xf]
      %v1263 = vsel %vm1154, %v1092, %v1262
      %1264 = vst [vmem:[%s1151 + $0xb4] sm:$0xf] %v1263
      %1265 = vst.msk [vmem:[%s1151 + $0xb8] sm:$0xf] %vm253, %v1101
      %v1266 = vld [vmem:[%s1151 + $0xbc] sm:$0x1]
      %v1267 = vsel %vm1160, %v1102, %v1266
      %1268 = vst [vmem:[%s1151 + $0xbc] sm:$0x1] %v1267
      %v1269 = vld [vmem:[#allocation2] sm:$0xf]
      %v1270 = vld [vmem:[#allocation2 + $0x4] sm:$0xf]
      %v1271 = vld [vmem:[#allocation2 + $0xc] sm:$0xf]
      %v1272 = vld [vmem:[#allocation2 + $0x10] sm:$0xf]
      %v1273 = vld [vmem:[#allocation2 + $0x18] sm:$0xf]
      %v1274 = vld [vmem:[#allocation2 + $0x1c] sm:$0xf]
      %v1275 = vld [vmem:[#allocation2 + $0x24] sm:$0xf]
      %v1276 = vld [vmem:[#allocation2 + $0x28] sm:$0xf]
      %v1277 = vld [vmem:[#allocation2 + $0x30] sm:$0xf]
      %v1278 = vld [vmem:[#allocation2 + $0x34] sm:$0xf]
      %v1279 = vld [vmem:[#allocation2 + $0x3c] sm:$0xf]
      %v1280 = vld [vmem:[#allocation2 + $0x40] sm:$0xf]
      %v1281 = vld [vmem:[#allocation2 + $0x48] sm:$0xf]
      %v1282 = vld [vmem:[#allocation2 + $0x4c] sm:$0xf]
      %v1283 = vld [vmem:[#allocation2 + $0x54] sm:$0xf]
      %v1284 = vld [vmem:[#allocation2 + $0x58] sm:$0xf]
      %v1285 = vld [vmem:[#allocation2 + $0x60] sm:$0xf]
      %v1286 = vld [vmem:[#allocation2 + $0x64] sm:$0xf]
      %v1287 = vld [vmem:[#allocation2 + $0x6c] sm:$0xf]
      %v1288 = vld [vmem:[#allocation2 + $0x70] sm:$0xf]
      %v1289 = vld [vmem:[#allocation2 + $0x78] sm:$0xf]
      %v1290 = vld [vmem:[#allocation2 + $0x7c] sm:$0xf]
      %v1291 = vld [vmem:[#allocation2 + $0x84] sm:$0xf]
      %v1292 = vld [vmem:[#allocation2 + $0x88] sm:$0xf]
      %v1293 = vld [vmem:[#allocation2 + $0x90] sm:$0xf]
      %v1294 = vld [vmem:[#allocation2 + $0x94] sm:$0xf]
      %v1295 = vld [vmem:[#allocation2 + $0x9c] sm:$0xf]
      %v1296 = vld [vmem:[#allocation2 + $0xa0] sm:$0xf]
      %v1297 = vld [vmem:[#allocation2 + $0xa8] sm:$0xf]
      %v1298 = vld [vmem:[#allocation2 + $0xac] sm:$0xf]
      %v1299 = vld [vmem:[#allocation2 + $0xb4] sm:$0xf]
      %v1300 = vld [vmem:[#allocation2 + $0xb8] sm:$0xf]
      %v1301 = vld [vmem:[%s5] sm:$0xf]
      %v1302 = vld [vmem:[%s5 + $0x4] sm:$0xf]
      %v1303 = vld [vmem:[%s5 + $0x8] sm:$0xf]
      %v1304 = vld [vmem:[%s5 + $0xc] sm:$0xf]
      %v1305 = vld [vmem:[%s5 + $0x10] sm:$0xf]
      %v1306 = vld [vmem:[%s5 + $0x14] sm:$0xf]
      %v1307 = vld [vmem:[%s5 + $0x18] sm:$0xf]
      %v1308 = vld [vmem:[%s5 + $0x1c] sm:$0xf]
      %v1309 = vld [vmem:[#allocation2 + $0x8] sm:$0x1]
      %v1310 = vld [vmem:[#allocation2 + $0x14] sm:$0x1]
      %v1311 = vld [vmem:[#allocation2 + $0x20] sm:$0x1]
      %v1312 = vld [vmem:[#allocation2 + $0x2c] sm:$0x1]
      %v1313 = vld [vmem:[#allocation2 + $0x38] sm:$0x1]
      %v1314 = vld [vmem:[#allocation2 + $0x44] sm:$0x1]
      %v1315 = vld [vmem:[#allocation2 + $0x50] sm:$0x1]
      %v1316 = vld [vmem:[#allocation2 + $0x5c] sm:$0x1]
      %v1317 = vld [vmem:[#allocation2 + $0x68] sm:$0x1]
      %v1318 = vld [vmem:[#allocation2 + $0x74] sm:$0x1]
      %v1319 = vld [vmem:[#allocation2 + $0x80] sm:$0x1]
      %v1320 = vld [vmem:[#allocation2 + $0x8c] sm:$0x1]
      %v1321 = vld [vmem:[#allocation2 + $0x98] sm:$0x1]
      %v1322 = vld [vmem:[#allocation2 + $0xa4] sm:$0x1]
      %v1323 = vld [vmem:[#allocation2 + $0xb0] sm:$0x1]
      %v1324 = vld [vmem:[#allocation2 + $0xbc] sm:$0x1]
      %vm1325 = vsmask.f32 3328
      %vm1326 = vsmask.f32 7440
      %vm1327 = vmor %vm1325, %vm1326
      %v1329 = vshrl.u32 %v1269, 16
      %v1331 = vrot.slane %v1329, 4
      %v1332 = vshll.u32 %v1269, 16
      %v1334 = vrot.slane %v1332, 5
      %v1335 = vor.u32 %v1331, %v1334
      %v1336 = vrot.slane %v1335, 4
      %v1338 = vshll.u32 %v1270, 16
      %v1340 = vrot.slane %v1338, 5
      %v1341 = vsel %vm1327, %v1336, %v1340
      %v1342 = vshrl.u32 %v1270, 16
      %v1344 = vrot.slane %v1342, 4
      %v1345 = vor.u32 %v1344, %v1340
      %v1346 = vrot.slane %v1345, 4
      %v1348 = vshll.u32 %v1309, 16
      %v1350 = vrot.slane %v1348, 5
      %v1351 = vsel %vm1327, %v1346, %v1350
      %v1353 = vshrl.u32 %v1271, 16
      %v1355 = vrot.slane %v1353, 4
      %v1356 = vshll.u32 %v1271, 16
      %v1358 = vrot.slane %v1356, 5
      %v1359 = vor.u32 %v1355, %v1358
      %v1360 = vrot.slane %v1359, 4
      %v1362 = vshll.u32 %v1272, 16
      %v1364 = vrot.slane %v1362, 5
      %v1365 = vsel %vm1327, %v1360, %v1364
      %v1366 = vshrl.u32 %v1272, 16
      %v1368 = vrot.slane %v1366, 4
      %v1369 = vor.u32 %v1368, %v1364
      %v1370 = vrot.slane %v1369, 4
      %v1372 = vshll.u32 %v1310, 16
      %v1374 = vrot.slane %v1372, 5
      %v1375 = vsel %vm1327, %v1370, %v1374
      %v1377 = vshrl.u32 %v1273, 16
      %v1379 = vrot.slane %v1377, 4
      %v1380 = vshll.u32 %v1273, 16
      %v1382 = vrot.slane %v1380, 5
      %v1383 = vor.u32 %v1379, %v1382
      %v1384 = vrot.slane %v1383, 4
      %v1386 = vshll.u32 %v1274, 16
      %v1388 = vrot.slane %v1386, 5
      %v1389 = vsel %vm1327, %v1384, %v1388
      %v1390 = vshrl.u32 %v1274, 16
      %v1392 = vrot.slane %v1390, 4
      %v1393 = vor.u32 %v1392, %v1388
      %v1394 = vrot.slane %v1393, 4
      %v1396 = vshll.u32 %v1311, 16
      %v1398 = vrot.slane %v1396, 5
      %v1399 = vsel %vm1327, %v1394, %v1398
      %v1401 = vshrl.u32 %v1275, 16
      %v1403 = vrot.slane %v1401, 4
      %v1404 = vshll.u32 %v1275, 16
      %v1406 = vrot.slane %v1404, 5
      %v1407 = vor.u32 %v1403, %v1406
      %v1408 = vrot.slane %v1407, 4
      %v1410 = vshll.u32 %v1276, 16
      %v1412 = vrot.slane %v1410, 5
      %v1413 = vsel %vm1327, %v1408, %v1412
      %v1414 = vshrl.u32 %v1276, 16
      %v1416 = vrot.slane %v1414, 4
      %v1417 = vor.u32 %v1416, %v1412
      %v1418 = vrot.slane %v1417, 4
      %v1420 = vshll.u32 %v1312, 16
      %v1422 = vrot.slane %v1420, 5
      %v1423 = vsel %vm1327, %v1418, %v1422
      %v1425 = vshrl.u32 %v1277, 16
      %v1427 = vrot.slane %v1425, 4
      %v1428 = vshll.u32 %v1277, 16
      %v1430 = vrot.slane %v1428, 5
      %v1431 = vor.u32 %v1427, %v1430
      %v1432 = vrot.slane %v1431, 4
      %v1434 = vshll.u32 %v1278, 16
      %v1436 = vrot.slane %v1434, 5
      %v1437 = vsel %vm1327, %v1432, %v1436
      %v1438 = vshrl.u32 %v1278, 16
      %v1440 = vrot.slane %v1438, 4
      %v1441 = vor.u32 %v1440, %v1436
      %v1442 = vrot.slane %v1441, 4
      %v1444 = vshll.u32 %v1313, 16
      %v1446 = vrot.slane %v1444, 5
      %v1447 = vsel %vm1327, %v1442, %v1446
      %v1449 = vshrl.u32 %v1279, 16
      %v1451 = vrot.slane %v1449, 4
      %v1452 = vshll.u32 %v1279, 16
      %v1454 = vrot.slane %v1452, 5
      %v1455 = vor.u32 %v1451, %v1454
      %v1456 = vrot.slane %v1455, 4
      %v1458 = vshll.u32 %v1280, 16
      %v1460 = vrot.slane %v1458, 5
      %v1461 = vsel %vm1327, %v1456, %v1460
      %v1462 = vshrl.u32 %v1280, 16
      %v1464 = vrot.slane %v1462, 4
      %v1465 = vor.u32 %v1464, %v1460
      %v1466 = vrot.slane %v1465, 4
      %v1468 = vshll.u32 %v1314, 16
      %v1470 = vrot.slane %v1468, 5
      %v1471 = vsel %vm1327, %v1466, %v1470
      %v1473 = vshrl.u32 %v1281, 16
      %v1475 = vrot.slane %v1473, 4
      %v1476 = vshll.u32 %v1281, 16
      %v1478 = vrot.slane %v1476, 5
      %v1479 = vor.u32 %v1475, %v1478
      %v1480 = vrot.slane %v1479, 4
      %v1482 = vshll.u32 %v1282, 16
      %v1484 = vrot.slane %v1482, 5
      %v1485 = vsel %vm1327, %v1480, %v1484
      %v1486 = vshrl.u32 %v1282, 16
      %v1488 = vrot.slane %v1486, 4
      %v1489 = vor.u32 %v1488, %v1484
      %v1490 = vrot.slane %v1489, 4
      %v1492 = vshll.u32 %v1315, 16
      %v1494 = vrot.slane %v1492, 5
      %v1495 = vsel %vm1327, %v1490, %v1494
      %v1497 = vshrl.u32 %v1283, 16
      %v1499 = vrot.slane %v1497, 4
      %v1500 = vshll.u32 %v1283, 16
      %v1502 = vrot.slane %v1500, 5
      %v1503 = vor.u32 %v1499, %v1502
      %v1504 = vrot.slane %v1503, 4
      %v1506 = vshll.u32 %v1284, 16
      %v1508 = vrot.slane %v1506, 5
      %v1509 = vsel %vm1327, %v1504, %v1508
      %v1510 = vshrl.u32 %v1284, 16
      %v1512 = vrot.slane %v1510, 4
      %v1513 = vor.u32 %v1512, %v1508
      %v1514 = vrot.slane %v1513, 4
      %v1516 = vshll.u32 %v1316, 16
      %v1518 = vrot.slane %v1516, 5
      %v1519 = vsel %vm1327, %v1514, %v1518
      %v1521 = vshrl.u32 %v1285, 16
      %v1523 = vrot.slane %v1521, 4
      %v1524 = vshll.u32 %v1285, 16
      %v1526 = vrot.slane %v1524, 5
      %v1527 = vor.u32 %v1523, %v1526
      %v1528 = vrot.slane %v1527, 4
      %v1530 = vshll.u32 %v1286, 16
      %v1532 = vrot.slane %v1530, 5
      %v1533 = vsel %vm1327, %v1528, %v1532
      %v1534 = vshrl.u32 %v1286, 16
      %v1536 = vrot.slane %v1534, 4
      %v1537 = vor.u32 %v1536, %v1532
      %v1538 = vrot.slane %v1537, 4
      %v1540 = vshll.u32 %v1317, 16
      %v1542 = vrot.slane %v1540, 5
      %v1543 = vsel %vm1327, %v1538, %v1542
      %v1545 = vshrl.u32 %v1287, 16
      %v1547 = vrot.slane %v1545, 4
      %v1548 = vshll.u32 %v1287, 16
      %v1550 = vrot.slane %v1548, 5
      %v1551 = vor.u32 %v1547, %v1550
      %v1552 = vrot.slane %v1551, 4
      %v1554 = vshll.u32 %v1288, 16
      %v1556 = vrot.slane %v1554, 5
      %v1557 = vsel %vm1327, %v1552, %v1556
      %v1558 = vshrl.u32 %v1288, 16
      %v1560 = vrot.slane %v1558, 4
      %v1561 = vor.u32 %v1560, %v1556
      %v1562 = vrot.slane %v1561, 4
      %v1564 = vshll.u32 %v1318, 16
      %v1566 = vrot.slane %v1564, 5
      %v1567 = vsel %vm1327, %v1562, %v1566
      %v1569 = vshrl.u32 %v1289, 16
      %v1571 = vrot.slane %v1569, 4
      %v1572 = vshll.u32 %v1289, 16
      %v1574 = vrot.slane %v1572, 5
      %v1575 = vor.u32 %v1571, %v1574
      %v1576 = vrot.slane %v1575, 4
      %v1578 = vshll.u32 %v1290, 16
      %v1580 = vrot.slane %v1578, 5
      %v1581 = vsel %vm1327, %v1576, %v1580
      %v1582 = vshrl.u32 %v1290, 16
      %v1584 = vrot.slane %v1582, 4
      %v1585 = vor.u32 %v1584, %v1580
      %v1586 = vrot.slane %v1585, 4
      %v1588 = vshll.u32 %v1319, 16
      %v1590 = vrot.slane %v1588, 5
      %v1591 = vsel %vm1327, %v1586, %v1590
      %v1593 = vshrl.u32 %v1291, 16
      %v1595 = vrot.slane %v1593, 4
      %v1596 = vshll.u32 %v1291, 16
      %v1598 = vrot.slane %v1596, 5
      %v1599 = vor.u32 %v1595, %v1598
      %v1600 = vrot.slane %v1599, 4
      %v1602 = vshll.u32 %v1292, 16
      %v1604 = vrot.slane %v1602, 5
      %v1605 = vsel %vm1327, %v1600, %v1604
      %v1606 = vshrl.u32 %v1292, 16
      %v1608 = vrot.slane %v1606, 4
      %v1609 = vor.u32 %v1608, %v1604
      %v1610 = vrot.slane %v1609, 4
      %v1612 = vshll.u32 %v1320, 16
      %v1614 = vrot.slane %v1612, 5
      %v1615 = vsel %vm1327, %v1610, %v1614
      %v1617 = vshrl.u32 %v1293, 16
      %v1619 = vrot.slane %v1617, 4
      %v1620 = vshll.u32 %v1293, 16
      %v1622 = vrot.slane %v1620, 5
      %v1623 = vor.u32 %v1619, %v1622
      %v1624 = vrot.slane %v1623, 4
      %v1626 = vshll.u32 %v1294, 16
      %v1628 = vrot.slane %v1626, 5
      %v1629 = vsel %vm1327, %v1624, %v1628
      %v1630 = vshrl.u32 %v1294, 16
      %v1632 = vrot.slane %v1630, 4
      %v1633 = vor.u32 %v1632, %v1628
      %v1634 = vrot.slane %v1633, 4
      %v1636 = vshll.u32 %v1321, 16
      %v1638 = vrot.slane %v1636, 5
      %v1639 = vsel %vm1327, %v1634, %v1638
      %v1641 = vshrl.u32 %v1295, 16
      %v1643 = vrot.slane %v1641, 4
      %v1644 = vshll.u32 %v1295, 16
      %v1646 = vrot.slane %v1644, 5
      %v1647 = vor.u32 %v1643, %v1646
      %v1648 = vrot.slane %v1647, 4
      %v1650 = vshll.u32 %v1296, 16
      %v1652 = vrot.slane %v1650, 5
      %v1653 = vsel %vm1327, %v1648, %v1652
      %v1654 = vshrl.u32 %v1296, 16
      %v1656 = vrot.slane %v1654, 4
      %v1657 = vor.u32 %v1656, %v1652
      %v1658 = vrot.slane %v1657, 4
      %v1660 = vshll.u32 %v1322, 16
      %v1662 = vrot.slane %v1660, 5
      %v1663 = vsel %vm1327, %v1658, %v1662
      %v1665 = vshrl.u32 %v1297, 16
      %v1667 = vrot.slane %v1665, 4
      %v1668 = vshll.u32 %v1297, 16
      %v1670 = vrot.slane %v1668, 5
      %v1671 = vor.u32 %v1667, %v1670
      %v1672 = vrot.slane %v1671, 4
      %v1674 = vshll.u32 %v1298, 16
      %v1676 = vrot.slane %v1674, 5
      %v1677 = vsel %vm1327, %v1672, %v1676
      %v1678 = vshrl.u32 %v1298, 16
      %v1680 = vrot.slane %v1678, 4
      %v1681 = vor.u32 %v1680, %v1676
      %v1682 = vrot.slane %v1681, 4
      %v1684 = vshll.u32 %v1323, 16
      %v1686 = vrot.slane %v1684, 5
      %v1687 = vsel %vm1327, %v1682, %v1686
      %v1689 = vshrl.u32 %v1299, 16
      %v1691 = vrot.slane %v1689, 4
      %v1692 = vshll.u32 %v1299, 16
      %v1694 = vrot.slane %v1692, 5
      %v1695 = vor.u32 %v1691, %v1694
      %v1696 = vrot.slane %v1695, 4
      %v1698 = vshll.u32 %v1300, 16
      %v1700 = vrot.slane %v1698, 5
      %v1701 = vsel %vm1327, %v1696, %v1700
      %v1702 = vshrl.u32 %v1300, 16
      %v1704 = vrot.slane %v1702, 4
      %v1705 = vor.u32 %v1704, %v1700
      %v1706 = vrot.slane %v1705, 4
      %v1708 = vshll.u32 %v1324, 16
      %v1710 = vrot.slane %v1708, 5
      %v1711 = vsel %vm1327, %v1706, %v1710
      %v1712 = vld [vmem:[%s5 + $0x20] sm:$0xf]
      %v1713 = vld [vmem:[%s5 + $0x24] sm:$0xf]
      %v1714 = vld [vmem:[%s5 + $0x28] sm:$0xf]
      %v1715 = vld [vmem:[%s5 + $0x2c] sm:$0xf]
      %v1716 = vld [vmem:[%s5 + $0x30] sm:$0xf]
      %v1717 = vld [vmem:[%s5 + $0x34] sm:$0xf]
      %v1718 = vld [vmem:[%s5 + $0x38] sm:$0xf]
      %v1719 = vld [vmem:[%s5 + $0x3c] sm:$0xf]
      %v1720 = vunpack.c.l.b16 %v1341
      %v1721 = vunpack.c.l.b16 %v1351
      %v1722 = vunpack.c.l.b16 %v1365
      %v1723 = vunpack.c.l.b16 %v1375
      %v1724 = vunpack.c.l.b16 %v1389
      %v1725 = vunpack.c.l.b16 %v1399
      %v1726 = vunpack.c.l.b16 %v1413
      %v1727 = vunpack.c.l.b16 %v1423
      %v1728 = vunpack.c.l.b16 %v1437
      %v1729 = vunpack.c.l.b16 %v1447
      %v1730 = vunpack.c.l.b16 %v1461
      %v1731 = vunpack.c.l.b16 %v1471
      %v1732 = vunpack.c.l.b16 %v1485
      %v1733 = vunpack.c.l.b16 %v1495
      %v1734 = vunpack.c.l.b16 %v1509
      %v1735 = vunpack.c.l.b16 %v1519
      %v1736 = vunpack.c.l.b16 %v1533
      %v1737 = vunpack.c.l.b16 %v1543
      %v1738 = vunpack.c.l.b16 %v1557
      %v1739 = vunpack.c.l.b16 %v1567
      %v1740 = vunpack.c.l.b16 %v1581
      %v1741 = vunpack.c.l.b16 %v1591
      %v1742 = vunpack.c.l.b16 %v1605
      %v1743 = vunpack.c.l.b16 %v1615
      %v1744 = vunpack.c.l.b16 %v1629
      %v1745 = vunpack.c.l.b16 %v1639
      %v1746 = vunpack.c.l.b16 %v1653
      %v1747 = vunpack.c.l.b16 %v1663
      %v1748 = vunpack.c.l.b16 %v1677
      %v1749 = vunpack.c.l.b16 %v1687
      %v1750 = vunpack.c.l.b16 %v1701
      %v1751 = vunpack.c.l.b16 %v1711
      %v1752 = vpack.c.b16 %v1721, %v1720
      %v1753 = vpack.c.b16 %v1723, %v1722
      %v1754 = vpack.c.b16 %v1725, %v1724
      %v1755 = vpack.c.b16 %v1727, %v1726
      %v1756 = vpack.c.b16 %v1729, %v1728
      %v1757 = vpack.c.b16 %v1731, %v1730
      %v1758 = vpack.c.b16 %v1733, %v1732
      %v1759 = vpack.c.b16 %v1735, %v1734
      %v1760 = vpack.c.b16 %v1737, %v1736
      %v1761 = vpack.c.b16 %v1739, %v1738
      %v1762 = vpack.c.b16 %v1741, %v1740
      %v1763 = vpack.c.b16 %v1743, %v1742
      %v1764 = vpack.c.b16 %v1745, %v1744
      %v1765 = vpack.c.b16 %v1747, %v1746
      %v1766 = vpack.c.b16 %v1749, %v1748
      %v1767 = vpack.c.b16 %v1751, %v1750
      %v1776 = vunpack.c.l.b16 %v1712
      %v1777 = vunpack.c.l.b16 %v1713
      %v1778 = vunpack.c.l.b16 %v1714
      %v1779 = vunpack.c.l.b16 %v1715
      %v1780 = vunpack.c.l.b16 %v1716
      %v1781 = vunpack.c.l.b16 %v1717
      %v1782 = vunpack.c.l.b16 %v1718
      %v1783 = vunpack.c.l.b16 %v1719
      %v1784 = vpack.c.b16 %v1777, %v1776
      %v1785 = vpack.c.b16 %v1779, %v1778
      %v1786 = vpack.c.b16 %v1781, %v1780
      %v1787 = vpack.c.b16 %v1783, %v1782
      %vm1792 = vcmask 523264
      %v1794 = vsel %vm1792, %v1752, 0
      %v1797 = vsel %vm1792, %v1753, 0
      %v1800 = vsel %vm1792, %v1754, 0
      %v1803 = vsel %vm1792, %v1755, 0
      %v1806 = vsel %vm1792, %v1756, 0
      %v1809 = vsel %vm1792, %v1757, 0
      %v1812 = vsel %vm1792, %v1758, 0
      %v1815 = vsel %vm1792, %v1759, 0
      %v1818 = vsel %vm1792, %v1760, 0
      %v1821 = vsel %vm1792, %v1761, 0
      %v1824 = vsel %vm1792, %v1762, 0
      %v1827 = vsel %vm1792, %v1763, 0
      %v1830 = vsel %vm1792, %v1764, 0
      %v1833 = vsel %vm1792, %v1765, 0
      %v1836 = vsel %vm1792, %v1766, 0
      %v1839 = vsel %vm1792, %v1767, 0
      %1841 = vmatprep.subr.bf16.mxu0 0
      %1842 = vmatpush1.bf16.msra.mxu0 %v1784
      %1843 = vmatprep.subr.bf16.mxu0 0
      %1844 = vmatpush1.bf16.msra.mxu0 %v1785
      %1845 = vmatprep.subr.bf16.mxu0 0
      %1846 = vmatpush1.bf16.msra.mxu0 %v1786
      %1847 = vmatprep.subr.bf16.mxu0 0
      %1848 = vmatpush1.bf16.msra.mxu0 %v1787
      %1849 = vmatprep.subr.bf16.mxu0 0
      %1850 = vmatpush1.bf16.msra.mxu0 0
      %1851 = vmatprep.subr.bf16.mxu0 0
      %1852 = vmatpush1.bf16.msra.mxu0 0
      %1853 = vmatprep.subr.bf16.mxu0 0
      %1854 = vmatpush1.bf16.msra.mxu0 0
      %1855 = vmatprep.subr.bf16.mxu0 0
      %1856 = vmatpush1.bf16.msra.mxu0 0
      %1857 = vmatprep.subr.bf16.mxu0 0
      %1858 = vmatpush1.bf16.msra.mxu0 0
      %1859 = vmatprep.subr.bf16.mxu0 0
      %1860 = vmatpush1.bf16.msra.mxu0 0
      %1861 = vmatprep.subr.bf16.mxu0 0
      %1862 = vmatpush1.bf16.msra.mxu0 0
      %1863 = vmatprep.subr.bf16.mxu0 0
      %1864 = vmatpush1.bf16.msra.mxu0 0
      %1865 = vmatprep.subr.bf16.mxu0 0
      %1866 = vmatpush1.bf16.msra.mxu0 0
      %1867 = vmatprep.subr.bf16.mxu0 0
      %1868 = vmatpush1.bf16.msra.mxu0 0
      %1869 = vmatprep.subr.bf16.mxu0 0
      %1870 = vmatpush1.bf16.msra.mxu0 0
      %1871 = vmatprep.subr.bf16.mxu0 0
      %1872 = vmatpush1.bf16.msra.mxu0 0
      %1873 = vmatprep.mubr.bf16.mxu0 0
      %1874 = vmatmul.mubr.bf16.gmra.mrb[0].mxu0 %v1794
      %v1875 = vpop.f32.mrb[0].mxu0
      %v1876 = vadd.f32 0.0, %v1875
      %v1877 = vpop.f32.mrb[0].mxu0
      %v1878 = vpop.f32.mrb[0].mxu0
      %v1879 = vadd.f32 0.0, %v1878
      %v1880 = vpop.f32.mrb[0].mxu0
      %1881 = vmatprep.mubr.bf16.mxu0 0
      %1882 = vmatmul.mubr.bf16.gmra.mrb[0].mxu0 %v1797
      %v1883 = vpop.f32.mrb[0].mxu0
      %v1884 = vadd.f32 0.0, %v1883
      %v1885 = vpop.f32.mrb[0].mxu0
      %v1886 = vpop.f32.mrb[0].mxu0
      %v1887 = vadd.f32 0.0, %v1886
      %v1888 = vpop.f32.mrb[0].mxu0
      %1889 = vmatprep.mubr.bf16.mxu0 0
      %1890 = vmatmul.mubr.bf16.gmra.mrb[0].mxu0 %v1800
      %v1891 = vpop.f32.mrb[0].mxu0
      %v1892 = vadd.f32 0.0, %v1891
      %v1893 = vpop.f32.mrb[0].mxu0
      %v1894 = vpop.f32.mrb[0].mxu0
      %v1895 = vadd.f32 0.0, %v1894
      %v1896 = vpop.f32.mrb[0].mxu0
      %1897 = vmatprep.mubr.bf16.mxu0 0
      %1898 = vmatmul.mubr.bf16.gmra.mrb[0].mxu0 %v1803
      %v1899 = vpop.f32.mrb[0].mxu0
      %v1900 = vadd.f32 0.0, %v1899
      %v1901 = vpop.f32.mrb[0].mxu0
      %v1902 = vpop.f32.mrb[0].mxu0
      %v1903 = vadd.f32 0.0, %v1902
      %v1904 = vpop.f32.mrb[0].mxu0
      %1905 = vmatprep.mubr.bf16.mxu0 0
      %1906 = vmatmul.mubr.bf16.gmra.mrb[0].mxu0 %v1806
      %v1907 = vpop.f32.mrb[0].mxu0
      %v1908 = vadd.f32 0.0, %v1907
      %v1909 = vpop.f32.mrb[0].mxu0
      %v1910 = vpop.f32.mrb[0].mxu0
      %v1911 = vadd.f32 0.0, %v1910
      %v1912 = vpop.f32.mrb[0].mxu0
      %1913 = vmatprep.mubr.bf16.mxu0 0
      %1914 = vmatmul.mubr.bf16.gmra.mrb[0].mxu0 %v1809
      %v1915 = vpop.f32.mrb[0].mxu0
      %v1916 = vadd.f32 0.0, %v1915
      %v1917 = vpop.f32.mrb[0].mxu0
      %v1918 = vpop.f32.mrb[0].mxu0
      %v1919 = vadd.f32 0.0, %v1918
      %v1920 = vpop.f32.mrb[0].mxu0
      %1921 = vmatprep.mubr.bf16.mxu0 0
      %1922 = vmatmul.mubr.bf16.gmra.mrb[0].mxu0 %v1812
      %v1923 = vpop.f32.mrb[0].mxu0
      %v1924 = vadd.f32 0.0, %v1923
      %v1925 = vpop.f32.mrb[0].mxu0
      %v1926 = vpop.f32.mrb[0].mxu0
      %v1927 = vadd.f32 0.0, %v1926
      %v1928 = vpop.f32.mrb[0].mxu0
      %1929 = vmatprep.mubr.bf16.mxu0 0
      %1930 = vmatmul.mubr.bf16.gmra.mrb[0].mxu0 %v1815
      %v1931 = vpop.f32.mrb[0].mxu0
      %v1932 = vadd.f32 0.0, %v1931
      %v1933 = vpop.f32.mrb[0].mxu0
      %v1934 = vpop.f32.mrb[0].mxu0
      %v1935 = vadd.f32 0.0, %v1934
      %v1936 = vpop.f32.mrb[0].mxu0
      %1937 = vmatprep.mubr.bf16.mxu0 0
      %1938 = vmatmul.mubr.bf16.gmra.mrb[0].mxu0 %v1818
      %v1939 = vpop.f32.mrb[0].mxu0
      %v1940 = vadd.f32 0.0, %v1939
      %v1941 = vpop.f32.mrb[0].mxu0
      %v1942 = vpop.f32.mrb[0].mxu0
      %v1943 = vadd.f32 0.0, %v1942
      %v1944 = vpop.f32.mrb[0].mxu0
      %1945 = vmatprep.mubr.bf16.mxu0 0
      %1946 = vmatmul.mubr.bf16.gmra.mrb[0].mxu0 %v1821
      %v1947 = vpop.f32.mrb[0].mxu0
      %v1948 = vadd.f32 0.0, %v1947
      %v1949 = vpop.f32.mrb[0].mxu0
      %v1950 = vpop.f32.mrb[0].mxu0
      %v1951 = vadd.f32 0.0, %v1950
      %v1952 = vpop.f32.mrb[0].mxu0
      %1953 = vmatprep.mubr.bf16.mxu0 0
      %1954 = vmatmul.mubr.bf16.gmra.mrb[0].mxu0 %v1824
      %v1955 = vpop.f32.mrb[0].mxu0
      %v1956 = vadd.f32 0.0, %v1955
      %v1957 = vpop.f32.mrb[0].mxu0
      %v1958 = vpop.f32.mrb[0].mxu0
      %v1959 = vadd.f32 0.0, %v1958
      %v1960 = vpop.f32.mrb[0].mxu0
      %1961 = vmatprep.mubr.bf16.mxu0 0
      %1962 = vmatmul.mubr.bf16.gmra.mrb[0].mxu0 %v1827
      %v1963 = vpop.f32.mrb[0].mxu0
      %v1964 = vadd.f32 0.0, %v1963
      %v1965 = vpop.f32.mrb[0].mxu0
      %v1966 = vpop.f32.mrb[0].mxu0
      %v1967 = vadd.f32 0.0, %v1966
      %v1968 = vpop.f32.mrb[0].mxu0
      %1969 = vmatprep.mubr.bf16.mxu0 0
      %1970 = vmatmul.mubr.bf16.gmra.mrb[0].mxu0 %v1830
      %v1971 = vpop.f32.mrb[0].mxu0
      %v1972 = vadd.f32 0.0, %v1971
      %v1973 = vpop.f32.mrb[0].mxu0
      %v1974 = vpop.f32.mrb[0].mxu0
      %v1975 = vadd.f32 0.0, %v1974
      %v1976 = vpop.f32.mrb[0].mxu0
      %1977 = vmatprep.mubr.bf16.mxu0 0
      %1978 = vmatmul.mubr.bf16.gmra.mrb[0].mxu0 %v1833
      %v1979 = vpop.f32.mrb[0].mxu0
      %v1980 = vadd.f32 0.0, %v1979
      %v1981 = vpop.f32.mrb[0].mxu0
      %v1982 = vpop.f32.mrb[0].mxu0
      %v1983 = vadd.f32 0.0, %v1982
      %v1984 = vpop.f32.mrb[0].mxu0
      %1985 = vmatprep.mubr.bf16.mxu0 0
      %1986 = vmatmul.mubr.bf16.gmra.mrb[0].mxu0 %v1836
      %v1987 = vpop.f32.mrb[0].mxu0
      %v1988 = vadd.f32 0.0, %v1987
      %v1989 = vpop.f32.mrb[0].mxu0
      %v1990 = vpop.f32.mrb[0].mxu0
      %v1991 = vadd.f32 0.0, %v1990
      %v1992 = vpop.f32.mrb[0].mxu0
      %1993 = vmatprep.mubr.bf16.mxu0 0
      %1994 = vmatmul.mubr.bf16.gmra.mrb[0].mxu0 %v1839
      %v1995 = vpop.f32.mrb[0].mxu0
      %v1996 = vadd.f32 0.0, %v1995
      %v1997 = vpop.f32.mrb[0].mxu0
      %v1998 = vpop.f32.mrb[0].mxu0
      %v1999 = vadd.f32 0.0, %v1998
      %v2000 = vpop.f32.mrb[0].mxu0
      %2001 = vdwg.mxu0
      %v2034 = vunpack.c.l.b16 %v1269
      %v2035 = vunpack.c.l.b16 %v1270
      %v2036 = vunpack.c.l.b16 %v1271
      %v2037 = vunpack.c.l.b16 %v1272
      %v2038 = vunpack.c.l.b16 %v1273
      %v2039 = vunpack.c.l.b16 %v1274
      %v2040 = vunpack.c.l.b16 %v1275
      %v2041 = vunpack.c.l.b16 %v1276
      %v2042 = vunpack.c.l.b16 %v1277
      %v2043 = vunpack.c.l.b16 %v1278
      %v2044 = vunpack.c.l.b16 %v1279
      %v2045 = vunpack.c.l.b16 %v1280
      %v2046 = vunpack.c.l.b16 %v1281
      %v2047 = vunpack.c.l.b16 %v1282
      %v2048 = vunpack.c.l.b16 %v1283
      %v2049 = vunpack.c.l.b16 %v1284
      %v2050 = vunpack.c.l.b16 %v1285
      %v2051 = vunpack.c.l.b16 %v1286
      %v2052 = vunpack.c.l.b16 %v1287
      %v2053 = vunpack.c.l.b16 %v1288
      %v2054 = vunpack.c.l.b16 %v1289
      %v2055 = vunpack.c.l.b16 %v1290
      %v2056 = vunpack.c.l.b16 %v1291
      %v2057 = vunpack.c.l.b16 %v1292
      %v2058 = vunpack.c.l.b16 %v1293
      %v2059 = vunpack.c.l.b16 %v1294
      %v2060 = vunpack.c.l.b16 %v1295
      %v2061 = vunpack.c.l.b16 %v1296
      %v2062 = vunpack.c.l.b16 %v1297
      %v2063 = vunpack.c.l.b16 %v1298
      %v2064 = vunpack.c.l.b16 %v1299
      %v2065 = vunpack.c.l.b16 %v1300
      %v2066 = vpack.c.b16 %v2035, %v2034
      %v2067 = vpack.c.b16 %v2037, %v2036
      %v2068 = vpack.c.b16 %v2039, %v2038
      %v2069 = vpack.c.b16 %v2041, %v2040
      %v2070 = vpack.c.b16 %v2043, %v2042
      %v2071 = vpack.c.b16 %v2045, %v2044
      %v2072 = vpack.c.b16 %v2047, %v2046
      %v2073 = vpack.c.b16 %v2049, %v2048
      %v2074 = vpack.c.b16 %v2051, %v2050
      %v2075 = vpack.c.b16 %v2053, %v2052
      %v2076 = vpack.c.b16 %v2055, %v2054
      %v2077 = vpack.c.b16 %v2057, %v2056
      %v2078 = vpack.c.b16 %v2059, %v2058
      %v2079 = vpack.c.b16 %v2061, %v2060
      %v2080 = vpack.c.b16 %v2063, %v2062
      %v2081 = vpack.c.b16 %v2065, %v2064
      %v2090 = vunpack.c.l.b16 %v1301
      %v2091 = vunpack.c.l.b16 %v1302
      %v2092 = vunpack.c.l.b16 %v1303
      %v2093 = vunpack.c.l.b16 %v1304
      %v2094 = vunpack.c.l.b16 %v1305
      %v2095 = vunpack.c.l.b16 %v1306
      %v2096 = vunpack.c.l.b16 %v1307
      %v2097 = vunpack.c.l.b16 %v1308
      %v2098 = vpack.c.b16 %v2091, %v2090
      %v2099 = vpack.c.b16 %v2093, %v2092
      %v2100 = vpack.c.b16 %v2095, %v2094
      %v2101 = vpack.c.b16 %v2097, %v2096
      %v2107 = vsel %vm1792, %v2066, 0
      %v2110 = vsel %vm1792, %v2067, 0
      %v2113 = vsel %vm1792, %v2068, 0
      %v2116 = vsel %vm1792, %v2069, 0
      %v2119 = vsel %vm1792, %v2070, 0
      %v2122 = vsel %vm1792, %v2071, 0
      %v2125 = vsel %vm1792, %v2072, 0
      %v2128 = vsel %vm1792, %v2073, 0
      %v2131 = vsel %vm1792, %v2074, 0
      %v2134 = vsel %vm1792, %v2075, 0
      %v2137 = vsel %vm1792, %v2076, 0
      %v2140 = vsel %vm1792, %v2077, 0
      %v2143 = vsel %vm1792, %v2078, 0
      %v2146 = vsel %vm1792, %v2079, 0
      %v2149 = vsel %vm1792, %v2080, 0
      %v2152 = vsel %vm1792, %v2081, 0
      %2154 = vmatprep.subr.bf16.mxu0 0
      %2155 = vmatpush1.bf16.msra.mxu0 %v2098
      %2156 = vmatprep.subr.bf16.mxu0 0
      %2157 = vmatpush1.bf16.msra.mxu0 %v2099
      %2158 = vmatprep.subr.bf16.mxu0 0
      %2159 = vmatpush1.bf16.msra.mxu0 %v2100
      %2160 = vmatprep.subr.bf16.mxu0 0
      %2161 = vmatpush1.bf16.msra.mxu0 %v2101
      %2162 = vmatprep.subr.bf16.mxu0 0
      %2163 = vmatpush1.bf16.msra.mxu0 0
      %2164 = vmatprep.subr.bf16.mxu0 0
      %2165 = vmatpush1.bf16.msra.mxu0 0
      %2166 = vmatprep.subr.bf16.mxu0 0
      %2167 = vmatpush1.bf16.msra.mxu0 0
      %2168 = vmatprep.subr.bf16.mxu0 0
      %2169 = vmatpush1.bf16.msra.mxu0 0
      %2170 = vmatprep.subr.bf16.mxu0 0
      %2171 = vmatpush1.bf16.msra.mxu0 0
      %2172 = vmatprep.subr.bf16.mxu0 0
      %2173 = vmatpush1.bf16.msra.mxu0 0
      %2174 = vmatprep.subr.bf16.mxu0 0
      %2175 = vmatpush1.bf16.msra.mxu0 0
      %2176 = vmatprep.subr.bf16.mxu0 0
      %2177 = vmatpush1.bf16.msra.mxu0 0
      %2178 = vmatprep.subr.bf16.mxu0 0
      %2179 = vmatpush1.bf16.msra.mxu0 0
      %2180 = vmatprep.subr.bf16.mxu0 0
      %2181 = vmatpush1.bf16.msra.mxu0 0
      %2182 = vmatprep.subr.bf16.mxu0 0
      %2183 = vmatpush1.bf16.msra.mxu0 0
      %2184 = vmatprep.subr.bf16.mxu0 0
      %2185 = vmatpush1.bf16.msra.mxu0 0
      %2186 = vmatprep.mubr.bf16.mxu0 0
      %2187 = vmatmul.mubr.bf16.gmra.mrb[0].mxu0 %v2107
      %v2188 = vpop.f32.mrb[0].mxu0
      %v2189 = vadd.f32 %v1876, %v2188
      %v2190 = vpop.f32.mrb[0].mxu0
      %v2191 = vpop.f32.mrb[0].mxu0
      %v2192 = vadd.f32 %v1879, %v2191
      %v2193 = vpop.f32.mrb[0].mxu0
      %2194 = vmatprep.mubr.bf16.mxu0 0
      %2195 = vmatmul.mubr.bf16.gmra.mrb[0].mxu0 %v2110
      %v2196 = vpop.f32.mrb[0].mxu0
      %v2197 = vadd.f32 %v1884, %v2196
      %v2198 = vpop.f32.mrb[0].mxu0
      %v2199 = vpop.f32.mrb[0].mxu0
      %v2200 = vadd.f32 %v1887, %v2199
      %v2201 = vpop.f32.mrb[0].mxu0
      %2202 = vmatprep.mubr.bf16.mxu0 0
      %2203 = vmatmul.mubr.bf16.gmra.mrb[0].mxu0 %v2113
      %v2204 = vpop.f32.mrb[0].mxu0
      %v2205 = vadd.f32 %v1892, %v2204
      %v2206 = vpop.f32.mrb[0].mxu0
      %v2207 = vpop.f32.mrb[0].mxu0
      %v2208 = vadd.f32 %v1895, %v2207
      %v2209 = vpop.f32.mrb[0].mxu0
      %2210 = vmatprep.mubr.bf16.mxu0 0
      %2211 = vmatmul.mubr.bf16.gmra.mrb[0].mxu0 %v2116
      %v2212 = vpop.f32.mrb[0].mxu0
      %v2213 = vadd.f32 %v1900, %v2212
      %v2214 = vpop.f32.mrb[0].mxu0
      %v2215 = vpop.f32.mrb[0].mxu0
      %v2216 = vadd.f32 %v1903, %v2215
      %v2217 = vpop.f32.mrb[0].mxu0
      %2218 = vmatprep.mubr.bf16.mxu0 0
      %2219 = vmatmul.mubr.bf16.gmra.mrb[0].mxu0 %v2119
      %v2220 = vpop.f32.mrb[0].mxu0
      %v2221 = vadd.f32 %v1908, %v2220
      %v2222 = vpop.f32.mrb[0].mxu0
      %v2223 = vpop.f32.mrb[0].mxu0
      %v2224 = vadd.f32 %v1911, %v2223
      %v2225 = vpop.f32.mrb[0].mxu0
      %2226 = vmatprep.mubr.bf16.mxu0 0
      %2227 = vmatmul.mubr.bf16.gmra.mrb[0].mxu0 %v2122
      %v2228 = vpop.f32.mrb[0].mxu0
      %v2229 = vadd.f32 %v1916, %v2228
      %v2230 = vpop.f32.mrb[0].mxu0
      %v2231 = vpop.f32.mrb[0].mxu0
      %v2232 = vadd.f32 %v1919, %v2231
      %v2233 = vpop.f32.mrb[0].mxu0
      %2234 = vmatprep.mubr.bf16.mxu0 0
      %2235 = vmatmul.mubr.bf16.gmra.mrb[0].mxu0 %v2125
      %v2236 = vpop.f32.mrb[0].mxu0
      %v2237 = vadd.f32 %v1924, %v2236
      %v2238 = vpop.f32.mrb[0].mxu0
      %v2239 = vpop.f32.mrb[0].mxu0
      %v2240 = vadd.f32 %v1927, %v2239
      %v2241 = vpop.f32.mrb[0].mxu0
      %2242 = vmatprep.mubr.bf16.mxu0 0
      %2243 = vmatmul.mubr.bf16.gmra.mrb[0].mxu0 %v2128
      %v2244 = vpop.f32.mrb[0].mxu0
      %v2245 = vadd.f32 %v1932, %v2244
      %v2246 = vpop.f32.mrb[0].mxu0
      %v2247 = vpop.f32.mrb[0].mxu0
      %v2248 = vadd.f32 %v1935, %v2247
      %v2249 = vpop.f32.mrb[0].mxu0
      %2250 = vmatprep.mubr.bf16.mxu0 0
      %2251 = vmatmul.mubr.bf16.gmra.mrb[0].mxu0 %v2131
      %v2252 = vpop.f32.mrb[0].mxu0
      %v2253 = vadd.f32 %v1940, %v2252
      %v2254 = vpop.f32.mrb[0].mxu0
      %v2255 = vpop.f32.mrb[0].mxu0
      %v2256 = vadd.f32 %v1943, %v2255
      %v2257 = vpop.f32.mrb[0].mxu0
      %2258 = vmatprep.mubr.bf16.mxu0 0
      %2259 = vmatmul.mubr.bf16.gmra.mrb[0].mxu0 %v2134
      %v2260 = vpop.f32.mrb[0].mxu0
      %v2261 = vadd.f32 %v1948, %v2260
      %v2262 = vpop.f32.mrb[0].mxu0
      %v2263 = vpop.f32.mrb[0].mxu0
      %v2264 = vadd.f32 %v1951, %v2263
      %v2265 = vpop.f32.mrb[0].mxu0
      %2266 = vmatprep.mubr.bf16.mxu0 0
      %2267 = vmatmul.mubr.bf16.gmra.mrb[0].mxu0 %v2137
      %v2268 = vpop.f32.mrb[0].mxu0
      %v2269 = vadd.f32 %v1956, %v2268
      %v2270 = vpop.f32.mrb[0].mxu0
      %v2271 = vpop.f32.mrb[0].mxu0
      %v2272 = vadd.f32 %v1959, %v2271
      %v2273 = vpop.f32.mrb[0].mxu0
      %2274 = vmatprep.mubr.bf16.mxu0 0
      %2275 = vmatmul.mubr.bf16.gmra.mrb[0].mxu0 %v2140
      %v2276 = vpop.f32.mrb[0].mxu0
      %v2277 = vadd.f32 %v1964, %v2276
      %v2278 = vpop.f32.mrb[0].mxu0
      %v2279 = vpop.f32.mrb[0].mxu0
      %v2280 = vadd.f32 %v1967, %v2279
      %v2281 = vpop.f32.mrb[0].mxu0
      %2282 = vmatprep.mubr.bf16.mxu0 0
      %2283 = vmatmul.mubr.bf16.gmra.mrb[0].mxu0 %v2143
      %v2284 = vpop.f32.mrb[0].mxu0
      %v2285 = vadd.f32 %v1972, %v2284
      %v2286 = vpop.f32.mrb[0].mxu0
      %v2287 = vpop.f32.mrb[0].mxu0
      %v2288 = vadd.f32 %v1975, %v2287
      %v2289 = vpop.f32.mrb[0].mxu0
      %2290 = vmatprep.mubr.bf16.mxu0 0
      %2291 = vmatmul.mubr.bf16.gmra.mrb[0].mxu0 %v2146
      %v2292 = vpop.f32.mrb[0].mxu0
      %v2293 = vadd.f32 %v1980, %v2292
      %v2294 = vpop.f32.mrb[0].mxu0
      %v2295 = vpop.f32.mrb[0].mxu0
      %v2296 = vadd.f32 %v1983, %v2295
      %v2297 = vpop.f32.mrb[0].mxu0
      %2298 = vmatprep.mubr.bf16.mxu0 0
      %2299 = vmatmul.mubr.bf16.gmra.mrb[0].mxu0 %v2149
      %v2300 = vpop.f32.mrb[0].mxu0
      %v2301 = vadd.f32 %v1988, %v2300
      %v2302 = vpop.f32.mrb[0].mxu0
      %v2303 = vpop.f32.mrb[0].mxu0
      %v2304 = vadd.f32 %v1991, %v2303
      %v2305 = vpop.f32.mrb[0].mxu0
      %2306 = vmatprep.mubr.bf16.mxu0 0
      %2307 = vmatmul.mubr.bf16.gmra.mrb[0].mxu0 %v2152
      %v2308 = vpop.f32.mrb[0].mxu0
      %v2309 = vadd.f32 %v1996, %v2308
      %v2310 = vpop.f32.mrb[0].mxu0
      %v2311 = vpop.f32.mrb[0].mxu0
      %v2312 = vadd.f32 %v1999, %v2311
      %v2313 = vpop.f32.mrb[0].mxu0
      %2314 = vdwg.mxu0
      %v2315 = vld [vmem:[#allocation2] sm:$0xe]
      %v2316 = vld [vmem:[#allocation2 + $0xc] sm:$0xe]
      %v2317 = vld [vmem:[#allocation2 + $0x18] sm:$0xe]
      %v2318 = vld [vmem:[#allocation2 + $0x24] sm:$0xe]
      %v2319 = vld [vmem:[#allocation2 + $0x30] sm:$0xe]
      %v2320 = vld [vmem:[#allocation2 + $0x3c] sm:$0xe]
      %v2321 = vld [vmem:[#allocation2 + $0x48] sm:$0xe]
      %v2322 = vld [vmem:[#allocation2 + $0x54] sm:$0xe]
      %v2323 = vld [vmem:[#allocation2 + $0x60] sm:$0xe]
      %v2324 = vld [vmem:[#allocation2 + $0x6c] sm:$0xe]
      %v2325 = vld [vmem:[#allocation2 + $0x78] sm:$0xe]
      %v2326 = vld [vmem:[#allocation2 + $0x84] sm:$0xe]
      %v2327 = vld [vmem:[#allocation2 + $0x90] sm:$0xe]
      %v2328 = vld [vmem:[#allocation2 + $0x9c] sm:$0xe]
      %v2329 = vld [vmem:[#allocation2 + $0xa8] sm:$0xe]
      %v2330 = vld [vmem:[#allocation2 + $0xb4] sm:$0xe]
      %vm2363 = vcmask 1042432
      %vm2364 = vcmask 1046532
      %vm2365 = vmor %vm2363, %vm2364
      %v2366 = vrot.slane %v2315, 5
      %v2367 = vrot.slane %v2366, 4
      %v2368 = vrot.slane %v1270, 5
      %v2369 = vsel %vm2365, %v2367, %v2368
      %v2370 = vrot.slane %v2368, 4
      %v2371 = vrot.slane %v1309, 5
      %v2372 = vsel %vm2365, %v2370, %v2371
      %v2373 = vrot.slane %v2316, 5
      %v2374 = vrot.slane %v2373, 4
      %v2375 = vrot.slane %v1272, 5
      %v2376 = vsel %vm2365, %v2374, %v2375
      %v2377 = vrot.slane %v2375, 4
      %v2378 = vrot.slane %v1310, 5
      %v2379 = vsel %vm2365, %v2377, %v2378
      %v2380 = vrot.slane %v2317, 5
      %v2381 = vrot.slane %v2380, 4
      %v2382 = vrot.slane %v1274, 5
      %v2383 = vsel %vm2365, %v2381, %v2382
      %v2384 = vrot.slane %v2382, 4
      %v2385 = vrot.slane %v1311, 5
      %v2386 = vsel %vm2365, %v2384, %v2385
      %v2387 = vrot.slane %v2318, 5
      %v2388 = vrot.slane %v2387, 4
      %v2389 = vrot.slane %v1276, 5
      %v2390 = vsel %vm2365, %v2388, %v2389
      %v2391 = vrot.slane %v2389, 4
      %v2392 = vrot.slane %v1312, 5
      %v2393 = vsel %vm2365, %v2391, %v2392
      %v2394 = vrot.slane %v2319, 5
      %v2395 = vrot.slane %v2394, 4
      %v2396 = vrot.slane %v1278, 5
      %v2397 = vsel %vm2365, %v2395, %v2396
      %v2398 = vrot.slane %v2396, 4
      %v2399 = vrot.slane %v1313, 5
      %v2400 = vsel %vm2365, %v2398, %v2399
      %v2401 = vrot.slane %v2320, 5
      %v2402 = vrot.slane %v2401, 4
      %v2403 = vrot.slane %v1280, 5
      %v2404 = vsel %vm2365, %v2402, %v2403
      %v2405 = vrot.slane %v2403, 4
      %v2406 = vrot.slane %v1314, 5
      %v2407 = vsel %vm2365, %v2405, %v2406
      %v2408 = vrot.slane %v2321, 5
      %v2409 = vrot.slane %v2408, 4
      %v2410 = vrot.slane %v1282, 5
      %v2411 = vsel %vm2365, %v2409, %v2410
      %v2412 = vrot.slane %v2410, 4
      %v2413 = vrot.slane %v1315, 5
      %v2414 = vsel %vm2365, %v2412, %v2413
      %v2415 = vrot.slane %v2322, 5
      %v2416 = vrot.slane %v2415, 4
      %v2417 = vrot.slane %v1284, 5
      %v2418 = vsel %vm2365, %v2416, %v2417
      %v2419 = vrot.slane %v2417, 4
      %v2420 = vrot.slane %v1316, 5
      %v2421 = vsel %vm2365, %v2419, %v2420
      %v2422 = vrot.slane %v2323, 5
      %v2423 = vrot.slane %v2422, 4
      %v2424 = vrot.slane %v1286, 5
      %v2425 = vsel %vm2365, %v2423, %v2424
      %v2426 = vrot.slane %v2424, 4
      %v2427 = vrot.slane %v1317, 5
      %v2428 = vsel %vm2365, %v2426, %v2427
      %v2429 = vrot.slane %v2324, 5
      %v2430 = vrot.slane %v2429, 4
      %v2431 = vrot.slane %v1288, 5
      %v2432 = vsel %vm2365, %v2430, %v2431
      %v2433 = vrot.slane %v2431, 4
      %v2434 = vrot.slane %v1318, 5
      %v2435 = vsel %vm2365, %v2433, %v2434
      %v2436 = vrot.slane %v2325, 5
      %v2437 = vrot.slane %v2436, 4
      %v2438 = vrot.slane %v1290, 5
      %v2439 = vsel %vm2365, %v2437, %v2438
      %v2440 = vrot.slane %v2438, 4
      %v2441 = vrot.slane %v1319, 5
      %v2442 = vsel %vm2365, %v2440, %v2441
      %v2443 = vrot.slane %v2326, 5
      %v2444 = vrot.slane %v2443, 4
      %v2445 = vrot.slane %v1292, 5
      %v2446 = vsel %vm2365, %v2444, %v2445
      %v2447 = vrot.slane %v2445, 4
      %v2448 = vrot.slane %v1320, 5
      %v2449 = vsel %vm2365, %v2447, %v2448
      %v2450 = vrot.slane %v2327, 5
      %v2451 = vrot.slane %v2450, 4
      %v2452 = vrot.slane %v1294, 5
      %v2453 = vsel %vm2365, %v2451, %v2452
      %v2454 = vrot.slane %v2452, 4
      %v2455 = vrot.slane %v1321, 5
      %v2456 = vsel %vm2365, %v2454, %v2455
      %v2457 = vrot.slane %v2328, 5
      %v2458 = vrot.slane %v2457, 4
      %v2459 = vrot.slane %v1296, 5
      %v2460 = vsel %vm2365, %v2458, %v2459
      %v2461 = vrot.slane %v2459, 4
      %v2462 = vrot.slane %v1322, 5
      %v2463 = vsel %vm2365, %v2461, %v2462
      %v2464 = vrot.slane %v2329, 5
      %v2465 = vrot.slane %v2464, 4
      %v2466 = vrot.slane %v1298, 5
      %v2467 = vsel %vm2365, %v2465, %v2466
      %v2468 = vrot.slane %v2466, 4
      %v2469 = vrot.slane %v1323, 5
      %v2470 = vsel %vm2365, %v2468, %v2469
      %v2471 = vrot.slane %v2330, 5
      %v2472 = vrot.slane %v2471, 4
      %v2473 = vrot.slane %v1300, 5
      %v2474 = vsel %vm2365, %v2472, %v2473
      %v2475 = vrot.slane %v2473, 4
      %v2476 = vrot.slane %v1324, 5
      %v2477 = vsel %vm2365, %v2475, %v2476
      %v2478 = vld [vmem:[%s5 + $0x40] sm:$0xf]
      %v2479 = vld [vmem:[%s5 + $0x44] sm:$0xf]
      %v2480 = vld [vmem:[%s5 + $0x48] sm:$0xf]
      %v2481 = vld [vmem:[%s5 + $0x4c] sm:$0xf]
      %v2482 = vld [vmem:[%s5 + $0x50] sm:$0xf]
      %v2483 = vld [vmem:[%s5 + $0x54] sm:$0xf]
      %v2484 = vld [vmem:[%s5 + $0x58] sm:$0xf]
      %v2485 = vld [vmem:[%s5 + $0x5c] sm:$0xf]
      %v2486 = vunpack.c.l.b16 %v2369
      %v2487 = vunpack.c.l.b16 %v2372
      %v2488 = vunpack.c.l.b16 %v2376
      %v2489 = vunpack.c.l.b16 %v2379
      %v2490 = vunpack.c.l.b16 %v2383
      %v2491 = vunpack.c.l.b16 %v2386
      %v2492 = vunpack.c.l.b16 %v2390
      %v2493 = vunpack.c.l.b16 %v2393
      %v2494 = vunpack.c.l.b16 %v2397
      %v2495 = vunpack.c.l.b16 %v2400
      %v2496 = vunpack.c.l.b16 %v2404
      %v2497 = vunpack.c.l.b16 %v2407
      %v2498 = vunpack.c.l.b16 %v2411
      %v2499 = vunpack.c.l.b16 %v2414
      %v2500 = vunpack.c.l.b16 %v2418
      %v2501 = vunpack.c.l.b16 %v2421
      %v2502 = vunpack.c.l.b16 %v2425
      %v2503 = vunpack.c.l.b16 %v2428
      %v2504 = vunpack.c.l.b16 %v2432
      %v2505 = vunpack.c.l.b16 %v2435
      %v2506 = vunpack.c.l.b16 %v2439
      %v2507 = vunpack.c.l.b16 %v2442
      %v2508 = vunpack.c.l.b16 %v2446
      %v2509 = vunpack.c.l.b16 %v2449
      %v2510 = vunpack.c.l.b16 %v2453
      %v2511 = vunpack.c.l.b16 %v2456
      %v2512 = vunpack.c.l.b16 %v2460
      %v2513 = vunpack.c.l.b16 %v2463
      %v2514 = vunpack.c.l.b16 %v2467
      %v2515 = vunpack.c.l.b16 %v2470
      %v2516 = vunpack.c.l.b16 %v2474
      %v2517 = vunpack.c.l.b16 %v2477
      %v2518 = vpack.c.b16 %v2487, %v2486
      %v2519 = vpack.c.b16 %v2489, %v2488
      %v2520 = vpack.c.b16 %v2491, %v2490
      %v2521 = vpack.c.b16 %v2493, %v2492
      %v2522 = vpack.c.b16 %v2495, %v2494
      %v2523 = vpack.c.b16 %v2497, %v2496
      %v2524 = vpack.c.b16 %v2499, %v2498
      %v2525 = vpack.c.b16 %v2501, %v2500
      %v2526 = vpack.c.b16 %v2503, %v2502
      %v2527 = vpack.c.b16 %v2505, %v2504
      %v2528 = vpack.c.b16 %v2507, %v2506
      %v2529 = vpack.c.b16 %v2509, %v2508
      %v2530 = vpack.c.b16 %v2511, %v2510
      %v2531 = vpack.c.b16 %v2513, %v2512
      %v2532 = vpack.c.b16 %v2515, %v2514
      %v2533 = vpack.c.b16 %v2517, %v2516
      %v2542 = vunpack.c.l.b16 %v2478
      %v2543 = vunpack.c.l.b16 %v2479
      %v2544 = vunpack.c.l.b16 %v2480
      %v2545 = vunpack.c.l.b16 %v2481
      %v2546 = vunpack.c.l.b16 %v2482
      %v2547 = vunpack.c.l.b16 %v2483
      %v2548 = vunpack.c.l.b16 %v2484
      %v2549 = vunpack.c.l.b16 %v2485
      %v2550 = vpack.c.b16 %v2543, %v2542
      %v2551 = vpack.c.b16 %v2545, %v2544
      %v2552 = vpack.c.b16 %v2547, %v2546
      %v2553 = vpack.c.b16 %v2549, %v2548
      %v2559 = vsel %vm1792, %v2518, 0
      %v2562 = vsel %vm1792, %v2519, 0
      %v2565 = vsel %vm1792, %v2520, 0
      %v2568 = vsel %vm1792, %v2521, 0
      %v2571 = vsel %vm1792, %v2522, 0
      %v2574 = vsel %vm1792, %v2523, 0
      %v2577 = vsel %vm1792, %v2524, 0
      %v2580 = vsel %vm1792, %v2525, 0
      %v2583 = vsel %vm1792, %v2526, 0
      %v2586 = vsel %vm1792, %v2527, 0
      %v2589 = vsel %vm1792, %v2528, 0
      %v2592 = vsel %vm1792, %v2529, 0
      %v2595 = vsel %vm1792, %v2530, 0
      %v2598 = vsel %vm1792, %v2531, 0
      %v2601 = vsel %vm1792, %v2532, 0
      %v2604 = vsel %vm1792, %v2533, 0
      %2606 = vmatprep.subr.bf16.mxu0 0
      %2607 = vmatpush1.bf16.msra.mxu0 %v2550
      %2608 = vmatprep.subr.bf16.mxu0 0
      %2609 = vmatpush1.bf16.msra.mxu0 %v2551
      %2610 = vmatprep.subr.bf16.mxu0 0
      %2611 = vmatpush1.bf16.msra.mxu0 %v2552
      %2612 = vmatprep.subr.bf16.mxu0 0
      %2613 = vmatpush1.bf16.msra.mxu0 %v2553
      %2614 = vmatprep.subr.bf16.mxu0 0
      %2615 = vmatpush1.bf16.msra.mxu0 0
      %2616 = vmatprep.subr.bf16.mxu0 0
      %2617 = vmatpush1.bf16.msra.mxu0 0
      %2618 = vmatprep.subr.bf16.mxu0 0
      %2619 = vmatpush1.bf16.msra.mxu0 0
      %2620 = vmatprep.subr.bf16.mxu0 0
      %2621 = vmatpush1.bf16.msra.mxu0 0
      %2622 = vmatprep.subr.bf16.mxu0 0
      %2623 = vmatpush1.bf16.msra.mxu0 0
      %2624 = vmatprep.subr.bf16.mxu0 0
      %2625 = vmatpush1.bf16.msra.mxu0 0
      %2626 = vmatprep.subr.bf16.mxu0 0
      %2627 = vmatpush1.bf16.msra.mxu0 0
      %2628 = vmatprep.subr.bf16.mxu0 0
      %2629 = vmatpush1.bf16.msra.mxu0 0
      %2630 = vmatprep.subr.bf16.mxu0 0
      %2631 = vmatpush1.bf16.msra.mxu0 0
      %2632 = vmatprep.subr.bf16.mxu0 0
      %2633 = vmatpush1.bf16.msra.mxu0 0
      %2634 = vmatprep.subr.bf16.mxu0 0
      %2635 = vmatpush1.bf16.msra.mxu0 0
      %2636 = vmatprep.subr.bf16.mxu0 0
      %2637 = vmatpush1.bf16.msra.mxu0 0
      %2638 = vmatprep.mubr.bf16.mxu0 0
      %2639 = vmatmul.mubr.bf16.gmra.mrb[0].mxu0 %v2559
      %v2640 = vpop.f32.mrb[0].mxu0
      %v2641 = vadd.f32 0.0, %v2640
      %v2642 = vpop.f32.mrb[0].mxu0
      %v2643 = vpop.f32.mrb[0].mxu0
      %v2644 = vadd.f32 0.0, %v2643
      %v2645 = vpop.f32.mrb[0].mxu0
      %2646 = vmatprep.mubr.bf16.mxu0 0
      %2647 = vmatmul.mubr.bf16.gmra.mrb[0].mxu0 %v2562
      %v2648 = vpop.f32.mrb[0].mxu0
      %v2649 = vadd.f32 0.0, %v2648
      %v2650 = vpop.f32.mrb[0].mxu0
      %v2651 = vpop.f32.mrb[0].mxu0
      %v2652 = vadd.f32 0.0, %v2651
      %v2653 = vpop.f32.mrb[0].mxu0
      %2654 = vmatprep.mubr.bf16.mxu0 0
      %2655 = vmatmul.mubr.bf16.gmra.mrb[0].mxu0 %v2565
      %v2656 = vpop.f32.mrb[0].mxu0
      %v2657 = vadd.f32 0.0, %v2656
      %v2658 = vpop.f32.mrb[0].mxu0
      %v2659 = vpop.f32.mrb[0].mxu0
      %v2660 = vadd.f32 0.0, %v2659
      %v2661 = vpop.f32.mrb[0].mxu0
      %2662 = vmatprep.mubr.bf16.mxu0 0
      %2663 = vmatmul.mubr.bf16.gmra.mrb[0].mxu0 %v2568
      %v2664 = vpop.f32.mrb[0].mxu0
      %v2665 = vadd.f32 0.0, %v2664
      %v2666 = vpop.f32.mrb[0].mxu0
      %v2667 = vpop.f32.mrb[0].mxu0
      %v2668 = vadd.f32 0.0, %v2667
      %v2669 = vpop.f32.mrb[0].mxu0
      %2670 = vmatprep.mubr.bf16.mxu0 0
      %2671 = vmatmul.mubr.bf16.gmra.mrb[0].mxu0 %v2571
      %v2672 = vpop.f32.mrb[0].mxu0
      %v2673 = vadd.f32 0.0, %v2672
      %v2674 = vpop.f32.mrb[0].mxu0
      %v2675 = vpop.f32.mrb[0].mxu0
      %v2676 = vadd.f32 0.0, %v2675
      %v2677 = vpop.f32.mrb[0].mxu0
      %2678 = vmatprep.mubr.bf16.mxu0 0
      %2679 = vmatmul.mubr.bf16.gmra.mrb[0].mxu0 %v2574
      %v2680 = vpop.f32.mrb[0].mxu0
      %v2681 = vadd.f32 0.0, %v2680
      %v2682 = vpop.f32.mrb[0].mxu0
      %v2683 = vpop.f32.mrb[0].mxu0
      %v2684 = vadd.f32 0.0, %v2683
      %v2685 = vpop.f32.mrb[0].mxu0
      %2686 = vmatprep.mubr.bf16.mxu0 0
      %2687 = vmatmul.mubr.bf16.gmra.mrb[0].mxu0 %v2577
      %v2688 = vpop.f32.mrb[0].mxu0
      %v2689 = vadd.f32 0.0, %v2688
      %v2690 = vpop.f32.mrb[0].mxu0
      %v2691 = vpop.f32.mrb[0].mxu0
      %v2692 = vadd.f32 0.0, %v2691
      %v2693 = vpop.f32.mrb[0].mxu0
      %2694 = vmatprep.mubr.bf16.mxu0 0
      %2695 = vmatmul.mubr.bf16.gmra.mrb[0].mxu0 %v2580
      %v2696 = vpop.f32.mrb[0].mxu0
      %v2697 = vadd.f32 0.0, %v2696
      %v2698 = vpop.f32.mrb[0].mxu0
      %v2699 = vpop.f32.mrb[0].mxu0
      %v2700 = vadd.f32 0.0, %v2699
      %v2701 = vpop.f32.mrb[0].mxu0
      %2702 = vmatprep.mubr.bf16.mxu0 0
      %2703 = vmatmul.mubr.bf16.gmra.mrb[0].mxu0 %v2583
      %v2704 = vpop.f32.mrb[0].mxu0
      %v2705 = vadd.f32 0.0, %v2704
      %v2706 = vpop.f32.mrb[0].mxu0
      %v2707 = vpop.f32.mrb[0].mxu0
      %v2708 = vadd.f32 0.0, %v2707
      %v2709 = vpop.f32.mrb[0].mxu0
      %2710 = vmatprep.mubr.bf16.mxu0 0
      %2711 = vmatmul.mubr.bf16.gmra.mrb[0].mxu0 %v2586
      %v2712 = vpop.f32.mrb[0].mxu0
      %v2713 = vadd.f32 0.0, %v2712
      %v2714 = vpop.f32.mrb[0].mxu0
      %v2715 = vpop.f32.mrb[0].mxu0
      %v2716 = vadd.f32 0.0, %v2715
      %v2717 = vpop.f32.mrb[0].mxu0
      %2718 = vmatprep.mubr.bf16.mxu0 0
      %2719 = vmatmul.mubr.bf16.gmra.mrb[0].mxu0 %v2589
      %v2720 = vpop.f32.mrb[0].mxu0
      %v2721 = vadd.f32 0.0, %v2720
      %v2722 = vpop.f32.mrb[0].mxu0
      %v2723 = vpop.f32.mrb[0].mxu0
      %v2724 = vadd.f32 0.0, %v2723
      %v2725 = vpop.f32.mrb[0].mxu0
      %2726 = vmatprep.mubr.bf16.mxu0 0
      %2727 = vmatmul.mubr.bf16.gmra.mrb[0].mxu0 %v2592
      %v2728 = vpop.f32.mrb[0].mxu0
      %v2729 = vadd.f32 0.0, %v2728
      %v2730 = vpop.f32.mrb[0].mxu0
      %v2731 = vpop.f32.mrb[0].mxu0
      %v2732 = vadd.f32 0.0, %v2731
      %v2733 = vpop.f32.mrb[0].mxu0
      %2734 = vmatprep.mubr.bf16.mxu0 0
      %2735 = vmatmul.mubr.bf16.gmra.mrb[0].mxu0 %v2595
      %v2736 = vpop.f32.mrb[0].mxu0
      %v2737 = vadd.f32 0.0, %v2736
      %v2738 = vpop.f32.mrb[0].mxu0
      %v2739 = vpop.f32.mrb[0].mxu0
      %v2740 = vadd.f32 0.0, %v2739
      %v2741 = vpop.f32.mrb[0].mxu0
      %2742 = vmatprep.mubr.bf16.mxu0 0
      %2743 = vmatmul.mubr.bf16.gmra.mrb[0].mxu0 %v2598
      %v2744 = vpop.f32.mrb[0].mxu0
      %v2745 = vadd.f32 0.0, %v2744
      %v2746 = vpop.f32.mrb[0].mxu0
      %v2747 = vpop.f32.mrb[0].mxu0
      %v2748 = vadd.f32 0.0, %v2747
      %v2749 = vpop.f32.mrb[0].mxu0
      %2750 = vmatprep.mubr.bf16.mxu0 0
      %2751 = vmatmul.mubr.bf16.gmra.mrb[0].mxu0 %v2601
      %v2752 = vpop.f32.mrb[0].mxu0
      %v2753 = vadd.f32 0.0, %v2752
      %v2754 = vpop.f32.mrb[0].mxu0
      %v2755 = vpop.f32.mrb[0].mxu0
      %v2756 = vadd.f32 0.0, %v2755
      %v2757 = vpop.f32.mrb[0].mxu0
      %2758 = vmatprep.mubr.bf16.mxu0 0
      %2759 = vmatmul.mubr.bf16.gmra.mrb[0].mxu0 %v2604
      %v2760 = vpop.f32.mrb[0].mxu0
      %v2761 = vadd.f32 0.0, %v2760
      %v2762 = vpop.f32.mrb[0].mxu0
      %v2763 = vpop.f32.mrb[0].mxu0
      %v2764 = vadd.f32 0.0, %v2763
      %v2765 = vpop.f32.mrb[0].mxu0
      %2766 = vdwg.mxu0
      %v2767 = vadd.f32 %v2189, %v2641
      %v2768 = vadd.f32 %v2192, %v2644
      %v2769 = vadd.f32 %v2197, %v2649
      %v2770 = vadd.f32 %v2200, %v2652
      %v2771 = vadd.f32 %v2205, %v2657
      %v2772 = vadd.f32 %v2208, %v2660
      %v2773 = vadd.f32 %v2213, %v2665
      %v2774 = vadd.f32 %v2216, %v2668
      %v2775 = vadd.f32 %v2221, %v2673
      %v2776 = vadd.f32 %v2224, %v2676
      %v2777 = vadd.f32 %v2229, %v2681
      %v2778 = vadd.f32 %v2232, %v2684
      %v2779 = vadd.f32 %v2237, %v2689
      %v2780 = vadd.f32 %v2240, %v2692
      %v2781 = vadd.f32 %v2245, %v2697
      %v2782 = vadd.f32 %v2248, %v2700
      %v2783 = vadd.f32 %v2253, %v2705
      %v2784 = vadd.f32 %v2256, %v2708
      %v2785 = vadd.f32 %v2261, %v2713
      %v2786 = vadd.f32 %v2264, %v2716
      %v2787 = vadd.f32 %v2269, %v2721
      %v2788 = vadd.f32 %v2272, %v2724
      %v2789 = vadd.f32 %v2277, %v2729
      %v2790 = vadd.f32 %v2280, %v2732
      %v2791 = vadd.f32 %v2285, %v2737
      %v2792 = vadd.f32 %v2288, %v2740
      %v2793 = vadd.f32 %v2293, %v2745
      %v2794 = vadd.f32 %v2296, %v2748
      %v2795 = vadd.f32 %v2301, %v2753
      %v2796 = vadd.f32 %v2304, %v2756
      %v2797 = vadd.f32 %v2309, %v2761
      %v2798 = vadd.f32 %v2312, %v2764
      %v2799 = vld [vmem:[%s1151] sm:$0xf]
      %v2800 = vld [vmem:[%s1151 + $0x4] sm:$0xf]
      %v2801 = vld [vmem:[%s1151 + $0xc] sm:$0xf]
      %v2802 = vld [vmem:[%s1151 + $0x10] sm:$0xf]
      %v2803 = vld [vmem:[%s1151 + $0x18] sm:$0xf]
      %v2804 = vld [vmem:[%s1151 + $0x1c] sm:$0xf]
      %v2805 = vld [vmem:[%s1151 + $0x24] sm:$0xf]
      %v2806 = vld [vmem:[%s1151 + $0x28] sm:$0xf]
      %v2807 = vld [vmem:[%s1151 + $0x30] sm:$0xf]
      %v2808 = vld [vmem:[%s1151 + $0x34] sm:$0xf]
      %v2809 = vld [vmem:[%s1151 + $0x3c] sm:$0xf]
      %v2810 = vld [vmem:[%s1151 + $0x40] sm:$0xf]
      %v2811 = vld [vmem:[%s1151 + $0x48] sm:$0xf]
      %v2812 = vld [vmem:[%s1151 + $0x4c] sm:$0xf]
      %v2813 = vld [vmem:[%s1151 + $0x54] sm:$0xf]
      %v2814 = vld [vmem:[%s1151 + $0x58] sm:$0xf]
      %v2815 = vld [vmem:[%s1151 + $0x60] sm:$0xf]
      %v2816 = vld [vmem:[%s1151 + $0x64] sm:$0xf]
      %v2817 = vld [vmem:[%s1151 + $0x6c] sm:$0xf]
      %v2818 = vld [vmem:[%s1151 + $0x70] sm:$0xf]
      %v2819 = vld [vmem:[%s1151 + $0x78] sm:$0xf]
      %v2820 = vld [vmem:[%s1151 + $0x7c] sm:$0xf]
      %v2821 = vld [vmem:[%s1151 + $0x84] sm:$0xf]
      %v2822 = vld [vmem:[%s1151 + $0x88] sm:$0xf]
      %v2823 = vld [vmem:[%s1151 + $0x90] sm:$0xf]
      %v2824 = vld [vmem:[%s1151 + $0x94] sm:$0xf]
      %v2825 = vld [vmem:[%s1151 + $0x9c] sm:$0xf]
      %v2826 = vld [vmem:[%s1151 + $0xa0] sm:$0xf]
      %v2827 = vld [vmem:[%s1151 + $0xa8] sm:$0xf]
      %v2828 = vld [vmem:[%s1151 + $0xac] sm:$0xf]
      %v2829 = vld [vmem:[%s1151 + $0xb4] sm:$0xf]
      %v2830 = vld [vmem:[%s1151 + $0xb8] sm:$0xf]
      %v2831 = vld [vmem:[%s5 + $0x60] sm:$0xf]
      %v2832 = vld [vmem:[%s5 + $0x64] sm:$0xf]
      %v2833 = vld [vmem:[%s5 + $0x68] sm:$0xf]
      %v2834 = vld [vmem:[%s5 + $0x6c] sm:$0xf]
      %v2835 = vld [vmem:[%s5 + $0x70] sm:$0xf]
      %v2836 = vld [vmem:[%s5 + $0x74] sm:$0xf]
      %v2837 = vld [vmem:[%s5 + $0x78] sm:$0xf]
      %v2838 = vld [vmem:[%s5 + $0x7c] sm:$0xf]
      %v2871 = vunpack.c.l.b16 %v2799
      %v2872 = vunpack.c.l.b16 %v2800
      %v2873 = vunpack.c.l.b16 %v2801
      %v2874 = vunpack.c.l.b16 %v2802
      %v2875 = vunpack.c.l.b16 %v2803
      %v2876 = vunpack.c.l.b16 %v2804
      %v2877 = vunpack.c.l.b16 %v2805
      %v2878 = vunpack.c.l.b16 %v2806
      %v2879 = vunpack.c.l.b16 %v2807
      %v2880 = vunpack.c.l.b16 %v2808
      %v2881 = vunpack.c.l.b16 %v2809
      %v2882 = vunpack.c.l.b16 %v2810
      %v2883 = vunpack.c.l.b16 %v2811
      %v2884 = vunpack.c.l.b16 %v2812
      %v2885 = vunpack.c.l.b16 %v2813
      %v2886 = vunpack.c.l.b16 %v2814
      %v2887 = vunpack.c.l.b16 %v2815
      %v2888 = vunpack.c.l.b16 %v2816
      %v2889 = vunpack.c.l.b16 %v2817
      %v2890 = vunpack.c.l.b16 %v2818
      %v2891 = vunpack.c.l.b16 %v2819
      %v2892 = vunpack.c.l.b16 %v2820
      %v2893 = vunpack.c.l.b16 %v2821
      %v2894 = vunpack.c.l.b16 %v2822
      %v2895 = vunpack.c.l.b16 %v2823
      %v2896 = vunpack.c.l.b16 %v2824
      %v2897 = vunpack.c.l.b16 %v2825
      %v2898 = vunpack.c.l.b16 %v2826
      %v2899 = vunpack.c.l.b16 %v2827
      %v2900 = vunpack.c.l.b16 %v2828
      %v2901 = vunpack.c.l.b16 %v2829
      %v2902 = vunpack.c.l.b16 %v2830
      %v2903 = vpack.c.b16 %v2872, %v2871
      %v2904 = vpack.c.b16 %v2874, %v2873
      %v2905 = vpack.c.b16 %v2876, %v2875
      %v2906 = vpack.c.b16 %v2878, %v2877
      %v2907 = vpack.c.b16 %v2880, %v2879
      %v2908 = vpack.c.b16 %v2882, %v2881
      %v2909 = vpack.c.b16 %v2884, %v2883
      %v2910 = vpack.c.b16 %v2886, %v2885
      %v2911 = vpack.c.b16 %v2888, %v2887
      %v2912 = vpack.c.b16 %v2890, %v2889
      %v2913 = vpack.c.b16 %v2892, %v2891
      %v2914 = vpack.c.b16 %v2894, %v2893
      %v2915 = vpack.c.b16 %v2896, %v2895
      %v2916 = vpack.c.b16 %v2898, %v2897
      %v2917 = vpack.c.b16 %v2900, %v2899
      %v2918 = vpack.c.b16 %v2902, %v2901
      %v2927 = vunpack.c.l.b16 %v2831
      %v2928 = vunpack.c.l.b16 %v2832
      %v2929 = vunpack.c.l.b16 %v2833
      %v2930 = vunpack.c.l.b16 %v2834
      %v2931 = vunpack.c.l.b16 %v2835
      %v2932 = vunpack.c.l.b16 %v2836
      %v2933 = vunpack.c.l.b16 %v2837
      %v2934 = vunpack.c.l.b16 %v2838
      %v2935 = vpack.c.b16 %v2928, %v2927
      %v2936 = vpack.c.b16 %v2930, %v2929
      %v2937 = vpack.c.b16 %v2932, %v2931
      %v2938 = vpack.c.b16 %v2934, %v2933
      %v2944 = vsel %vm1792, %v2903, 0
      %v2947 = vsel %vm1792, %v2904, 0
      %v2950 = vsel %vm1792, %v2905, 0
      %v2953 = vsel %vm1792, %v2906, 0
      %v2956 = vsel %vm1792, %v2907, 0
      %v2959 = vsel %vm1792, %v2908, 0
      %v2962 = vsel %vm1792, %v2909, 0
      %v2965 = vsel %vm1792, %v2910, 0
      %v2968 = vsel %vm1792, %v2911, 0
      %v2971 = vsel %vm1792, %v2912, 0
      %v2974 = vsel %vm1792, %v2913, 0
      %v2977 = vsel %vm1792, %v2914, 0
      %v2980 = vsel %vm1792, %v2915, 0
      %v2983 = vsel %vm1792, %v2916, 0
      %v2986 = vsel %vm1792, %v2917, 0
      %v2989 = vsel %vm1792, %v2918, 0
      %2991 = vmatprep.subr.bf16.mxu0 0
      %2992 = vmatpush1.bf16.msra.mxu0 %v2935
      %2993 = vmatprep.subr.bf16.mxu0 0
      %2994 = vmatpush1.bf16.msra.mxu0 %v2936
      %2995 = vmatprep.subr.bf16.mxu0 0
      %2996 = vmatpush1.bf16.msra.mxu0 %v2937
      %2997 = vmatprep.subr.bf16.mxu0 0
      %2998 = vmatpush1.bf16.msra.mxu0 %v2938
      %2999 = vmatprep.subr.bf16.mxu0 0
      %3000 = vmatpush1.bf16.msra.mxu0 0
      %3001 = vmatprep.subr.bf16.mxu0 0
      %3002 = vmatpush1.bf16.msra.mxu0 0
      %3003 = vmatprep.subr.bf16.mxu0 0
      %3004 = vmatpush1.bf16.msra.mxu0 0
      %3005 = vmatprep.subr.bf16.mxu0 0
      %3006 = vmatpush1.bf16.msra.mxu0 0
      %3007 = vmatprep.subr.bf16.mxu0 0
      %3008 = vmatpush1.bf16.msra.mxu0 0
      %3009 = vmatprep.subr.bf16.mxu0 0
      %3010 = vmatpush1.bf16.msra.mxu0 0
      %3011 = vmatprep.subr.bf16.mxu0 0
      %3012 = vmatpush1.bf16.msra.mxu0 0
      %3013 = vmatprep.subr.bf16.mxu0 0
      %3014 = vmatpush1.bf16.msra.mxu0 0
      %3015 = vmatprep.subr.bf16.mxu0 0
      %3016 = vmatpush1.bf16.msra.mxu0 0
      %3017 = vmatprep.subr.bf16.mxu0 0
      %3018 = vmatpush1.bf16.msra.mxu0 0
      %3019 = vmatprep.subr.bf16.mxu0 0
      %3020 = vmatpush1.bf16.msra.mxu0 0
      %3021 = vmatprep.subr.bf16.mxu0 0
      %3022 = vmatpush1.bf16.msra.mxu0 0
      %3023 = vmatprep.mubr.bf16.mxu0 0
      %3024 = vmatmul.mubr.bf16.gmra.mrb[0].mxu0 %v2944
      %v3025 = vpop.f32.mrb[0].mxu0
      %v3026 = vadd.f32 0.0, %v3025
      %v3027 = vpop.f32.mrb[0].mxu0
      %v3028 = vpop.f32.mrb[0].mxu0
      %v3029 = vadd.f32 0.0, %v3028
      %v3030 = vpop.f32.mrb[0].mxu0
      %3031 = vmatprep.mubr.bf16.mxu0 0
      %3032 = vmatmul.mubr.bf16.gmra.mrb[0].mxu0 %v2947
      %v3033 = vpop.f32.mrb[0].mxu0
      %v3034 = vadd.f32 0.0, %v3033
      %v3035 = vpop.f32.mrb[0].mxu0
      %v3036 = vpop.f32.mrb[0].mxu0
      %v3037 = vadd.f32 0.0, %v3036
      %v3038 = vpop.f32.mrb[0].mxu0
      %3039 = vmatprep.mubr.bf16.mxu0 0
      %3040 = vmatmul.mubr.bf16.gmra.mrb[0].mxu0 %v2950
      %v3041 = vpop.f32.mrb[0].mxu0
      %v3042 = vadd.f32 0.0, %v3041
      %v3043 = vpop.f32.mrb[0].mxu0
      %v3044 = vpop.f32.mrb[0].mxu0
      %v3045 = vadd.f32 0.0, %v3044
      %v3046 = vpop.f32.mrb[0].mxu0
      %3047 = vmatprep.mubr.bf16.mxu0 0
      %3048 = vmatmul.mubr.bf16.gmra.mrb[0].mxu0 %v2953
      %v3049 = vpop.f32.mrb[0].mxu0
      %v3050 = vadd.f32 0.0, %v3049
      %v3051 = vpop.f32.mrb[0].mxu0
      %v3052 = vpop.f32.mrb[0].mxu0
      %v3053 = vadd.f32 0.0, %v3052
      %v3054 = vpop.f32.mrb[0].mxu0
      %3055 = vmatprep.mubr.bf16.mxu0 0
      %3056 = vmatmul.mubr.bf16.gmra.mrb[0].mxu0 %v2956
      %v3057 = vpop.f32.mrb[0].mxu0
      %v3058 = vadd.f32 0.0, %v3057
      %v3059 = vpop.f32.mrb[0].mxu0
      %v3060 = vpop.f32.mrb[0].mxu0
      %v3061 = vadd.f32 0.0, %v3060
      %v3062 = vpop.f32.mrb[0].mxu0
      %3063 = vmatprep.mubr.bf16.mxu0 0
      %3064 = vmatmul.mubr.bf16.gmra.mrb[0].mxu0 %v2959
      %v3065 = vpop.f32.mrb[0].mxu0
      %v3066 = vadd.f32 0.0, %v3065
      %v3067 = vpop.f32.mrb[0].mxu0
      %v3068 = vpop.f32.mrb[0].mxu0
      %v3069 = vadd.f32 0.0, %v3068
      %v3070 = vpop.f32.mrb[0].mxu0
      %3071 = vmatprep.mubr.bf16.mxu0 0
      %3072 = vmatmul.mubr.bf16.gmra.mrb[0].mxu0 %v2962
      %v3073 = vpop.f32.mrb[0].mxu0
      %v3074 = vadd.f32 0.0, %v3073
      %v3075 = vpop.f32.mrb[0].mxu0
      %v3076 = vpop.f32.mrb[0].mxu0
      %v3077 = vadd.f32 0.0, %v3076
      %v3078 = vpop.f32.mrb[0].mxu0
      %3079 = vmatprep.mubr.bf16.mxu0 0
      %3080 = vmatmul.mubr.bf16.gmra.mrb[0].mxu0 %v2965
      %v3081 = vpop.f32.mrb[0].mxu0
      %v3082 = vadd.f32 0.0, %v3081
      %v3083 = vpop.f32.mrb[0].mxu0
      %v3084 = vpop.f32.mrb[0].mxu0
      %v3085 = vadd.f32 0.0, %v3084
      %v3086 = vpop.f32.mrb[0].mxu0
      %3087 = vmatprep.mubr.bf16.mxu0 0
      %3088 = vmatmul.mubr.bf16.gmra.mrb[0].mxu0 %v2968
      %v3089 = vpop.f32.mrb[0].mxu0
      %v3090 = vadd.f32 0.0, %v3089
      %v3091 = vpop.f32.mrb[0].mxu0
      %v3092 = vpop.f32.mrb[0].mxu0
      %v3093 = vadd.f32 0.0, %v3092
      %v3094 = vpop.f32.mrb[0].mxu0
      %3095 = vmatprep.mubr.bf16.mxu0 0
      %3096 = vmatmul.mubr.bf16.gmra.mrb[0].mxu0 %v2971
      %v3097 = vpop.f32.mrb[0].mxu0
      %v3098 = vadd.f32 0.0, %v3097
      %v3099 = vpop.f32.mrb[0].mxu0
      %v3100 = vpop.f32.mrb[0].mxu0
      %v3101 = vadd.f32 0.0, %v3100
      %v3102 = vpop.f32.mrb[0].mxu0
      %3103 = vmatprep.mubr.bf16.mxu0 0
      %3104 = vmatmul.mubr.bf16.gmra.mrb[0].mxu0 %v2974
      %v3105 = vpop.f32.mrb[0].mxu0
      %v3106 = vadd.f32 0.0, %v3105
      %v3107 = vpop.f32.mrb[0].mxu0
      %v3108 = vpop.f32.mrb[0].mxu0
      %v3109 = vadd.f32 0.0, %v3108
      %v3110 = vpop.f32.mrb[0].mxu0
      %3111 = vmatprep.mubr.bf16.mxu0 0
      %3112 = vmatmul.mubr.bf16.gmra.mrb[0].mxu0 %v2977
      %v3113 = vpop.f32.mrb[0].mxu0
      %v3114 = vadd.f32 0.0, %v3113
      %v3115 = vpop.f32.mrb[0].mxu0
      %v3116 = vpop.f32.mrb[0].mxu0
      %v3117 = vadd.f32 0.0, %v3116
      %v3118 = vpop.f32.mrb[0].mxu0
      %3119 = vmatprep.mubr.bf16.mxu0 0
      %3120 = vmatmul.mubr.bf16.gmra.mrb[0].mxu0 %v2980
      %v3121 = vpop.f32.mrb[0].mxu0
      %v3122 = vadd.f32 0.0, %v3121
      %v3123 = vpop.f32.mrb[0].mxu0
      %v3124 = vpop.f32.mrb[0].mxu0
      %v3125 = vadd.f32 0.0, %v3124
      %v3126 = vpop.f32.mrb[0].mxu0
      %3127 = vmatprep.mubr.bf16.mxu0 0
      %3128 = vmatmul.mubr.bf16.gmra.mrb[0].mxu0 %v2983
      %v3129 = vpop.f32.mrb[0].mxu0
      %v3130 = vadd.f32 0.0, %v3129
      %v3131 = vpop.f32.mrb[0].mxu0
      %v3132 = vpop.f32.mrb[0].mxu0
      %v3133 = vadd.f32 0.0, %v3132
      %v3134 = vpop.f32.mrb[0].mxu0
      %3135 = vmatprep.mubr.bf16.mxu0 0
      %3136 = vmatmul.mubr.bf16.gmra.mrb[0].mxu0 %v2986
      %v3137 = vpop.f32.mrb[0].mxu0
      %v3138 = vadd.f32 0.0, %v3137
      %v3139 = vpop.f32.mrb[0].mxu0
      %v3140 = vpop.f32.mrb[0].mxu0
      %v3141 = vadd.f32 0.0, %v3140
      %v3142 = vpop.f32.mrb[0].mxu0
      %3143 = vmatprep.mubr.bf16.mxu0 0
      %3144 = vmatmul.mubr.bf16.gmra.mrb[0].mxu0 %v2989
      %v3145 = vpop.f32.mrb[0].mxu0
      %v3146 = vadd.f32 0.0, %v3145
      %v3147 = vpop.f32.mrb[0].mxu0
      %v3148 = vpop.f32.mrb[0].mxu0
      %v3149 = vadd.f32 0.0, %v3148
      %v3150 = vpop.f32.mrb[0].mxu0
      %3151 = vdwg.mxu0
      %v3152 = vadd.f32 %v2767, %v3026
      %v3153 = vadd.f32 %v2768, %v3029
      %v3154 = vadd.f32 %v2769, %v3034
      %v3155 = vadd.f32 %v2770, %v3037
      %v3156 = vadd.f32 %v2771, %v3042
      %v3157 = vadd.f32 %v2772, %v3045
      %v3158 = vadd.f32 %v2773, %v3050
      %v3159 = vadd.f32 %v2774, %v3053
      %v3160 = vadd.f32 %v2775, %v3058
      %v3161 = vadd.f32 %v2776, %v3061
      %v3162 = vadd.f32 %v2777, %v3066
      %v3163 = vadd.f32 %v2778, %v3069
      %v3164 = vadd.f32 %v2779, %v3074
      %v3165 = vadd.f32 %v2780, %v3077
      %v3166 = vadd.f32 %v2781, %v3082
      %v3167 = vadd.f32 %v2782, %v3085
      %v3168 = vadd.f32 %v2783, %v3090
      %v3169 = vadd.f32 %v2784, %v3093
      %v3170 = vadd.f32 %v2785, %v3098
      %v3171 = vadd.f32 %v2786, %v3101
      %v3172 = vadd.f32 %v2787, %v3106
      %v3173 = vadd.f32 %v2788, %v3109
      %v3174 = vadd.f32 %v2789, %v3114
      %v3175 = vadd.f32 %v2790, %v3117
      %v3176 = vadd.f32 %v2791, %v3122
      %v3177 = vadd.f32 %v2792, %v3125
      %v3178 = vadd.f32 %v2793, %v3130
      %v3179 = vadd.f32 %v2794, %v3133
      %v3180 = vadd.f32 %v2795, %v3138
      %v3181 = vadd.f32 %v2796, %v3141
      %v3182 = vadd.f32 %v2797, %v3146
      %v3183 = vadd.f32 %v2798, %v3149
      %v3184 = vld [vmem:[%s1151] sm:$0xf]
      %v3185 = vld [vmem:[%s1151 + $0x4] sm:$0xf]
      %v3186 = vld [vmem:[%s1151 + $0x8] sm:$0x1]
      %v3187 = vld [vmem:[%s1151 + $0xc] sm:$0xf]
      %v3188 = vld [vmem:[%s1151 + $0x10] sm:$0xf]
      %v3189 = vld [vmem:[%s1151 + $0x14] sm:$0x1]
      %v3190 = vld [vmem:[%s1151 + $0x18] sm:$0xf]
      %v3191 = vld [vmem:[%s1151 + $0x1c] sm:$0xf]
      %v3192 = vld [vmem:[%s1151 + $0x20] sm:$0x1]
      %v3193 = vld [vmem:[%s1151 + $0x24] sm:$0xf]
      %v3194 = vld [vmem:[%s1151 + $0x28] sm:$0xf]
      %v3195 = vld [vmem:[%s1151 + $0x2c] sm:$0x1]
      %v3196 = vld [vmem:[%s1151 + $0x30] sm:$0xf]
      %v3197 = vld [vmem:[%s1151 + $0x34] sm:$0xf]
      %v3198 = vld [vmem:[%s1151 + $0x38] sm:$0x1]
      %v3199 = vld [vmem:[%s1151 + $0x3c] sm:$0xf]
      %v3200 = vld [vmem:[%s1151 + $0x40] sm:$0xf]
      %v3201 = vld [vmem:[%s1151 + $0x44] sm:$0x1]
      %v3202 = vld [vmem:[%s1151 + $0x48] sm:$0xf]
      %v3203 = vld [vmem:[%s1151 + $0x4c] sm:$0xf]
      %v3204 = vld [vmem:[%s1151 + $0x50] sm:$0x1]
      %v3205 = vld [vmem:[%s1151 + $0x54] sm:$0xf]
      %v3206 = vld [vmem:[%s1151 + $0x58] sm:$0xf]
      %v3207 = vld [vmem:[%s1151 + $0x5c] sm:$0x1]
      %v3208 = vld [vmem:[%s1151 + $0x60] sm:$0xf]
      %v3209 = vld [vmem:[%s1151 + $0x64] sm:$0xf]
      %v3210 = vld [vmem:[%s1151 + $0x68] sm:$0x1]
      %v3211 = vld [vmem:[%s1151 + $0x6c] sm:$0xf]
      %v3212 = vld [vmem:[%s1151 + $0x70] sm:$0xf]
      %v3213 = vld [vmem:[%s1151 + $0x74] sm:$0x1]
      %v3214 = vld [vmem:[%s1151 + $0x78] sm:$0xf]
      %v3215 = vld [vmem:[%s1151 + $0x7c] sm:$0xf]
      %v3216 = vld [vmem:[%s1151 + $0x80] sm:$0x1]
      %v3217 = vld [vmem:[%s1151 + $0x84] sm:$0xf]
      %v3218 = vld [vmem:[%s1151 + $0x88] sm:$0xf]
      %v3219 = vld [vmem:[%s1151 + $0x8c] sm:$0x1]
      %v3220 = vld [vmem:[%s1151 + $0x90] sm:$0xf]
      %v3221 = vld [vmem:[%s1151 + $0x94] sm:$0xf]
      %v3222 = vld [vmem:[%s1151 + $0x98] sm:$0x1]
      %v3223 = vld [vmem:[%s1151 + $0x9c] sm:$0xf]
      %v3224 = vld [vmem:[%s1151 + $0xa0] sm:$0xf]
      %v3225 = vld [vmem:[%s1151 + $0xa4] sm:$0x1]
      %v3226 = vld [vmem:[%s1151 + $0xa8] sm:$0xf]
      %v3227 = vld [vmem:[%s1151 + $0xac] sm:$0xf]
      %v3228 = vld [vmem:[%s1151 + $0xb0] sm:$0x1]
      %v3229 = vld [vmem:[%s1151 + $0xb4] sm:$0xf]
      %v3230 = vld [vmem:[%s1151 + $0xb8] sm:$0xf]
      %v3231 = vld [vmem:[%s1151 + $0xbc] sm:$0x1]
      %v3233 = vshrl.u32 %v3184, 16
      %v3235 = vrot.slane %v3233, 4
      %v3236 = vshll.u32 %v3184, 16
      %v3238 = vrot.slane %v3236, 5
      %v3239 = vor.u32 %v3235, %v3238
      %v3240 = vrot.slane %v3239, 4
      %v3242 = vshll.u32 %v3185, 16
      %v3244 = vrot.slane %v3242, 5
      %v3245 = vsel %vm1327, %v3240, %v3244
      %v3246 = vshrl.u32 %v3185, 16
      %v3248 = vrot.slane %v3246, 4
      %v3249 = vor.u32 %v3248, %v3244
      %v3250 = vrot.slane %v3249, 4
      %v3252 = vshll.u32 %v3186, 16
      %v3254 = vrot.slane %v3252, 5
      %v3255 = vsel %vm1327, %v3250, %v3254
      %v3257 = vshrl.u32 %v3187, 16
      %v3259 = vrot.slane %v3257, 4
      %v3260 = vshll.u32 %v3187, 16
      %v3262 = vrot.slane %v3260, 5
      %v3263 = vor.u32 %v3259, %v3262
      %v3264 = vrot.slane %v3263, 4
      %v3266 = vshll.u32 %v3188, 16
      %v3268 = vrot.slane %v3266, 5
      %v3269 = vsel %vm1327, %v3264, %v3268
      %v3270 = vshrl.u32 %v3188, 16
      %v3272 = vrot.slane %v3270, 4
      %v3273 = vor.u32 %v3272, %v3268
      %v3274 = vrot.slane %v3273, 4
      %v3276 = vshll.u32 %v3189, 16
      %v3278 = vrot.slane %v3276, 5
      %v3279 = vsel %vm1327, %v3274, %v3278
      %v3281 = vshrl.u32 %v3190, 16
      %v3283 = vrot.slane %v3281, 4
      %v3284 = vshll.u32 %v3190, 16
      %v3286 = vrot.slane %v3284, 5
      %v3287 = vor.u32 %v3283, %v3286
      %v3288 = vrot.slane %v3287, 4
      %v3290 = vshll.u32 %v3191, 16
      %v3292 = vrot.slane %v3290, 5
      %v3293 = vsel %vm1327, %v3288, %v3292
      %v3294 = vshrl.u32 %v3191, 16
      %v3296 = vrot.slane %v3294, 4
      %v3297 = vor.u32 %v3296, %v3292
      %v3298 = vrot.slane %v3297, 4
      %v3300 = vshll.u32 %v3192, 16
      %v3302 = vrot.slane %v3300, 5
      %v3303 = vsel %vm1327, %v3298, %v3302
      %v3305 = vshrl.u32 %v3193, 16
      %v3307 = vrot.slane %v3305, 4
      %v3308 = vshll.u32 %v3193, 16
      %v3310 = vrot.slane %v3308, 5
      %v3311 = vor.u32 %v3307, %v3310
      %v3312 = vrot.slane %v3311, 4
      %v3314 = vshll.u32 %v3194, 16
      %v3316 = vrot.slane %v3314, 5
      %v3317 = vsel %vm1327, %v3312, %v3316
      %v3318 = vshrl.u32 %v3194, 16
      %v3320 = vrot.slane %v3318, 4
      %v3321 = vor.u32 %v3320, %v3316
      %v3322 = vrot.slane %v3321, 4
      %v3324 = vshll.u32 %v3195, 16
      %v3326 = vrot.slane %v3324, 5
      %v3327 = vsel %vm1327, %v3322, %v3326
      %v3329 = vshrl.u32 %v3196, 16
      %v3331 = vrot.slane %v3329, 4
      %v3332 = vshll.u32 %v3196, 16
      %v3334 = vrot.slane %v3332, 5
      %v3335 = vor.u32 %v3331, %v3334
      %v3336 = vrot.slane %v3335, 4
      %v3338 = vshll.u32 %v3197, 16
      %v3340 = vrot.slane %v3338, 5
      %v3341 = vsel %vm1327, %v3336, %v3340
      %v3342 = vshrl.u32 %v3197, 16
      %v3344 = vrot.slane %v3342, 4
      %v3345 = vor.u32 %v3344, %v3340
      %v3346 = vrot.slane %v3345, 4
      %v3348 = vshll.u32 %v3198, 16
      %v3350 = vrot.slane %v3348, 5
      %v3351 = vsel %vm1327, %v3346, %v3350
      %v3353 = vshrl.u32 %v3199, 16
      %v3355 = vrot.slane %v3353, 4
      %v3356 = vshll.u32 %v3199, 16
      %v3358 = vrot.slane %v3356, 5
      %v3359 = vor.u32 %v3355, %v3358
      %v3360 = vrot.slane %v3359, 4
      %v3362 = vshll.u32 %v3200, 16
      %v3364 = vrot.slane %v3362, 5
      %v3365 = vsel %vm1327, %v3360, %v3364
      %v3366 = vshrl.u32 %v3200, 16
      %v3368 = vrot.slane %v3366, 4
      %v3369 = vor.u32 %v3368, %v3364
      %v3370 = vrot.slane %v3369, 4
      %v3372 = vshll.u32 %v3201, 16
      %v3374 = vrot.slane %v3372, 5
      %v3375 = vsel %vm1327, %v3370, %v3374
      %v3377 = vshrl.u32 %v3202, 16
      %v3379 = vrot.slane %v3377, 4
      %v3380 = vshll.u32 %v3202, 16
      %v3382 = vrot.slane %v3380, 5
      %v3383 = vor.u32 %v3379, %v3382
      %v3384 = vrot.slane %v3383, 4
      %v3386 = vshll.u32 %v3203, 16
      %v3388 = vrot.slane %v3386, 5
      %v3389 = vsel %vm1327, %v3384, %v3388
      %v3390 = vshrl.u32 %v3203, 16
      %v3392 = vrot.slane %v3390, 4
      %v3393 = vor.u32 %v3392, %v3388
      %v3394 = vrot.slane %v3393, 4
      %v3396 = vshll.u32 %v3204, 16
      %v3398 = vrot.slane %v3396, 5
      %v3399 = vsel %vm1327, %v3394, %v3398
      %v3401 = vshrl.u32 %v3205, 16
      %v3403 = vrot.slane %v3401, 4
      %v3404 = vshll.u32 %v3205, 16
      %v3406 = vrot.slane %v3404, 5
      %v3407 = vor.u32 %v3403, %v3406
      %v3408 = vrot.slane %v3407, 4
      %v3410 = vshll.u32 %v3206, 16
      %v3412 = vrot.slane %v3410, 5
      %v3413 = vsel %vm1327, %v3408, %v3412
      %v3414 = vshrl.u32 %v3206, 16
      %v3416 = vrot.slane %v3414, 4
      %v3417 = vor.u32 %v3416, %v3412
      %v3418 = vrot.slane %v3417, 4
      %v3420 = vshll.u32 %v3207, 16
      %v3422 = vrot.slane %v3420, 5
      %v3423 = vsel %vm1327, %v3418, %v3422
      %v3425 = vshrl.u32 %v3208, 16
      %v3427 = vrot.slane %v3425, 4
      %v3428 = vshll.u32 %v3208, 16
      %v3430 = vrot.slane %v3428, 5
      %v3431 = vor.u32 %v3427, %v3430
      %v3432 = vrot.slane %v3431, 4
      %v3434 = vshll.u32 %v3209, 16
      %v3436 = vrot.slane %v3434, 5
      %v3437 = vsel %vm1327, %v3432, %v3436
      %v3438 = vshrl.u32 %v3209, 16
      %v3440 = vrot.slane %v3438, 4
      %v3441 = vor.u32 %v3440, %v3436
      %v3442 = vrot.slane %v3441, 4
      %v3444 = vshll.u32 %v3210, 16
      %v3446 = vrot.slane %v3444, 5
      %v3447 = vsel %vm1327, %v3442, %v3446
      %v3449 = vshrl.u32 %v3211, 16
      %v3451 = vrot.slane %v3449, 4
      %v3452 = vshll.u32 %v3211, 16
      %v3454 = vrot.slane %v3452, 5
      %v3455 = vor.u32 %v3451, %v3454
      %v3456 = vrot.slane %v3455, 4
      %v3458 = vshll.u32 %v3212, 16
      %v3460 = vrot.slane %v3458, 5
      %v3461 = vsel %vm1327, %v3456, %v3460
      %v3462 = vshrl.u32 %v3212, 16
      %v3464 = vrot.slane %v3462, 4
      %v3465 = vor.u32 %v3464, %v3460
      %v3466 = vrot.slane %v3465, 4
      %v3468 = vshll.u32 %v3213, 16
      %v3470 = vrot.slane %v3468, 5
      %v3471 = vsel %vm1327, %v3466, %v3470
      %v3473 = vshrl.u32 %v3214, 16
      %v3475 = vrot.slane %v3473, 4
      %v3476 = vshll.u32 %v3214, 16
      %v3478 = vrot.slane %v3476, 5
      %v3479 = vor.u32 %v3475, %v3478
      %v3480 = vrot.slane %v3479, 4
      %v3482 = vshll.u32 %v3215, 16
      %v3484 = vrot.slane %v3482, 5
      %v3485 = vsel %vm1327, %v3480, %v3484
      %v3486 = vshrl.u32 %v3215, 16
      %v3488 = vrot.slane %v3486, 4
      %v3489 = vor.u32 %v3488, %v3484
      %v3490 = vrot.slane %v3489, 4
      %v3492 = vshll.u32 %v3216, 16
      %v3494 = vrot.slane %v3492, 5
      %v3495 = vsel %vm1327, %v3490, %v3494
      %v3497 = vshrl.u32 %v3217, 16
      %v3499 = vrot.slane %v3497, 4
      %v3500 = vshll.u32 %v3217, 16
      %v3502 = vrot.slane %v3500, 5
      %v3503 = vor.u32 %v3499, %v3502
      %v3504 = vrot.slane %v3503, 4
      %v3506 = vshll.u32 %v3218, 16
      %v3508 = vrot.slane %v3506, 5
      %v3509 = vsel %vm1327, %v3504, %v3508
      %v3510 = vshrl.u32 %v3218, 16
      %v3512 = vrot.slane %v3510, 4
      %v3513 = vor.u32 %v3512, %v3508
      %v3514 = vrot.slane %v3513, 4
      %v3516 = vshll.u32 %v3219, 16
      %v3518 = vrot.slane %v3516, 5
      %v3519 = vsel %vm1327, %v3514, %v3518
      %v3521 = vshrl.u32 %v3220, 16
      %v3523 = vrot.slane %v3521, 4
      %v3524 = vshll.u32 %v3220, 16
      %v3526 = vrot.slane %v3524, 5
      %v3527 = vor.u32 %v3523, %v3526
      %v3528 = vrot.slane %v3527, 4
      %v3530 = vshll.u32 %v3221, 16
      %v3532 = vrot.slane %v3530, 5
      %v3533 = vsel %vm1327, %v3528, %v3532
      %v3534 = vshrl.u32 %v3221, 16
      %v3536 = vrot.slane %v3534, 4
      %v3537 = vor.u32 %v3536, %v3532
      %v3538 = vrot.slane %v3537, 4
      %v3540 = vshll.u32 %v3222, 16
      %v3542 = vrot.slane %v3540, 5
      %v3543 = vsel %vm1327, %v3538, %v3542
      %v3545 = vshrl.u32 %v3223, 16
      %v3547 = vrot.slane %v3545, 4
      %v3548 = vshll.u32 %v3223, 16
      %v3550 = vrot.slane %v3548, 5
      %v3551 = vor.u32 %v3547, %v3550
      %v3552 = vrot.slane %v3551, 4
      %v3554 = vshll.u32 %v3224, 16
      %v3556 = vrot.slane %v3554, 5
      %v3557 = vsel %vm1327, %v3552, %v3556
      %v3558 = vshrl.u32 %v3224, 16
      %v3560 = vrot.slane %v3558, 4
      %v3561 = vor.u32 %v3560, %v3556
      %v3562 = vrot.slane %v3561, 4
      %v3564 = vshll.u32 %v3225, 16
      %v3566 = vrot.slane %v3564, 5
      %v3567 = vsel %vm1327, %v3562, %v3566
      %v3569 = vshrl.u32 %v3226, 16
      %v3571 = vrot.slane %v3569, 4
      %v3572 = vshll.u32 %v3226, 16
      %v3574 = vrot.slane %v3572, 5
      %v3575 = vor.u32 %v3571, %v3574
      %v3576 = vrot.slane %v3575, 4
      %v3578 = vshll.u32 %v3227, 16
      %v3580 = vrot.slane %v3578, 5
      %v3581 = vsel %vm1327, %v3576, %v3580
      %v3582 = vshrl.u32 %v3227, 16
      %v3584 = vrot.slane %v3582, 4
      %v3585 = vor.u32 %v3584, %v3580
      %v3586 = vrot.slane %v3585, 4
      %v3588 = vshll.u32 %v3228, 16
      %v3590 = vrot.slane %v3588, 5
      %v3591 = vsel %vm1327, %v3586, %v3590
      %v3593 = vshrl.u32 %v3229, 16
      %v3595 = vrot.slane %v3593, 4
      %v3596 = vshll.u32 %v3229, 16
      %v3598 = vrot.slane %v3596, 5
      %v3599 = vor.u32 %v3595, %v3598
      %v3600 = vrot.slane %v3599, 4
      %v3602 = vshll.u32 %v3230, 16
      %v3604 = vrot.slane %v3602, 5
      %v3605 = vsel %vm1327, %v3600, %v3604
      %v3606 = vshrl.u32 %v3230, 16
      %v3608 = vrot.slane %v3606, 4
      %v3609 = vor.u32 %v3608, %v3604
      %v3610 = vrot.slane %v3609, 4
      %v3612 = vshll.u32 %v3231, 16
      %v3614 = vrot.slane %v3612, 5
      %v3615 = vsel %vm1327, %v3610, %v3614
      %v3616 = vld [vmem:[%s5 + $0x80] sm:$0xf]
      %v3617 = vld [vmem:[%s5 + $0x84] sm:$0xf]
      %v3618 = vld [vmem:[%s5 + $0x88] sm:$0xf]
      %v3619 = vld [vmem:[%s5 + $0x8c] sm:$0xf]
      %v3620 = vld [vmem:[%s5 + $0x90] sm:$0xf]
      %v3621 = vld [vmem:[%s5 + $0x94] sm:$0xf]
      %v3622 = vld [vmem:[%s5 + $0x98] sm:$0xf]
      %v3623 = vld [vmem:[%s5 + $0x9c] sm:$0xf]
      %v3624 = vunpack.c.l.b16 %v3245
      %v3625 = vunpack.c.l.b16 %v3255
      %v3626 = vunpack.c.l.b16 %v3269
      %v3627 = vunpack.c.l.b16 %v3279
      %v3628 = vunpack.c.l.b16 %v3293
      %v3629 = vunpack.c.l.b16 %v3303
      %v3630 = vunpack.c.l.b16 %v3317
      %v3631 = vunpack.c.l.b16 %v3327
      %v3632 = vunpack.c.l.b16 %v3341
      %v3633 = vunpack.c.l.b16 %v3351
      %v3634 = vunpack.c.l.b16 %v3365
      %v3635 = vunpack.c.l.b16 %v3375
      %v3636 = vunpack.c.l.b16 %v3389
      %v3637 = vunpack.c.l.b16 %v3399
      %v3638 = vunpack.c.l.b16 %v3413
      %v3639 = vunpack.c.l.b16 %v3423
      %v3640 = vunpack.c.l.b16 %v3437
      %v3641 = vunpack.c.l.b16 %v3447
      %v3642 = vunpack.c.l.b16 %v3461
      %v3643 = vunpack.c.l.b16 %v3471
      %v3644 = vunpack.c.l.b16 %v3485
      %v3645 = vunpack.c.l.b16 %v3495
      %v3646 = vunpack.c.l.b16 %v3509
      %v3647 = vunpack.c.l.b16 %v3519
      %v3648 = vunpack.c.l.b16 %v3533
      %v3649 = vunpack.c.l.b16 %v3543
      %v3650 = vunpack.c.l.b16 %v3557
      %v3651 = vunpack.c.l.b16 %v3567
      %v3652 = vunpack.c.l.b16 %v3581
      %v3653 = vunpack.c.l.b16 %v3591
      %v3654 = vunpack.c.l.b16 %v3605
      %v3655 = vunpack.c.l.b16 %v3615
      %v3656 = vpack.c.b16 %v3625, %v3624
      %v3657 = vpack.c.b16 %v3627, %v3626
      %v3658 = vpack.c.b16 %v3629, %v3628
      %v3659 = vpack.c.b16 %v3631, %v3630
      %v3660 = vpack.c.b16 %v3633, %v3632
      %v3661 = vpack.c.b16 %v3635, %v3634
      %v3662 = vpack.c.b16 %v3637, %v3636
      %v3663 = vpack.c.b16 %v3639, %v3638
      %v3664 = vpack.c.b16 %v3641, %v3640
      %v3665 = vpack.c.b16 %v3643, %v3642
      %v3666 = vpack.c.b16 %v3645, %v3644
      %v3667 = vpack.c.b16 %v3647, %v3646
      %v3668 = vpack.c.b16 %v3649, %v3648
      %v3669 = vpack.c.b16 %v3651, %v3650
      %v3670 = vpack.c.b16 %v3653, %v3652
      %v3671 = vpack.c.b16 %v3655, %v3654
      %v3680 = vunpack.c.l.b16 %v3616
      %v3681 = vunpack.c.l.b16 %v3617
      %v3682 = vunpack.c.l.b16 %v3618
      %v3683 = vunpack.c.l.b16 %v3619
      %v3684 = vunpack.c.l.b16 %v3620
      %v3685 = vunpack.c.l.b16 %v3621
      %v3686 = vunpack.c.l.b16 %v3622
      %v3687 = vunpack.c.l.b16 %v3623
      %v3688 = vpack.c.b16 %v3681, %v3680
      %v3689 = vpack.c.b16 %v3683, %v3682
      %v3690 = vpack.c.b16 %v3685, %v3684
      %v3691 = vpack.c.b16 %v3687, %v3686
      %v3697 = vsel %vm1792, %v3656, 0
      %v3700 = vsel %vm1792, %v3657, 0
      %v3703 = vsel %vm1792, %v3658, 0
      %v3706 = vsel %vm1792, %v3659, 0
      %v3709 = vsel %vm1792, %v3660, 0
      %v3712 = vsel %vm1792, %v3661, 0
      %v3715 = vsel %vm1792, %v3662, 0
      %v3718 = vsel %vm1792, %v3663, 0
      %v3721 = vsel %vm1792, %v3664, 0
      %v3724 = vsel %vm1792, %v3665, 0
      %v3727 = vsel %vm1792, %v3666, 0
      %v3730 = vsel %vm1792, %v3667, 0
      %v3733 = vsel %vm1792, %v3668, 0
      %v3736 = vsel %vm1792, %v3669, 0
      %v3739 = vsel %vm1792, %v3670, 0
      %v3742 = vsel %vm1792, %v3671, 0
      %3744 = vmatprep.subr.bf16.mxu0 0
      %3745 = vmatpush1.bf16.msra.mxu0 %v3688
      %3746 = vmatprep.subr.bf16.mxu0 0
      %3747 = vmatpush1.bf16.msra.mxu0 %v3689
      %3748 = vmatprep.subr.bf16.mxu0 0
      %3749 = vmatpush1.bf16.msra.mxu0 %v3690
      %3750 = vmatprep.subr.bf16.mxu0 0
      %3751 = vmatpush1.bf16.msra.mxu0 %v3691
      %3752 = vmatprep.subr.bf16.mxu0 0
      %3753 = vmatpush1.bf16.msra.mxu0 0
      %3754 = vmatprep.subr.bf16.mxu0 0
      %3755 = vmatpush1.bf16.msra.mxu0 0
      %3756 = vmatprep.subr.bf16.mxu0 0
      %3757 = vmatpush1.bf16.msra.mxu0 0
      %3758 = vmatprep.subr.bf16.mxu0 0
      %3759 = vmatpush1.bf16.msra.mxu0 0
      %3760 = vmatprep.subr.bf16.mxu0 0
      %3761 = vmatpush1.bf16.msra.mxu0 0
      %3762 = vmatprep.subr.bf16.mxu0 0
      %3763 = vmatpush1.bf16.msra.mxu0 0
      %3764 = vmatprep.subr.bf16.mxu0 0
      %3765 = vmatpush1.bf16.msra.mxu0 0
      %3766 = vmatprep.subr.bf16.mxu0 0
      %3767 = vmatpush1.bf16.msra.mxu0 0
      %3768 = vmatprep.subr.bf16.mxu0 0
      %3769 = vmatpush1.bf16.msra.mxu0 0
      %3770 = vmatprep.subr.bf16.mxu0 0
      %3771 = vmatpush1.bf16.msra.mxu0 0
      %3772 = vmatprep.subr.bf16.mxu0 0
      %3773 = vmatpush1.bf16.msra.mxu0 0
      %3774 = vmatprep.subr.bf16.mxu0 0
      %3775 = vmatpush1.bf16.msra.mxu0 0
      %3776 = vmatprep.mubr.bf16.mxu0 0
      %3777 = vmatmul.mubr.bf16.gmra.mrb[0].mxu0 %v3697
      %v3778 = vpop.f32.mrb[0].mxu0
      %v3779 = vadd.f32 0.0, %v3778
      %v3780 = vpop.f32.mrb[0].mxu0
      %v3781 = vpop.f32.mrb[0].mxu0
      %v3782 = vadd.f32 0.0, %v3781
      %v3783 = vpop.f32.mrb[0].mxu0
      %3784 = vmatprep.mubr.bf16.mxu0 0
      %3785 = vmatmul.mubr.bf16.gmra.mrb[0].mxu0 %v3700
      %v3786 = vpop.f32.mrb[0].mxu0
      %v3787 = vadd.f32 0.0, %v3786
      %v3788 = vpop.f32.mrb[0].mxu0
      %v3789 = vpop.f32.mrb[0].mxu0
      %v3790 = vadd.f32 0.0, %v3789
      %v3791 = vpop.f32.mrb[0].mxu0
      %3792 = vmatprep.mubr.bf16.mxu0 0
      %3793 = vmatmul.mubr.bf16.gmra.mrb[0].mxu0 %v3703
      %v3794 = vpop.f32.mrb[0].mxu0
      %v3795 = vadd.f32 0.0, %v3794
      %v3796 = vpop.f32.mrb[0].mxu0
      %v3797 = vpop.f32.mrb[0].mxu0
      %v3798 = vadd.f32 0.0, %v3797
      %v3799 = vpop.f32.mrb[0].mxu0
      %3800 = vmatprep.mubr.bf16.mxu0 0
      %3801 = vmatmul.mubr.bf16.gmra.mrb[0].mxu0 %v3706
      %v3802 = vpop.f32.mrb[0].mxu0
      %v3803 = vadd.f32 0.0, %v3802
      %v3804 = vpop.f32.mrb[0].mxu0
      %v3805 = vpop.f32.mrb[0].mxu0
      %v3806 = vadd.f32 0.0, %v3805
      %v3807 = vpop.f32.mrb[0].mxu0
      %3808 = vmatprep.mubr.bf16.mxu0 0
      %3809 = vmatmul.mubr.bf16.gmra.mrb[0].mxu0 %v3709
      %v3810 = vpop.f32.mrb[0].mxu0
      %v3811 = vadd.f32 0.0, %v3810
      %v3812 = vpop.f32.mrb[0].mxu0
      %v3813 = vpop.f32.mrb[0].mxu0
      %v3814 = vadd.f32 0.0, %v3813
      %v3815 = vpop.f32.mrb[0].mxu0
      %3816 = vmatprep.mubr.bf16.mxu0 0
      %3817 = vmatmul.mubr.bf16.gmra.mrb[0].mxu0 %v3712
      %v3818 = vpop.f32.mrb[0].mxu0
      %v3819 = vadd.f32 0.0, %v3818
      %v3820 = vpop.f32.mrb[0].mxu0
      %v3821 = vpop.f32.mrb[0].mxu0
      %v3822 = vadd.f32 0.0, %v3821
      %v3823 = vpop.f32.mrb[0].mxu0
      %3824 = vmatprep.mubr.bf16.mxu0 0
      %3825 = vmatmul.mubr.bf16.gmra.mrb[0].mxu0 %v3715
      %v3826 = vpop.f32.mrb[0].mxu0
      %v3827 = vadd.f32 0.0, %v3826
      %v3828 = vpop.f32.mrb[0].mxu0
      %v3829 = vpop.f32.mrb[0].mxu0
      %v3830 = vadd.f32 0.0, %v3829
      %v3831 = vpop.f32.mrb[0].mxu0
      %3832 = vmatprep.mubr.bf16.mxu0 0
      %3833 = vmatmul.mubr.bf16.gmra.mrb[0].mxu0 %v3718
      %v3834 = vpop.f32.mrb[0].mxu0
      %v3835 = vadd.f32 0.0, %v3834
      %v3836 = vpop.f32.mrb[0].mxu0
      %v3837 = vpop.f32.mrb[0].mxu0
      %v3838 = vadd.f32 0.0, %v3837
      %v3839 = vpop.f32.mrb[0].mxu0
      %3840 = vmatprep.mubr.bf16.mxu0 0
      %3841 = vmatmul.mubr.bf16.gmra.mrb[0].mxu0 %v3721
      %v3842 = vpop.f32.mrb[0].mxu0
      %v3843 = vadd.f32 0.0, %v3842
      %v3844 = vpop.f32.mrb[0].mxu0
      %v3845 = vpop.f32.mrb[0].mxu0
      %v3846 = vadd.f32 0.0, %v3845
      %v3847 = vpop.f32.mrb[0].mxu0
      %3848 = vmatprep.mubr.bf16.mxu0 0
      %3849 = vmatmul.mubr.bf16.gmra.mrb[0].mxu0 %v3724
      %v3850 = vpop.f32.mrb[0].mxu0
      %v3851 = vadd.f32 0.0, %v3850
      %v3852 = vpop.f32.mrb[0].mxu0
      %v3853 = vpop.f32.mrb[0].mxu0
      %v3854 = vadd.f32 0.0, %v3853
      %v3855 = vpop.f32.mrb[0].mxu0
      %3856 = vmatprep.mubr.bf16.mxu0 0
      %3857 = vmatmul.mubr.bf16.gmra.mrb[0].mxu0 %v3727
      %v3858 = vpop.f32.mrb[0].mxu0
      %v3859 = vadd.f32 0.0, %v3858
      %v3860 = vpop.f32.mrb[0].mxu0
      %v3861 = vpop.f32.mrb[0].mxu0
      %v3862 = vadd.f32 0.0, %v3861
      %v3863 = vpop.f32.mrb[0].mxu0
      %3864 = vmatprep.mubr.bf16.mxu0 0
      %3865 = vmatmul.mubr.bf16.gmra.mrb[0].mxu0 %v3730
      %v3866 = vpop.f32.mrb[0].mxu0
      %v3867 = vadd.f32 0.0, %v3866
      %v3868 = vpop.f32.mrb[0].mxu0
      %v3869 = vpop.f32.mrb[0].mxu0
      %v3870 = vadd.f32 0.0, %v3869
      %v3871 = vpop.f32.mrb[0].mxu0
      %3872 = vmatprep.mubr.bf16.mxu0 0
      %3873 = vmatmul.mubr.bf16.gmra.mrb[0].mxu0 %v3733
      %v3874 = vpop.f32.mrb[0].mxu0
      %v3875 = vadd.f32 0.0, %v3874
      %v3876 = vpop.f32.mrb[0].mxu0
      %v3877 = vpop.f32.mrb[0].mxu0
      %v3878 = vadd.f32 0.0, %v3877
      %v3879 = vpop.f32.mrb[0].mxu0
      %3880 = vmatprep.mubr.bf16.mxu0 0
      %3881 = vmatmul.mubr.bf16.gmra.mrb[0].mxu0 %v3736
      %v3882 = vpop.f32.mrb[0].mxu0
      %v3883 = vadd.f32 0.0, %v3882
      %v3884 = vpop.f32.mrb[0].mxu0
      %v3885 = vpop.f32.mrb[0].mxu0
      %v3886 = vadd.f32 0.0, %v3885
      %v3887 = vpop.f32.mrb[0].mxu0
      %3888 = vmatprep.mubr.bf16.mxu0 0
      %3889 = vmatmul.mubr.bf16.gmra.mrb[0].mxu0 %v3739
      %v3890 = vpop.f32.mrb[0].mxu0
      %v3891 = vadd.f32 0.0, %v3890
      %v3892 = vpop.f32.mrb[0].mxu0
      %v3893 = vpop.f32.mrb[0].mxu0
      %v3894 = vadd.f32 0.0, %v3893
      %v3895 = vpop.f32.mrb[0].mxu0
      %3896 = vmatprep.mubr.bf16.mxu0 0
      %3897 = vmatmul.mubr.bf16.gmra.mrb[0].mxu0 %v3742
      %v3898 = vpop.f32.mrb[0].mxu0
      %v3899 = vadd.f32 0.0, %v3898
      %v3900 = vpop.f32.mrb[0].mxu0
      %v3901 = vpop.f32.mrb[0].mxu0
      %v3902 = vadd.f32 0.0, %v3901
      %v3903 = vpop.f32.mrb[0].mxu0
      %3904 = vdwg.mxu0
      %v3905 = vadd.f32 %v3152, %v3779
      %v3906 = vadd.f32 %v3153, %v3782
      %v3907 = vadd.f32 %v3154, %v3787
      %v3908 = vadd.f32 %v3155, %v3790
      %v3909 = vadd.f32 %v3156, %v3795
      %v3910 = vadd.f32 %v3157, %v3798
      %v3911 = vadd.f32 %v3158, %v3803
      %v3912 = vadd.f32 %v3159, %v3806
      %v3913 = vadd.f32 %v3160, %v3811
      %v3914 = vadd.f32 %v3161, %v3814
      %v3915 = vadd.f32 %v3162, %v3819
      %v3916 = vadd.f32 %v3163, %v3822
      %v3917 = vadd.f32 %v3164, %v3827
      %v3918 = vadd.f32 %v3165, %v3830
      %v3919 = vadd.f32 %v3166, %v3835
      %v3920 = vadd.f32 %v3167, %v3838
      %v3921 = vadd.f32 %v3168, %v3843
      %v3922 = vadd.f32 %v3169, %v3846
      %v3923 = vadd.f32 %v3170, %v3851
      %v3924 = vadd.f32 %v3171, %v3854
      %v3925 = vadd.f32 %v3172, %v3859
      %v3926 = vadd.f32 %v3173, %v3862
      %v3927 = vadd.f32 %v3174, %v3867
      %v3928 = vadd.f32 %v3175, %v3870
      %v3929 = vadd.f32 %v3176, %v3875
      %v3930 = vadd.f32 %v3177, %v3878
      %v3931 = vadd.f32 %v3178, %v3883
      %v3932 = vadd.f32 %v3179, %v3886
      %v3933 = vadd.f32 %v3180, %v3891
      %v3934 = vadd.f32 %v3181, %v3894
      %v3935 = vadd.f32 %v3182, %v3899
      %v3936 = vadd.f32 %v3183, %v3902
      %v3937 = vld [vmem:[%s1151] sm:$0xe]
      %v3938 = vld [vmem:[%s1151 + $0xc] sm:$0xe]
      %v3939 = vld [vmem:[%s1151 + $0x18] sm:$0xe]
      %v3940 = vld [vmem:[%s1151 + $0x24] sm:$0xe]
      %v3941 = vld [vmem:[%s1151 + $0x30] sm:$0xe]
      %v3942 = vld [vmem:[%s1151 + $0x3c] sm:$0xe]
      %v3943 = vld [vmem:[%s1151 + $0x48] sm:$0xe]
      %v3944 = vld [vmem:[%s1151 + $0x54] sm:$0xe]
      %v3945 = vld [vmem:[%s1151 + $0x60] sm:$0xe]
      %v3946 = vld [vmem:[%s1151 + $0x6c] sm:$0xe]
      %v3947 = vld [vmem:[%s1151 + $0x78] sm:$0xe]
      %v3948 = vld [vmem:[%s1151 + $0x84] sm:$0xe]
      %v3949 = vld [vmem:[%s1151 + $0x90] sm:$0xe]
      %v3950 = vld [vmem:[%s1151 + $0x9c] sm:$0xe]
      %v3951 = vld [vmem:[%s1151 + $0xa8] sm:$0xe]
      %v3952 = vld [vmem:[%s1151 + $0xb4] sm:$0xe]
      %v4001 = vrot.slane %v3937, 5
      %v4002 = vrot.slane %v4001, 4
      %v4003 = vrot.slane %v3185, 5
      %v4004 = vsel %vm2365, %v4002, %v4003
      %v4005 = vrot.slane %v4003, 4
      %v4006 = vrot.slane %v3186, 5
      %v4007 = vsel %vm2365, %v4005, %v4006
      %v4008 = vrot.slane %v3938, 5
      %v4009 = vrot.slane %v4008, 4
      %v4010 = vrot.slane %v3188, 5
      %v4011 = vsel %vm2365, %v4009, %v4010
      %v4012 = vrot.slane %v4010, 4
      %v4013 = vrot.slane %v3189, 5
      %v4014 = vsel %vm2365, %v4012, %v4013
      %v4015 = vrot.slane %v3939, 5
      %v4016 = vrot.slane %v4015, 4
      %v4017 = vrot.slane %v3191, 5
      %v4018 = vsel %vm2365, %v4016, %v4017
      %v4019 = vrot.slane %v4017, 4
      %v4020 = vrot.slane %v3192, 5
      %v4021 = vsel %vm2365, %v4019, %v4020
      %v4022 = vrot.slane %v3940, 5
      %v4023 = vrot.slane %v4022, 4
      %v4024 = vrot.slane %v3194, 5
      %v4025 = vsel %vm2365, %v4023, %v4024
      %v4026 = vrot.slane %v4024, 4
      %v4027 = vrot.slane %v3195, 5
      %v4028 = vsel %vm2365, %v4026, %v4027
      %v4029 = vrot.slane %v3941, 5
      %v4030 = vrot.slane %v4029, 4
      %v4031 = vrot.slane %v3197, 5
      %v4032 = vsel %vm2365, %v4030, %v4031
      %v4033 = vrot.slane %v4031, 4
      %v4034 = vrot.slane %v3198, 5
      %v4035 = vsel %vm2365, %v4033, %v4034
      %v4036 = vrot.slane %v3942, 5
      %v4037 = vrot.slane %v4036, 4
      %v4038 = vrot.slane %v3200, 5
      %v4039 = vsel %vm2365, %v4037, %v4038
      %v4040 = vrot.slane %v4038, 4
      %v4041 = vrot.slane %v3201, 5
      %v4042 = vsel %vm2365, %v4040, %v4041
      %v4043 = vrot.slane %v3943, 5
      %v4044 = vrot.slane %v4043, 4
      %v4045 = vrot.slane %v3203, 5
      %v4046 = vsel %vm2365, %v4044, %v4045
      %v4047 = vrot.slane %v4045, 4
      %v4048 = vrot.slane %v3204, 5
      %v4049 = vsel %vm2365, %v4047, %v4048
      %v4050 = vrot.slane %v3944, 5
      %v4051 = vrot.slane %v4050, 4
      %v4052 = vrot.slane %v3206, 5
      %v4053 = vsel %vm2365, %v4051, %v4052
      %v4054 = vrot.slane %v4052, 4
      %v4055 = vrot.slane %v3207, 5
      %v4056 = vsel %vm2365, %v4054, %v4055
      %v4057 = vrot.slane %v3945, 5
      %v4058 = vrot.slane %v4057, 4
      %v4059 = vrot.slane %v3209, 5
      %v4060 = vsel %vm2365, %v4058, %v4059
      %v4061 = vrot.slane %v4059, 4
      %v4062 = vrot.slane %v3210, 5
      %v4063 = vsel %vm2365, %v4061, %v4062
      %v4064 = vrot.slane %v3946, 5
      %v4065 = vrot.slane %v4064, 4
      %v4066 = vrot.slane %v3212, 5
      %v4067 = vsel %vm2365, %v4065, %v4066
      %v4068 = vrot.slane %v4066, 4
      %v4069 = vrot.slane %v3213, 5
      %v4070 = vsel %vm2365, %v4068, %v4069
      %v4071 = vrot.slane %v3947, 5
      %v4072 = vrot.slane %v4071, 4
      %v4073 = vrot.slane %v3215, 5
      %v4074 = vsel %vm2365, %v4072, %v4073
      %v4075 = vrot.slane %v4073, 4
      %v4076 = vrot.slane %v3216, 5
      %v4077 = vsel %vm2365, %v4075, %v4076
      %v4078 = vrot.slane %v3948, 5
      %v4079 = vrot.slane %v4078, 4
      %v4080 = vrot.slane %v3218, 5
      %v4081 = vsel %vm2365, %v4079, %v4080
      %v4082 = vrot.slane %v4080, 4
      %v4083 = vrot.slane %v3219, 5
      %v4084 = vsel %vm2365, %v4082, %v4083
      %v4085 = vrot.slane %v3949, 5
      %v4086 = vrot.slane %v4085, 4
      %v4087 = vrot.slane %v3221, 5
      %v4088 = vsel %vm2365, %v4086, %v4087
      %v4089 = vrot.slane %v4087, 4
      %v4090 = vrot.slane %v3222, 5
      %v4091 = vsel %vm2365, %v4089, %v4090
      %v4092 = vrot.slane %v3950, 5
      %v4093 = vrot.slane %v4092, 4
      %v4094 = vrot.slane %v3224, 5
      %v4095 = vsel %vm2365, %v4093, %v4094
      %v4096 = vrot.slane %v4094, 4
      %v4097 = vrot.slane %v3225, 5
      %v4098 = vsel %vm2365, %v4096, %v4097
      %v4099 = vrot.slane %v3951, 5
      %v4100 = vrot.slane %v4099, 4
      %v4101 = vrot.slane %v3227, 5
      %v4102 = vsel %vm2365, %v4100, %v4101
      %v4103 = vrot.slane %v4101, 4
      %v4104 = vrot.slane %v3228, 5
      %v4105 = vsel %vm2365, %v4103, %v4104
      %v4106 = vrot.slane %v3952, 5
      %v4107 = vrot.slane %v4106, 4
      %v4108 = vrot.slane %v3230, 5
      %v4109 = vsel %vm2365, %v4107, %v4108
      %v4110 = vrot.slane %v4108, 4
      %v4111 = vrot.slane %v3231, 5
      %v4112 = vsel %vm2365, %v4110, %v4111
      %v4113 = vld [vmem:[%s5 + $0xa0] sm:$0xf]
      %v4114 = vld [vmem:[%s5 + $0xa4] sm:$0xf]
      %v4115 = vld [vmem:[%s5 + $0xa8] sm:$0xf]
      %v4116 = vld [vmem:[%s5 + $0xac] sm:$0xf]
      %v4117 = vld [vmem:[%s5 + $0xb0] sm:$0xf]
      %v4118 = vld [vmem:[%s5 + $0xb4] sm:$0xf]
      %v4119 = vld [vmem:[%s5 + $0xb8] sm:$0xf]
      %v4120 = vld [vmem:[%s5 + $0xbc] sm:$0xf]
      %v4121 = vunpack.c.l.b16 %v4004
      %v4122 = vunpack.c.l.b16 %v4007
      %v4123 = vunpack.c.l.b16 %v4011
      %v4124 = vunpack.c.l.b16 %v4014
      %v4125 = vunpack.c.l.b16 %v4018
      %v4126 = vunpack.c.l.b16 %v4021
      %v4127 = vunpack.c.l.b16 %v4025
      %v4128 = vunpack.c.l.b16 %v4028
      %v4129 = vunpack.c.l.b16 %v4032
      %v4130 = vunpack.c.l.b16 %v4035
      %v4131 = vunpack.c.l.b16 %v4039
      %v4132 = vunpack.c.l.b16 %v4042
      %v4133 = vunpack.c.l.b16 %v4046
      %v4134 = vunpack.c.l.b16 %v4049
      %v4135 = vunpack.c.l.b16 %v4053
      %v4136 = vunpack.c.l.b16 %v4056
      %v4137 = vunpack.c.l.b16 %v4060
      %v4138 = vunpack.c.l.b16 %v4063
      %v4139 = vunpack.c.l.b16 %v4067
      %v4140 = vunpack.c.l.b16 %v4070
      %v4141 = vunpack.c.l.b16 %v4074
      %v4142 = vunpack.c.l.b16 %v4077
      %v4143 = vunpack.c.l.b16 %v4081
      %v4144 = vunpack.c.l.b16 %v4084
      %v4145 = vunpack.c.l.b16 %v4088
      %v4146 = vunpack.c.l.b16 %v4091
      %v4147 = vunpack.c.l.b16 %v4095
      %v4148 = vunpack.c.l.b16 %v4098
      %v4149 = vunpack.c.l.b16 %v4102
      %v4150 = vunpack.c.l.b16 %v4105
      %v4151 = vunpack.c.l.b16 %v4109
      %v4152 = vunpack.c.l.b16 %v4112
      %v4153 = vpack.c.b16 %v4122, %v4121
      %v4154 = vpack.c.b16 %v4124, %v4123
      %v4155 = vpack.c.b16 %v4126, %v4125
      %v4156 = vpack.c.b16 %v4128, %v4127
      %v4157 = vpack.c.b16 %v4130, %v4129
      %v4158 = vpack.c.b16 %v4132, %v4131
      %v4159 = vpack.c.b16 %v4134, %v4133
      %v4160 = vpack.c.b16 %v4136, %v4135
      %v4161 = vpack.c.b16 %v4138, %v4137
      %v4162 = vpack.c.b16 %v4140, %v4139
      %v4163 = vpack.c.b16 %v4142, %v4141
      %v4164 = vpack.c.b16 %v4144, %v4143
      %v4165 = vpack.c.b16 %v4146, %v4145
      %v4166 = vpack.c.b16 %v4148, %v4147
      %v4167 = vpack.c.b16 %v4150, %v4149
      %v4168 = vpack.c.b16 %v4152, %v4151
      %v4177 = vunpack.c.l.b16 %v4113
      %v4178 = vunpack.c.l.b16 %v4114
      %v4179 = vunpack.c.l.b16 %v4115
      %v4180 = vunpack.c.l.b16 %v4116
      %v4181 = vunpack.c.l.b16 %v4117
      %v4182 = vunpack.c.l.b16 %v4118
      %v4183 = vunpack.c.l.b16 %v4119
      %v4184 = vunpack.c.l.b16 %v4120
      %v4185 = vpack.c.b16 %v4178, %v4177
      %v4186 = vpack.c.b16 %v4180, %v4179
      %v4187 = vpack.c.b16 %v4182, %v4181
      %v4188 = vpack.c.b16 %v4184, %v4183
      %v4194 = vsel %vm1792, %v4153, 0
      %v4197 = vsel %vm1792, %v4154, 0
      %v4200 = vsel %vm1792, %v4155, 0
      %v4203 = vsel %vm1792, %v4156, 0
      %v4206 = vsel %vm1792, %v4157, 0
      %v4209 = vsel %vm1792, %v4158, 0
      %v4212 = vsel %vm1792, %v4159, 0
      %v4215 = vsel %vm1792, %v4160, 0
      %v4218 = vsel %vm1792, %v4161, 0
      %v4221 = vsel %vm1792, %v4162, 0
      %v4224 = vsel %vm1792, %v4163, 0
      %v4227 = vsel %vm1792, %v4164, 0
      %v4230 = vsel %vm1792, %v4165, 0
      %v4233 = vsel %vm1792, %v4166, 0
      %v4236 = vsel %vm1792, %v4167, 0
      %v4239 = vsel %vm1792, %v4168, 0
      %4241 = vmatprep.subr.bf16.mxu0 0
      %4242 = vmatpush1.bf16.msra.mxu0 %v4185
      %4243 = vmatprep.subr.bf16.mxu0 0
      %4244 = vmatpush1.bf16.msra.mxu0 %v4186
      %4245 = vmatprep.subr.bf16.mxu0 0
      %4246 = vmatpush1.bf16.msra.mxu0 %v4187
      %4247 = vmatprep.subr.bf16.mxu0 0
      %4248 = vmatpush1.bf16.msra.mxu0 %v4188
      %4249 = vmatprep.subr.bf16.mxu0 0
      %4250 = vmatpush1.bf16.msra.mxu0 0
      %4251 = vmatprep.subr.bf16.mxu0 0
      %4252 = vmatpush1.bf16.msra.mxu0 0
      %4253 = vmatprep.subr.bf16.mxu0 0
      %4254 = vmatpush1.bf16.msra.mxu0 0
      %4255 = vmatprep.subr.bf16.mxu0 0
      %4256 = vmatpush1.bf16.msra.mxu0 0
      %4257 = vmatprep.subr.bf16.mxu0 0
      %4258 = vmatpush1.bf16.msra.mxu0 0
      %4259 = vmatprep.subr.bf16.mxu0 0
      %4260 = vmatpush1.bf16.msra.mxu0 0
      %4261 = vmatprep.subr.bf16.mxu0 0
      %4262 = vmatpush1.bf16.msra.mxu0 0
      %4263 = vmatprep.subr.bf16.mxu0 0
      %4264 = vmatpush1.bf16.msra.mxu0 0
      %4265 = vmatprep.subr.bf16.mxu0 0
      %4266 = vmatpush1.bf16.msra.mxu0 0
      %4267 = vmatprep.subr.bf16.mxu0 0
      %4268 = vmatpush1.bf16.msra.mxu0 0
      %4269 = vmatprep.subr.bf16.mxu0 0
      %4270 = vmatpush1.bf16.msra.mxu0 0
      %4271 = vmatprep.subr.bf16.mxu0 0
      %4272 = vmatpush1.bf16.msra.mxu0 0
      %4273 = vmatprep.mubr.bf16.mxu0 0
      %4274 = vmatmul.mubr.bf16.gmra.mrb[0].mxu0 %v4194
      %v4275 = vpop.f32.mrb[0].mxu0
      %v4276 = vadd.f32 0.0, %v4275
      %v4277 = vpop.f32.mrb[0].mxu0
      %v4278 = vpop.f32.mrb[0].mxu0
      %v4279 = vadd.f32 0.0, %v4278
      %v4280 = vpop.f32.mrb[0].mxu0
      %4281 = vmatprep.mubr.bf16.mxu0 0
      %4282 = vmatmul.mubr.bf16.gmra.mrb[0].mxu0 %v4197
      %v4283 = vpop.f32.mrb[0].mxu0
      %v4284 = vadd.f32 0.0, %v4283
      %v4285 = vpop.f32.mrb[0].mxu0
      %v4286 = vpop.f32.mrb[0].mxu0
      %v4287 = vadd.f32 0.0, %v4286
      %v4288 = vpop.f32.mrb[0].mxu0
      %4289 = vmatprep.mubr.bf16.mxu0 0
      %4290 = vmatmul.mubr.bf16.gmra.mrb[0].mxu0 %v4200
      %v4291 = vpop.f32.mrb[0].mxu0
      %v4292 = vadd.f32 0.0, %v4291
      %v4293 = vpop.f32.mrb[0].mxu0
      %v4294 = vpop.f32.mrb[0].mxu0
      %v4295 = vadd.f32 0.0, %v4294
      %v4296 = vpop.f32.mrb[0].mxu0
      %4297 = vmatprep.mubr.bf16.mxu0 0
      %4298 = vmatmul.mubr.bf16.gmra.mrb[0].mxu0 %v4203
      %v4299 = vpop.f32.mrb[0].mxu0
      %v4300 = vadd.f32 0.0, %v4299
      %v4301 = vpop.f32.mrb[0].mxu0
      %v4302 = vpop.f32.mrb[0].mxu0
      %v4303 = vadd.f32 0.0, %v4302
      %v4304 = vpop.f32.mrb[0].mxu0
      %4305 = vmatprep.mubr.bf16.mxu0 0
      %4306 = vmatmul.mubr.bf16.gmra.mrb[0].mxu0 %v4206
      %v4307 = vpop.f32.mrb[0].mxu0
      %v4308 = vadd.f32 0.0, %v4307
      %v4309 = vpop.f32.mrb[0].mxu0
      %v4310 = vpop.f32.mrb[0].mxu0
      %v4311 = vadd.f32 0.0, %v4310
      %v4312 = vpop.f32.mrb[0].mxu0
      %4313 = vmatprep.mubr.bf16.mxu0 0
      %4314 = vmatmul.mubr.bf16.gmra.mrb[0].mxu0 %v4209
      %v4315 = vpop.f32.mrb[0].mxu0
      %v4316 = vadd.f32 0.0, %v4315
      %v4317 = vpop.f32.mrb[0].mxu0
      %v4318 = vpop.f32.mrb[0].mxu0
      %v4319 = vadd.f32 0.0, %v4318
      %v4320 = vpop.f32.mrb[0].mxu0
      %4321 = vmatprep.mubr.bf16.mxu0 0
      %4322 = vmatmul.mubr.bf16.gmra.mrb[0].mxu0 %v4212
      %v4323 = vpop.f32.mrb[0].mxu0
      %v4324 = vadd.f32 0.0, %v4323
      %v4325 = vpop.f32.mrb[0].mxu0
      %v4326 = vpop.f32.mrb[0].mxu0
      %v4327 = vadd.f32 0.0, %v4326
      %v4328 = vpop.f32.mrb[0].mxu0
      %4329 = vmatprep.mubr.bf16.mxu0 0
      %4330 = vmatmul.mubr.bf16.gmra.mrb[0].mxu0 %v4215
      %v4331 = vpop.f32.mrb[0].mxu0
      %v4332 = vadd.f32 0.0, %v4331
      %v4333 = vpop.f32.mrb[0].mxu0
      %v4334 = vpop.f32.mrb[0].mxu0
      %v4335 = vadd.f32 0.0, %v4334
      %v4336 = vpop.f32.mrb[0].mxu0
      %4337 = vmatprep.mubr.bf16.mxu0 0
      %4338 = vmatmul.mubr.bf16.gmra.mrb[0].mxu0 %v4218
      %v4339 = vpop.f32.mrb[0].mxu0
      %v4340 = vadd.f32 0.0, %v4339
      %v4341 = vpop.f32.mrb[0].mxu0
      %v4342 = vpop.f32.mrb[0].mxu0
      %v4343 = vadd.f32 0.0, %v4342
      %v4344 = vpop.f32.mrb[0].mxu0
      %4345 = vmatprep.mubr.bf16.mxu0 0
      %4346 = vmatmul.mubr.bf16.gmra.mrb[0].mxu0 %v4221
      %v4347 = vpop.f32.mrb[0].mxu0
      %v4348 = vadd.f32 0.0, %v4347
      %v4349 = vpop.f32.mrb[0].mxu0
      %v4350 = vpop.f32.mrb[0].mxu0
      %v4351 = vadd.f32 0.0, %v4350
      %v4352 = vpop.f32.mrb[0].mxu0
      %4353 = vmatprep.mubr.bf16.mxu0 0
      %4354 = vmatmul.mubr.bf16.gmra.mrb[0].mxu0 %v4224
      %v4355 = vpop.f32.mrb[0].mxu0
      %v4356 = vadd.f32 0.0, %v4355
      %v4357 = vpop.f32.mrb[0].mxu0
      %v4358 = vpop.f32.mrb[0].mxu0
      %v4359 = vadd.f32 0.0, %v4358
      %v4360 = vpop.f32.mrb[0].mxu0
      %4361 = vmatprep.mubr.bf16.mxu0 0
      %4362 = vmatmul.mubr.bf16.gmra.mrb[0].mxu0 %v4227
      %v4363 = vpop.f32.mrb[0].mxu0
      %v4364 = vadd.f32 0.0, %v4363
      %v4365 = vpop.f32.mrb[0].mxu0
      %v4366 = vpop.f32.mrb[0].mxu0
      %v4367 = vadd.f32 0.0, %v4366
      %v4368 = vpop.f32.mrb[0].mxu0
      %4369 = vmatprep.mubr.bf16.mxu0 0
      %4370 = vmatmul.mubr.bf16.gmra.mrb[0].mxu0 %v4230
      %v4371 = vpop.f32.mrb[0].mxu0
      %v4372 = vadd.f32 0.0, %v4371
      %v4373 = vpop.f32.mrb[0].mxu0
      %v4374 = vpop.f32.mrb[0].mxu0
      %v4375 = vadd.f32 0.0, %v4374
      %v4376 = vpop.f32.mrb[0].mxu0
      %4377 = vmatprep.mubr.bf16.mxu0 0
      %4378 = vmatmul.mubr.bf16.gmra.mrb[0].mxu0 %v4233
      %v4379 = vpop.f32.mrb[0].mxu0
      %v4380 = vadd.f32 0.0, %v4379
      %v4381 = vpop.f32.mrb[0].mxu0
      %v4382 = vpop.f32.mrb[0].mxu0
      %v4383 = vadd.f32 0.0, %v4382
      %v4384 = vpop.f32.mrb[0].mxu0
      %4385 = vmatprep.mubr.bf16.mxu0 0
      %4386 = vmatmul.mubr.bf16.gmra.mrb[0].mxu0 %v4236
      %v4387 = vpop.f32.mrb[0].mxu0
      %v4388 = vadd.f32 0.0, %v4387
      %v4389 = vpop.f32.mrb[0].mxu0
      %v4390 = vpop.f32.mrb[0].mxu0
      %v4391 = vadd.f32 0.0, %v4390
      %v4392 = vpop.f32.mrb[0].mxu0
      %4393 = vmatprep.mubr.bf16.mxu0 0
      %4394 = vmatmul.mubr.bf16.gmra.mrb[0].mxu0 %v4239
      %v4395 = vpop.f32.mrb[0].mxu0
      %v4396 = vadd.f32 0.0, %v4395
      %v4397 = vpop.f32.mrb[0].mxu0
      %v4398 = vpop.f32.mrb[0].mxu0
      %v4399 = vadd.f32 0.0, %v4398
      %v4400 = vpop.f32.mrb[0].mxu0
      %4401 = vdwg.mxu0
      %v4402 = vadd.f32 %v3905, %v4276
      %v4403 = vadd.f32 %v3906, %v4279
      %v4404 = vadd.f32 %v3907, %v4284
      %v4405 = vadd.f32 %v3908, %v4287
      %v4406 = vadd.f32 %v3909, %v4292
      %v4407 = vadd.f32 %v3910, %v4295
      %v4408 = vadd.f32 %v3911, %v4300
      %v4409 = vadd.f32 %v3912, %v4303
      %v4410 = vadd.f32 %v3913, %v4308
      %v4411 = vadd.f32 %v3914, %v4311
      %v4412 = vadd.f32 %v3915, %v4316
      %v4413 = vadd.f32 %v3916, %v4319
      %v4414 = vadd.f32 %v3917, %v4324
      %v4415 = vadd.f32 %v3918, %v4327
      %v4416 = vadd.f32 %v3919, %v4332
      %v4417 = vadd.f32 %v3920, %v4335
      %v4418 = vadd.f32 %v3921, %v4340
      %v4419 = vadd.f32 %v3922, %v4343
      %v4420 = vadd.f32 %v3923, %v4348
      %v4421 = vadd.f32 %v3924, %v4351
      %v4422 = vadd.f32 %v3925, %v4356
      %v4423 = vadd.f32 %v3926, %v4359
      %v4424 = vadd.f32 %v3927, %v4364
      %v4425 = vadd.f32 %v3928, %v4367
      %v4426 = vadd.f32 %v3929, %v4372
      %v4427 = vadd.f32 %v3930, %v4375
      %v4428 = vadd.f32 %v3931, %v4380
      %v4429 = vadd.f32 %v3932, %v4383
      %v4430 = vadd.f32 %v3933, %v4388
      %v4431 = vadd.f32 %v3934, %v4391
      %v4432 = vadd.f32 %v3935, %v4396
      %v4433 = vadd.f32 %v3936, %v4399
      %s4434 = scalar_lea.vmem [#allocation2], 24
      %v4435 = vld [vmem:[%s4434] sm:$0xf]
      %v4436 = vld [vmem:[%s4434 + $0x4] sm:$0xf]
      %v4437 = vld [vmem:[%s4434 + $0xc] sm:$0xf]
      %v4438 = vld [vmem:[%s4434 + $0x10] sm:$0xf]
      %v4439 = vld [vmem:[%s4434 + $0x18] sm:$0xf]
      %v4440 = vld [vmem:[%s4434 + $0x1c] sm:$0xf]
      %v4441 = vld [vmem:[%s4434 + $0x24] sm:$0xf]
      %v4442 = vld [vmem:[%s4434 + $0x28] sm:$0xf]
      %v4443 = vld [vmem:[%s4434 + $0x30] sm:$0xf]
      %v4444 = vld [vmem:[%s4434 + $0x34] sm:$0xf]
      %v4445 = vld [vmem:[%s4434 + $0x3c] sm:$0xf]
      %v4446 = vld [vmem:[%s4434 + $0x40] sm:$0xf]
      %v4447 = vld [vmem:[%s4434 + $0x48] sm:$0xf]
      %v4448 = vld [vmem:[%s4434 + $0x4c] sm:$0xf]
      %v4449 = vld [vmem:[%s4434 + $0x54] sm:$0xf]
      %v4450 = vld [vmem:[%s4434 + $0x58] sm:$0xf]
      %v4451 = vld [vmem:[%s4434 + $0x60] sm:$0xf]
      %v4452 = vld [vmem:[%s4434 + $0x64] sm:$0xf]
      %v4453 = vld [vmem:[%s4434 + $0x6c] sm:$0xf]
      %v4454 = vld [vmem:[%s4434 + $0x70] sm:$0xf]
      %v4455 = vld [vmem:[%s4434 + $0x78] sm:$0xf]
      %v4456 = vld [vmem:[%s4434 + $0x7c] sm:$0xf]
      %v4457 = vld [vmem:[%s4434 + $0x84] sm:$0xf]
      %v4458 = vld [vmem:[%s4434 + $0x88] sm:$0xf]
      %v4459 = vld [vmem:[%s4434 + $0x90] sm:$0xf]
      %v4460 = vld [vmem:[%s4434 + $0x94] sm:$0xf]
      %v4461 = vld [vmem:[%s4434 + $0x9c] sm:$0xf]
      %v4462 = vld [vmem:[%s4434 + $0xa0] sm:$0xf]
      %v4463 = vld [vmem:[%s4434 + $0xa8] sm:$0xf]
      %v4464 = vld [vmem:[%s4434 + $0xac] sm:$0xf]
      %v4465 = vld [vmem:[%s4434 + $0xb4] sm:$0xf]
      %v4466 = vld [vmem:[%s4434 + $0xb8] sm:$0xf]
      %v4467 = vld [vmem:[%s5 + $0xc0] sm:$0xf]
      %v4468 = vld [vmem:[%s5 + $0xc4] sm:$0xf]
      %v4469 = vld [vmem:[%s5 + $0xc8] sm:$0xf]
      %v4470 = vld [vmem:[%s5 + $0xcc] sm:$0xf]
      %v4471 = vld [vmem:[%s5 + $0xd0] sm:$0xf]
      %v4472 = vld [vmem:[%s5 + $0xd4] sm:$0xf]
      %v4473 = vld [vmem:[%s5 + $0xd8] sm:$0xf]
      %v4474 = vld [vmem:[%s5 + $0xdc] sm:$0xf]
      %v4507 = vunpack.c.l.b16 %v4435
      %v4508 = vunpack.c.l.b16 %v4436
      %v4509 = vunpack.c.l.b16 %v4437
      %v4510 = vunpack.c.l.b16 %v4438
      %v4511 = vunpack.c.l.b16 %v4439
      %v4512 = vunpack.c.l.b16 %v4440
      %v4513 = vunpack.c.l.b16 %v4441
      %v4514 = vunpack.c.l.b16 %v4442
      %v4515 = vunpack.c.l.b16 %v4443
      %v4516 = vunpack.c.l.b16 %v4444
      %v4517 = vunpack.c.l.b16 %v4445
      %v4518 = vunpack.c.l.b16 %v4446
      %v4519 = vunpack.c.l.b16 %v4447
      %v4520 = vunpack.c.l.b16 %v4448
      %v4521 = vunpack.c.l.b16 %v4449
      %v4522 = vunpack.c.l.b16 %v4450
      %v4523 = vunpack.c.l.b16 %v4451
      %v4524 = vunpack.c.l.b16 %v4452
      %v4525 = vunpack.c.l.b16 %v4453
      %v4526 = vunpack.c.l.b16 %v4454
      %v4527 = vunpack.c.l.b16 %v4455
      %v4528 = vunpack.c.l.b16 %v4456
      %v4529 = vunpack.c.l.b16 %v4457
      %v4530 = vunpack.c.l.b16 %v4458
      %v4531 = vunpack.c.l.b16 %v4459
      %v4532 = vunpack.c.l.b16 %v4460
      %v4533 = vunpack.c.l.b16 %v4461
      %v4534 = vunpack.c.l.b16 %v4462
      %v4535 = vunpack.c.l.b16 %v4463
      %v4536 = vunpack.c.l.b16 %v4464
      %v4537 = vunpack.c.l.b16 %v4465
      %v4538 = vunpack.c.l.b16 %v4466
      %v4539 = vpack.c.b16 %v4508, %v4507
      %v4540 = vpack.c.b16 %v4510, %v4509
      %v4541 = vpack.c.b16 %v4512, %v4511
      %v4542 = vpack.c.b16 %v4514, %v4513
      %v4543 = vpack.c.b16 %v4516, %v4515
      %v4544 = vpack.c.b16 %v4518, %v4517
      %v4545 = vpack.c.b16 %v4520, %v4519
      %v4546 = vpack.c.b16 %v4522, %v4521
      %v4547 = vpack.c.b16 %v4524, %v4523
      %v4548 = vpack.c.b16 %v4526, %v4525
      %v4549 = vpack.c.b16 %v4528, %v4527
      %v4550 = vpack.c.b16 %v4530, %v4529
      %v4551 = vpack.c.b16 %v4532, %v4531
      %v4552 = vpack.c.b16 %v4534, %v4533
      %v4553 = vpack.c.b16 %v4536, %v4535
      %v4554 = vpack.c.b16 %v4538, %v4537
      %v4563 = vunpack.c.l.b16 %v4467
      %v4564 = vunpack.c.l.b16 %v4468
      %v4565 = vunpack.c.l.b16 %v4469
      %v4566 = vunpack.c.l.b16 %v4470
      %v4567 = vunpack.c.l.b16 %v4471
      %v4568 = vunpack.c.l.b16 %v4472
      %v4569 = vunpack.c.l.b16 %v4473
      %v4570 = vunpack.c.l.b16 %v4474
      %v4571 = vpack.c.b16 %v4564, %v4563
      %v4572 = vpack.c.b16 %v4566, %v4565
      %v4573 = vpack.c.b16 %v4568, %v4567
      %v4574 = vpack.c.b16 %v4570, %v4569
      %v4580 = vsel %vm1792, %v4539, 0
      %v4583 = vsel %vm1792, %v4540, 0
      %v4586 = vsel %vm1792, %v4541, 0
      %v4589 = vsel %vm1792, %v4542, 0
      %v4592 = vsel %vm1792, %v4543, 0
      %v4595 = vsel %vm1792, %v4544, 0
      %v4598 = vsel %vm1792, %v4545, 0
      %v4601 = vsel %vm1792, %v4546, 0
      %v4604 = vsel %vm1792, %v4547, 0
      %v4607 = vsel %vm1792, %v4548, 0
      %v4610 = vsel %vm1792, %v4549, 0
      %v4613 = vsel %vm1792, %v4550, 0
      %v4616 = vsel %vm1792, %v4551, 0
      %v4619 = vsel %vm1792, %v4552, 0
      %v4622 = vsel %vm1792, %v4553, 0
      %v4625 = vsel %vm1792, %v4554, 0
      %4627 = vmatprep.subr.bf16.mxu0 0
      %4628 = vmatpush1.bf16.msra.mxu0 %v4571
      %4629 = vmatprep.subr.bf16.mxu0 0
      %4630 = vmatpush1.bf16.msra.mxu0 %v4572
      %4631 = vmatprep.subr.bf16.mxu0 0
      %4632 = vmatpush1.bf16.msra.mxu0 %v4573
      %4633 = vmatprep.subr.bf16.mxu0 0
      %4634 = vmatpush1.bf16.msra.mxu0 %v4574
      %4635 = vmatprep.subr.bf16.mxu0 0
      %4636 = vmatpush1.bf16.msra.mxu0 0
      %4637 = vmatprep.subr.bf16.mxu0 0
      %4638 = vmatpush1.bf16.msra.mxu0 0
      %4639 = vmatprep.subr.bf16.mxu0 0
      %4640 = vmatpush1.bf16.msra.mxu0 0
      %4641 = vmatprep.subr.bf16.mxu0 0
      %4642 = vmatpush1.bf16.msra.mxu0 0
      %4643 = vmatprep.subr.bf16.mxu0 0
      %4644 = vmatpush1.bf16.msra.mxu0 0
      %4645 = vmatprep.subr.bf16.mxu0 0
      %4646 = vmatpush1.bf16.msra.mxu0 0
      %4647 = vmatprep.subr.bf16.mxu0 0
      %4648 = vmatpush1.bf16.msra.mxu0 0
      %4649 = vmatprep.subr.bf16.mxu0 0
      %4650 = vmatpush1.bf16.msra.mxu0 0
      %4651 = vmatprep.subr.bf16.mxu0 0
      %4652 = vmatpush1.bf16.msra.mxu0 0
      %4653 = vmatprep.subr.bf16.mxu0 0
      %4654 = vmatpush1.bf16.msra.mxu0 0
      %4655 = vmatprep.subr.bf16.mxu0 0
      %4656 = vmatpush1.bf16.msra.mxu0 0
      %4657 = vmatprep.subr.bf16.mxu0 0
      %4658 = vmatpush1.bf16.msra.mxu0 0
      %4659 = vmatprep.mubr.bf16.mxu0 0
      %4660 = vmatmul.mubr.bf16.gmra.mrb[0].mxu0 %v4580
      %v4661 = vpop.f32.mrb[0].mxu0
      %v4662 = vadd.f32 0.0, %v4661
      %v4663 = vpop.f32.mrb[0].mxu0
      %v4664 = vpop.f32.mrb[0].mxu0
      %v4665 = vadd.f32 0.0, %v4664
      %v4666 = vpop.f32.mrb[0].mxu0
      %4667 = vmatprep.mubr.bf16.mxu0 0
      %4668 = vmatmul.mubr.bf16.gmra.mrb[0].mxu0 %v4583
      %v4669 = vpop.f32.mrb[0].mxu0
      %v4670 = vadd.f32 0.0, %v4669
      %v4671 = vpop.f32.mrb[0].mxu0
      %v4672 = vpop.f32.mrb[0].mxu0
      %v4673 = vadd.f32 0.0, %v4672
      %v4674 = vpop.f32.mrb[0].mxu0
      %4675 = vmatprep.mubr.bf16.mxu0 0
      %4676 = vmatmul.mubr.bf16.gmra.mrb[0].mxu0 %v4586
      %v4677 = vpop.f32.mrb[0].mxu0
      %v4678 = vadd.f32 0.0, %v4677
      %v4679 = vpop.f32.mrb[0].mxu0
      %v4680 = vpop.f32.mrb[0].mxu0
      %v4681 = vadd.f32 0.0, %v4680
      %v4682 = vpop.f32.mrb[0].mxu0
      %4683 = vmatprep.mubr.bf16.mxu0 0
      %4684 = vmatmul.mubr.bf16.gmra.mrb[0].mxu0 %v4589
      %v4685 = vpop.f32.mrb[0].mxu0
      %v4686 = vadd.f32 0.0, %v4685
      %v4687 = vpop.f32.mrb[0].mxu0
      %v4688 = vpop.f32.mrb[0].mxu0
      %v4689 = vadd.f32 0.0, %v4688
      %v4690 = vpop.f32.mrb[0].mxu0
      %4691 = vmatprep.mubr.bf16.mxu0 0
      %4692 = vmatmul.mubr.bf16.gmra.mrb[0].mxu0 %v4592
      %v4693 = vpop.f32.mrb[0].mxu0
      %v4694 = vadd.f32 0.0, %v4693
      %v4695 = vpop.f32.mrb[0].mxu0
      %v4696 = vpop.f32.mrb[0].mxu0
      %v4697 = vadd.f32 0.0, %v4696
      %v4698 = vpop.f32.mrb[0].mxu0
      %4699 = vmatprep.mubr.bf16.mxu0 0
      %4700 = vmatmul.mubr.bf16.gmra.mrb[0].mxu0 %v4595
      %v4701 = vpop.f32.mrb[0].mxu0
      %v4702 = vadd.f32 0.0, %v4701
      %v4703 = vpop.f32.mrb[0].mxu0
      %v4704 = vpop.f32.mrb[0].mxu0
      %v4705 = vadd.f32 0.0, %v4704
      %v4706 = vpop.f32.mrb[0].mxu0
      %4707 = vmatprep.mubr.bf16.mxu0 0
      %4708 = vmatmul.mubr.bf16.gmra.mrb[0].mxu0 %v4598
      %v4709 = vpop.f32.mrb[0].mxu0
      %v4710 = vadd.f32 0.0, %v4709
      %v4711 = vpop.f32.mrb[0].mxu0
      %v4712 = vpop.f32.mrb[0].mxu0
      %v4713 = vadd.f32 0.0, %v4712
      %v4714 = vpop.f32.mrb[0].mxu0
      %4715 = vmatprep.mubr.bf16.mxu0 0
      %4716 = vmatmul.mubr.bf16.gmra.mrb[0].mxu0 %v4601
      %v4717 = vpop.f32.mrb[0].mxu0
      %v4718 = vadd.f32 0.0, %v4717
      %v4719 = vpop.f32.mrb[0].mxu0
      %v4720 = vpop.f32.mrb[0].mxu0
      %v4721 = vadd.f32 0.0, %v4720
      %v4722 = vpop.f32.mrb[0].mxu0
      %4723 = vmatprep.mubr.bf16.mxu0 0
      %4724 = vmatmul.mubr.bf16.gmra.mrb[0].mxu0 %v4604
      %v4725 = vpop.f32.mrb[0].mxu0
      %v4726 = vadd.f32 0.0, %v4725
      %v4727 = vpop.f32.mrb[0].mxu0
      %v4728 = vpop.f32.mrb[0].mxu0
      %v4729 = vadd.f32 0.0, %v4728
      %v4730 = vpop.f32.mrb[0].mxu0
      %4731 = vmatprep.mubr.bf16.mxu0 0
      %4732 = vmatmul.mubr.bf16.gmra.mrb[0].mxu0 %v4607
      %v4733 = vpop.f32.mrb[0].mxu0
      %v4734 = vadd.f32 0.0, %v4733
      %v4735 = vpop.f32.mrb[0].mxu0
      %v4736 = vpop.f32.mrb[0].mxu0
      %v4737 = vadd.f32 0.0, %v4736
      %v4738 = vpop.f32.mrb[0].mxu0
      %4739 = vmatprep.mubr.bf16.mxu0 0
      %4740 = vmatmul.mubr.bf16.gmra.mrb[0].mxu0 %v4610
      %v4741 = vpop.f32.mrb[0].mxu0
      %v4742 = vadd.f32 0.0, %v4741
      %v4743 = vpop.f32.mrb[0].mxu0
      %v4744 = vpop.f32.mrb[0].mxu0
      %v4745 = vadd.f32 0.0, %v4744
      %v4746 = vpop.f32.mrb[0].mxu0
      %4747 = vmatprep.mubr.bf16.mxu0 0
      %4748 = vmatmul.mubr.bf16.gmra.mrb[0].mxu0 %v4613
      %v4749 = vpop.f32.mrb[0].mxu0
      %v4750 = vadd.f32 0.0, %v4749
      %v4751 = vpop.f32.mrb[0].mxu0
      %v4752 = vpop.f32.mrb[0].mxu0
      %v4753 = vadd.f32 0.0, %v4752
      %v4754 = vpop.f32.mrb[0].mxu0
      %4755 = vmatprep.mubr.bf16.mxu0 0
      %4756 = vmatmul.mubr.bf16.gmra.mrb[0].mxu0 %v4616
      %v4757 = vpop.f32.mrb[0].mxu0
      %v4758 = vadd.f32 0.0, %v4757
      %v4759 = vpop.f32.mrb[0].mxu0
      %v4760 = vpop.f32.mrb[0].mxu0
      %v4761 = vadd.f32 0.0, %v4760
      %v4762 = vpop.f32.mrb[0].mxu0
      %4763 = vmatprep.mubr.bf16.mxu0 0
      %4764 = vmatmul.mubr.bf16.gmra.mrb[0].mxu0 %v4619
      %v4765 = vpop.f32.mrb[0].mxu0
      %v4766 = vadd.f32 0.0, %v4765
      %v4767 = vpop.f32.mrb[0].mxu0
      %v4768 = vpop.f32.mrb[0].mxu0
      %v4769 = vadd.f32 0.0, %v4768
      %v4770 = vpop.f32.mrb[0].mxu0
      %4771 = vmatprep.mubr.bf16.mxu0 0
      %4772 = vmatmul.mubr.bf16.gmra.mrb[0].mxu0 %v4622
      %v4773 = vpop.f32.mrb[0].mxu0
      %v4774 = vadd.f32 0.0, %v4773
      %v4775 = vpop.f32.mrb[0].mxu0
      %v4776 = vpop.f32.mrb[0].mxu0
      %v4777 = vadd.f32 0.0, %v4776
      %v4778 = vpop.f32.mrb[0].mxu0
      %4779 = vmatprep.mubr.bf16.mxu0 0
      %4780 = vmatmul.mubr.bf16.gmra.mrb[0].mxu0 %v4625
      %v4781 = vpop.f32.mrb[0].mxu0
      %v4782 = vadd.f32 0.0, %v4781
      %v4783 = vpop.f32.mrb[0].mxu0
      %v4784 = vpop.f32.mrb[0].mxu0
      %v4785 = vadd.f32 0.0, %v4784
      %v4786 = vpop.f32.mrb[0].mxu0
      %4787 = vdwg.mxu0
      %v4788 = vadd.f32 %v4402, %v4662
      %v4789 = vadd.f32 %v4403, %v4665
      %v4790 = vadd.f32 %v4404, %v4670
      %v4791 = vadd.f32 %v4405, %v4673
      %v4792 = vadd.f32 %v4406, %v4678
      %v4793 = vadd.f32 %v4407, %v4681
      %v4794 = vadd.f32 %v4408, %v4686
      %v4795 = vadd.f32 %v4409, %v4689
      %v4796 = vadd.f32 %v4410, %v4694
      %v4797 = vadd.f32 %v4411, %v4697
      %v4798 = vadd.f32 %v4412, %v4702
      %v4799 = vadd.f32 %v4413, %v4705
      %v4800 = vadd.f32 %v4414, %v4710
      %v4801 = vadd.f32 %v4415, %v4713
      %v4802 = vadd.f32 %v4416, %v4718
      %v4803 = vadd.f32 %v4417, %v4721
      %v4804 = vadd.f32 %v4418, %v4726
      %v4805 = vadd.f32 %v4419, %v4729
      %v4806 = vadd.f32 %v4420, %v4734
      %v4807 = vadd.f32 %v4421, %v4737
      %v4808 = vadd.f32 %v4422, %v4742
      %v4809 = vadd.f32 %v4423, %v4745
      %v4810 = vadd.f32 %v4424, %v4750
      %v4811 = vadd.f32 %v4425, %v4753
      %v4812 = vadd.f32 %v4426, %v4758
      %v4813 = vadd.f32 %v4427, %v4761
      %v4814 = vadd.f32 %v4428, %v4766
      %v4815 = vadd.f32 %v4429, %v4769
      %v4816 = vadd.f32 %v4430, %v4774
      %v4817 = vadd.f32 %v4431, %v4777
      %v4818 = vadd.f32 %v4432, %v4782
      %v4819 = vadd.f32 %v4433, %v4785
      %v4820 = vld [vmem:[%s4434] sm:$0xf]
      %v4821 = vld [vmem:[%s4434 + $0x4] sm:$0xf]
      %v4822 = vld [vmem:[%s4434 + $0x8] sm:$0x1]
      %v4823 = vld [vmem:[%s4434 + $0xc] sm:$0xf]
      %v4824 = vld [vmem:[%s4434 + $0x10] sm:$0xf]
      %v4825 = vld [vmem:[%s4434 + $0x14] sm:$0x1]
      %v4826 = vld [vmem:[%s4434 + $0x18] sm:$0xf]
      %v4827 = vld [vmem:[%s4434 + $0x1c] sm:$0xf]
      %v4828 = vld [vmem:[%s4434 + $0x20] sm:$0x1]
      %v4829 = vld [vmem:[%s4434 + $0x24] sm:$0xf]
      %v4830 = vld [vmem:[%s4434 + $0x28] sm:$0xf]
      %v4831 = vld [vmem:[%s4434 + $0x2c] sm:$0x1]
      %v4832 = vld [vmem:[%s4434 + $0x30] sm:$0xf]
      %v4833 = vld [vmem:[%s4434 + $0x34] sm:$0xf]
      %v4834 = vld [vmem:[%s4434 + $0x38] sm:$0x1]
      %v4835 = vld [vmem:[%s4434 + $0x3c] sm:$0xf]
      %v4836 = vld [vmem:[%s4434 + $0x40] sm:$0xf]
      %v4837 = vld [vmem:[%s4434 + $0x44] sm:$0x1]
      %v4838 = vld [vmem:[%s4434 + $0x48] sm:$0xf]
      %v4839 = vld [vmem:[%s4434 + $0x4c] sm:$0xf]
      %v4840 = vld [vmem:[%s4434 + $0x50] sm:$0x1]
      %v4841 = vld [vmem:[%s4434 + $0x54] sm:$0xf]
      %v4842 = vld [vmem:[%s4434 + $0x58] sm:$0xf]
      %v4843 = vld [vmem:[%s4434 + $0x5c] sm:$0x1]
      %v4844 = vld [vmem:[%s4434 + $0x60] sm:$0xf]
      %v4845 = vld [vmem:[%s4434 + $0x64] sm:$0xf]
      %v4846 = vld [vmem:[%s4434 + $0x68] sm:$0x1]
      %v4847 = vld [vmem:[%s4434 + $0x6c] sm:$0xf]
      %v4848 = vld [vmem:[%s4434 + $0x70] sm:$0xf]
      %v4849 = vld [vmem:[%s4434 + $0x74] sm:$0x1]
      %v4850 = vld [vmem:[%s4434 + $0x78] sm:$0xf]
      %v4851 = vld [vmem:[%s4434 + $0x7c] sm:$0xf]
      %v4852 = vld [vmem:[%s4434 + $0x80] sm:$0x1]
      %v4853 = vld [vmem:[%s4434 + $0x84] sm:$0xf]
      %v4854 = vld [vmem:[%s4434 + $0x88] sm:$0xf]
      %v4855 = vld [vmem:[%s4434 + $0x8c] sm:$0x1]
      %v4856 = vld [vmem:[%s4434 + $0x90] sm:$0xf]
      %v4857 = vld [vmem:[%s4434 + $0x94] sm:$0xf]
      %v4858 = vld [vmem:[%s4434 + $0x98] sm:$0x1]
      %v4859 = vld [vmem:[%s4434 + $0x9c] sm:$0xf]
      %v4860 = vld [vmem:[%s4434 + $0xa0] sm:$0xf]
      %v4861 = vld [vmem:[%s4434 + $0xa4] sm:$0x1]
      %v4862 = vld [vmem:[%s4434 + $0xa8] sm:$0xf]
      %v4863 = vld [vmem:[%s4434 + $0xac] sm:$0xf]
      %v4864 = vld [vmem:[%s4434 + $0xb0] sm:$0x1]
      %v4865 = vld [vmem:[%s4434 + $0xb4] sm:$0xf]
      %v4866 = vld [vmem:[%s4434 + $0xb8] sm:$0xf]
      %v4867 = vld [vmem:[%s4434 + $0xbc] sm:$0x1]
      %v4869 = vshrl.u32 %v4820, 16
      %v4871 = vrot.slane %v4869, 4
      %v4872 = vshll.u32 %v4820, 16
      %v4874 = vrot.slane %v4872, 5
      %v4875 = vor.u32 %v4871, %v4874
      %v4876 = vrot.slane %v4875, 4
      %v4878 = vshll.u32 %v4821, 16
      %v4880 = vrot.slane %v4878, 5
      %v4881 = vsel %vm1327, %v4876, %v4880
      %v4882 = vshrl.u32 %v4821, 16
      %v4884 = vrot.slane %v4882, 4
      %v4885 = vor.u32 %v4884, %v4880
      %v4886 = vrot.slane %v4885, 4
      %v4888 = vshll.u32 %v4822, 16
      %v4890 = vrot.slane %v4888, 5
      %v4891 = vsel %vm1327, %v4886, %v4890
      %v4893 = vshrl.u32 %v4823, 16
      %v4895 = vrot.slane %v4893, 4
      %v4896 = vshll.u32 %v4823, 16
      %v4898 = vrot.slane %v4896, 5
      %v4899 = vor.u32 %v4895, %v4898
      %v4900 = vrot.slane %v4899, 4
      %v4902 = vshll.u32 %v4824, 16
      %v4904 = vrot.slane %v4902, 5
      %v4905 = vsel %vm1327, %v4900, %v4904
      %v4906 = vshrl.u32 %v4824, 16
      %v4908 = vrot.slane %v4906, 4
      %v4909 = vor.u32 %v4908, %v4904
      %v4910 = vrot.slane %v4909, 4
      %v4912 = vshll.u32 %v4825, 16
      %v4914 = vrot.slane %v4912, 5
      %v4915 = vsel %vm1327, %v4910, %v4914
      %v4917 = vshrl.u32 %v4826, 16
      %v4919 = vrot.slane %v4917, 4
      %v4920 = vshll.u32 %v4826, 16
      %v4922 = vrot.slane %v4920, 5
      %v4923 = vor.u32 %v4919, %v4922
      %v4924 = vrot.slane %v4923, 4
      %v4926 = vshll.u32 %v4827, 16
      %v4928 = vrot.slane %v4926, 5
      %v4929 = vsel %vm1327, %v4924, %v4928
      %v4930 = vshrl.u32 %v4827, 16
      %v4932 = vrot.slane %v4930, 4
      %v4933 = vor.u32 %v4932, %v4928
      %v4934 = vrot.slane %v4933, 4
      %v4936 = vshll.u32 %v4828, 16
      %v4938 = vrot.slane %v4936, 5
      %v4939 = vsel %vm1327, %v4934, %v4938
      %v4941 = vshrl.u32 %v4829, 16
      %v4943 = vrot.slane %v4941, 4
      %v4944 = vshll.u32 %v4829, 16
      %v4946 = vrot.slane %v4944, 5
      %v4947 = vor.u32 %v4943, %v4946
      %v4948 = vrot.slane %v4947, 4
      %v4950 = vshll.u32 %v4830, 16
      %v4952 = vrot.slane %v4950, 5
      %v4953 = vsel %vm1327, %v4948, %v4952
      %v4954 = vshrl.u32 %v4830, 16
      %v4956 = vrot.slane %v4954, 4
      %v4957 = vor.u32 %v4956, %v4952
      %v4958 = vrot.slane %v4957, 4
      %v4960 = vshll.u32 %v4831, 16
      %v4962 = vrot.slane %v4960, 5
      %v4963 = vsel %vm1327, %v4958, %v4962
      %v4965 = vshrl.u32 %v4832, 16
      %v4967 = vrot.slane %v4965, 4
      %v4968 = vshll.u32 %v4832, 16
      %v4970 = vrot.slane %v4968, 5
      %v4971 = vor.u32 %v4967, %v4970
      %v4972 = vrot.slane %v4971, 4
      %v4974 = vshll.u32 %v4833, 16
      %v4976 = vrot.slane %v4974, 5
      %v4977 = vsel %vm1327, %v4972, %v4976
      %v4978 = vshrl.u32 %v4833, 16
      %v4980 = vrot.slane %v4978, 4
      %v4981 = vor.u32 %v4980, %v4976
      %v4982 = vrot.slane %v4981, 4
      %v4984 = vshll.u32 %v4834, 16
      %v4986 = vrot.slane %v4984, 5
      %v4987 = vsel %vm1327, %v4982, %v4986
      %v4989 = vshrl.u32 %v4835, 16
      %v4991 = vrot.slane %v4989, 4
      %v4992 = vshll.u32 %v4835, 16
      %v4994 = vrot.slane %v4992, 5
      %v4995 = vor.u32 %v4991, %v4994
      %v4996 = vrot.slane %v4995, 4
      %v4998 = vshll.u32 %v4836, 16
      %v5000 = vrot.slane %v4998, 5
      %v5001 = vsel %vm1327, %v4996, %v5000
      %v5002 = vshrl.u32 %v4836, 16
      %v5004 = vrot.slane %v5002, 4
      %v5005 = vor.u32 %v5004, %v5000
      %v5006 = vrot.slane %v5005, 4
      %v5008 = vshll.u32 %v4837, 16
      %v5010 = vrot.slane %v5008, 5
      %v5011 = vsel %vm1327, %v5006, %v5010
      %v5013 = vshrl.u32 %v4838, 16
      %v5015 = vrot.slane %v5013, 4
      %v5016 = vshll.u32 %v4838, 16
      %v5018 = vrot.slane %v5016, 5
      %v5019 = vor.u32 %v5015, %v5018
      %v5020 = vrot.slane %v5019, 4
      %v5022 = vshll.u32 %v4839, 16
      %v5024 = vrot.slane %v5022, 5
      %v5025 = vsel %vm1327, %v5020, %v5024
      %v5026 = vshrl.u32 %v4839, 16
      %v5028 = vrot.slane %v5026, 4
      %v5029 = vor.u32 %v5028, %v5024
      %v5030 = vrot.slane %v5029, 4
      %v5032 = vshll.u32 %v4840, 16
      %v5034 = vrot.slane %v5032, 5
      %v5035 = vsel %vm1327, %v5030, %v5034
      %v5037 = vshrl.u32 %v4841, 16
      %v5039 = vrot.slane %v5037, 4
      %v5040 = vshll.u32 %v4841, 16
      %v5042 = vrot.slane %v5040, 5
      %v5043 = vor.u32 %v5039, %v5042
      %v5044 = vrot.slane %v5043, 4
      %v5046 = vshll.u32 %v4842, 16
      %v5048 = vrot.slane %v5046, 5
      %v5049 = vsel %vm1327, %v5044, %v5048
      %v5050 = vshrl.u32 %v4842, 16
      %v5052 = vrot.slane %v5050, 4
      %v5053 = vor.u32 %v5052, %v5048
      %v5054 = vrot.slane %v5053, 4
      %v5056 = vshll.u32 %v4843, 16
      %v5058 = vrot.slane %v5056, 5
      %v5059 = vsel %vm1327, %v5054, %v5058
      %v5061 = vshrl.u32 %v4844, 16
      %v5063 = vrot.slane %v5061, 4
      %v5064 = vshll.u32 %v4844, 16
      %v5066 = vrot.slane %v5064, 5
      %v5067 = vor.u32 %v5063, %v5066
      %v5068 = vrot.slane %v5067, 4
      %v5070 = vshll.u32 %v4845, 16
      %v5072 = vrot.slane %v5070, 5
      %v5073 = vsel %vm1327, %v5068, %v5072
      %v5074 = vshrl.u32 %v4845, 16
      %v5076 = vrot.slane %v5074, 4
      %v5077 = vor.u32 %v5076, %v5072
      %v5078 = vrot.slane %v5077, 4
      %v5080 = vshll.u32 %v4846, 16
      %v5082 = vrot.slane %v5080, 5
      %v5083 = vsel %vm1327, %v5078, %v5082
      %v5085 = vshrl.u32 %v4847, 16
      %v5087 = vrot.slane %v5085, 4
      %v5088 = vshll.u32 %v4847, 16
      %v5090 = vrot.slane %v5088, 5
      %v5091 = vor.u32 %v5087, %v5090
      %v5092 = vrot.slane %v5091, 4
      %v5094 = vshll.u32 %v4848, 16
      %v5096 = vrot.slane %v5094, 5
      %v5097 = vsel %vm1327, %v5092, %v5096
      %v5098 = vshrl.u32 %v4848, 16
      %v5100 = vrot.slane %v5098, 4
      %v5101 = vor.u32 %v5100, %v5096
      %v5102 = vrot.slane %v5101, 4
      %v5104 = vshll.u32 %v4849, 16
      %v5106 = vrot.slane %v5104, 5
      %v5107 = vsel %vm1327, %v5102, %v5106
      %v5109 = vshrl.u32 %v4850, 16
      %v5111 = vrot.slane %v5109, 4
      %v5112 = vshll.u32 %v4850, 16
      %v5114 = vrot.slane %v5112, 5
      %v5115 = vor.u32 %v5111, %v5114
      %v5116 = vrot.slane %v5115, 4
      %v5118 = vshll.u32 %v4851, 16
      %v5120 = vrot.slane %v5118, 5
      %v5121 = vsel %vm1327, %v5116, %v5120
      %v5122 = vshrl.u32 %v4851, 16
      %v5124 = vrot.slane %v5122, 4
      %v5125 = vor.u32 %v5124, %v5120
      %v5126 = vrot.slane %v5125, 4
      %v5128 = vshll.u32 %v4852, 16
      %v5130 = vrot.slane %v5128, 5
      %v5131 = vsel %vm1327, %v5126, %v5130
      %v5133 = vshrl.u32 %v4853, 16
      %v5135 = vrot.slane %v5133, 4
      %v5136 = vshll.u32 %v4853, 16
      %v5138 = vrot.slane %v5136, 5
      %v5139 = vor.u32 %v5135, %v5138
      %v5140 = vrot.slane %v5139, 4
      %v5142 = vshll.u32 %v4854, 16
      %v5144 = vrot.slane %v5142, 5
      %v5145 = vsel %vm1327, %v5140, %v5144
      %v5146 = vshrl.u32 %v4854, 16
      %v5148 = vrot.slane %v5146, 4
      %v5149 = vor.u32 %v5148, %v5144
      %v5150 = vrot.slane %v5149, 4
      %v5152 = vshll.u32 %v4855, 16
      %v5154 = vrot.slane %v5152, 5
      %v5155 = vsel %vm1327, %v5150, %v5154
      %v5157 = vshrl.u32 %v4856, 16
      %v5159 = vrot.slane %v5157, 4
      %v5160 = vshll.u32 %v4856, 16
      %v5162 = vrot.slane %v5160, 5
      %v5163 = vor.u32 %v5159, %v5162
      %v5164 = vrot.slane %v5163, 4
      %v5166 = vshll.u32 %v4857, 16
      %v5168 = vrot.slane %v5166, 5
      %v5169 = vsel %vm1327, %v5164, %v5168
      %v5170 = vshrl.u32 %v4857, 16
      %v5172 = vrot.slane %v5170, 4
      %v5173 = vor.u32 %v5172, %v5168
      %v5174 = vrot.slane %v5173, 4
      %v5176 = vshll.u32 %v4858, 16
      %v5178 = vrot.slane %v5176, 5
      %v5179 = vsel %vm1327, %v5174, %v5178
      %v5181 = vshrl.u32 %v4859, 16
      %v5183 = vrot.slane %v5181, 4
      %v5184 = vshll.u32 %v4859, 16
      %v5186 = vrot.slane %v5184, 5
      %v5187 = vor.u32 %v5183, %v5186
      %v5188 = vrot.slane %v5187, 4
      %v5190 = vshll.u32 %v4860, 16
      %v5192 = vrot.slane %v5190, 5
      %v5193 = vsel %vm1327, %v5188, %v5192
      %v5194 = vshrl.u32 %v4860, 16
      %v5196 = vrot.slane %v5194, 4
      %v5197 = vor.u32 %v5196, %v5192
      %v5198 = vrot.slane %v5197, 4
      %v5200 = vshll.u32 %v4861, 16
      %v5202 = vrot.slane %v5200, 5
      %v5203 = vsel %vm1327, %v5198, %v5202
      %v5205 = vshrl.u32 %v4862, 16
      %v5207 = vrot.slane %v5205, 4
      %v5208 = vshll.u32 %v4862, 16
      %v5210 = vrot.slane %v5208, 5
      %v5211 = vor.u32 %v5207, %v5210
      %v5212 = vrot.slane %v5211, 4
      %v5214 = vshll.u32 %v4863, 16
      %v5216 = vrot.slane %v5214, 5
      %v5217 = vsel %vm1327, %v5212, %v5216
      %v5218 = vshrl.u32 %v4863, 16
      %v5220 = vrot.slane %v5218, 4
      %v5221 = vor.u32 %v5220, %v5216
      %v5222 = vrot.slane %v5221, 4
      %v5224 = vshll.u32 %v4864, 16
      %v5226 = vrot.slane %v5224, 5
      %v5227 = vsel %vm1327, %v5222, %v5226
      %v5229 = vshrl.u32 %v4865, 16
      %v5231 = vrot.slane %v5229, 4
      %v5232 = vshll.u32 %v4865, 16
      %v5234 = vrot.slane %v5232, 5
      %v5235 = vor.u32 %v5231, %v5234
      %v5236 = vrot.slane %v5235, 4
      %v5238 = vshll.u32 %v4866, 16
      %v5240 = vrot.slane %v5238, 5
      %v5241 = vsel %vm1327, %v5236, %v5240
      %v5242 = vshrl.u32 %v4866, 16
      %v5244 = vrot.slane %v5242, 4
      %v5245 = vor.u32 %v5244, %v5240
      %v5246 = vrot.slane %v5245, 4
      %v5248 = vshll.u32 %v4867, 16
      %v5250 = vrot.slane %v5248, 5
      %v5251 = vsel %vm1327, %v5246, %v5250
      %v5252 = vld [vmem:[%s5 + $0xe0] sm:$0xf]
      %v5253 = vld [vmem:[%s5 + $0xe4] sm:$0xf]
      %v5254 = vld [vmem:[%s5 + $0xe8] sm:$0xf]
      %v5255 = vld [vmem:[%s5 + $0xec] sm:$0xf]
      %v5256 = vld [vmem:[%s5 + $0xf0] sm:$0xf]
      %v5257 = vld [vmem:[%s5 + $0xf4] sm:$0xf]
      %v5258 = vld [vmem:[%s5 + $0xf8] sm:$0xf]
      %v5259 = vld [vmem:[%s5 + $0xfc] sm:$0xf]
      %v5260 = vunpack.c.l.b16 %v4881
      %v5261 = vunpack.c.l.b16 %v4891
      %v5262 = vunpack.c.l.b16 %v4905
      %v5263 = vunpack.c.l.b16 %v4915
      %v5264 = vunpack.c.l.b16 %v4929
      %v5265 = vunpack.c.l.b16 %v4939
      %v5266 = vunpack.c.l.b16 %v4953
      %v5267 = vunpack.c.l.b16 %v4963
      %v5268 = vunpack.c.l.b16 %v4977
      %v5269 = vunpack.c.l.b16 %v4987
      %v5270 = vunpack.c.l.b16 %v5001
      %v5271 = vunpack.c.l.b16 %v5011
      %v5272 = vunpack.c.l.b16 %v5025
      %v5273 = vunpack.c.l.b16 %v5035
      %v5274 = vunpack.c.l.b16 %v5049
      %v5275 = vunpack.c.l.b16 %v5059
      %v5276 = vunpack.c.l.b16 %v5073
      %v5277 = vunpack.c.l.b16 %v5083
      %v5278 = vunpack.c.l.b16 %v5097
      %v5279 = vunpack.c.l.b16 %v5107
      %v5280 = vunpack.c.l.b16 %v5121
      %v5281 = vunpack.c.l.b16 %v5131
      %v5282 = vunpack.c.l.b16 %v5145
      %v5283 = vunpack.c.l.b16 %v5155
      %v5284 = vunpack.c.l.b16 %v5169
      %v5285 = vunpack.c.l.b16 %v5179
      %v5286 = vunpack.c.l.b16 %v5193
      %v5287 = vunpack.c.l.b16 %v5203
      %v5288 = vunpack.c.l.b16 %v5217
      %v5289 = vunpack.c.l.b16 %v5227
      %v5290 = vunpack.c.l.b16 %v5241
      %v5291 = vunpack.c.l.b16 %v5251
      %v5292 = vpack.c.b16 %v5261, %v5260
      %v5293 = vpack.c.b16 %v5263, %v5262
      %v5294 = vpack.c.b16 %v5265, %v5264
      %v5295 = vpack.c.b16 %v5267, %v5266
      %v5296 = vpack.c.b16 %v5269, %v5268
      %v5297 = vpack.c.b16 %v5271, %v5270
      %v5298 = vpack.c.b16 %v5273, %v5272
      %v5299 = vpack.c.b16 %v5275, %v5274
      %v5300 = vpack.c.b16 %v5277, %v5276
      %v5301 = vpack.c.b16 %v5279, %v5278
      %v5302 = vpack.c.b16 %v5281, %v5280
      %v5303 = vpack.c.b16 %v5283, %v5282
      %v5304 = vpack.c.b16 %v5285, %v5284
      %v5305 = vpack.c.b16 %v5287, %v5286
      %v5306 = vpack.c.b16 %v5289, %v5288
      %v5307 = vpack.c.b16 %v5291, %v5290
      %v5316 = vunpack.c.l.b16 %v5252
      %v5317 = vunpack.c.l.b16 %v5253
      %v5318 = vunpack.c.l.b16 %v5254
      %v5319 = vunpack.c.l.b16 %v5255
      %v5320 = vunpack.c.l.b16 %v5256
      %v5321 = vunpack.c.l.b16 %v5257
      %v5322 = vunpack.c.l.b16 %v5258
      %v5323 = vunpack.c.l.b16 %v5259
      %v5324 = vpack.c.b16 %v5317, %v5316
      %v5325 = vpack.c.b16 %v5319, %v5318
      %v5326 = vpack.c.b16 %v5321, %v5320
      %v5327 = vpack.c.b16 %v5323, %v5322
      %v5333 = vsel %vm1792, %v5292, 0
      %v5336 = vsel %vm1792, %v5293, 0
      %v5339 = vsel %vm1792, %v5294, 0
      %v5342 = vsel %vm1792, %v5295, 0
      %v5345 = vsel %vm1792, %v5296, 0
      %v5348 = vsel %vm1792, %v5297, 0
      %v5351 = vsel %vm1792, %v5298, 0
      %v5354 = vsel %vm1792, %v5299, 0
      %v5357 = vsel %vm1792, %v5300, 0
      %v5360 = vsel %vm1792, %v5301, 0
      %v5363 = vsel %vm1792, %v5302, 0
      %v5366 = vsel %vm1792, %v5303, 0
      %v5369 = vsel %vm1792, %v5304, 0
      %v5372 = vsel %vm1792, %v5305, 0
      %v5375 = vsel %vm1792, %v5306, 0
      %v5378 = vsel %vm1792, %v5307, 0
      %5380 = vmatprep.subr.bf16.mxu0 0
      %5381 = vmatpush1.bf16.msra.mxu0 %v5324
      %5382 = vmatprep.subr.bf16.mxu0 0
      %5383 = vmatpush1.bf16.msra.mxu0 %v5325
      %5384 = vmatprep.subr.bf16.mxu0 0
      %5385 = vmatpush1.bf16.msra.mxu0 %v5326
      %5386 = vmatprep.subr.bf16.mxu0 0
      %5387 = vmatpush1.bf16.msra.mxu0 %v5327
      %5388 = vmatprep.subr.bf16.mxu0 0
      %5389 = vmatpush1.bf16.msra.mxu0 0
      %5390 = vmatprep.subr.bf16.mxu0 0
      %5391 = vmatpush1.bf16.msra.mxu0 0
      %5392 = vmatprep.subr.bf16.mxu0 0
      %5393 = vmatpush1.bf16.msra.mxu0 0
      %5394 = vmatprep.subr.bf16.mxu0 0
      %5395 = vmatpush1.bf16.msra.mxu0 0
      %5396 = vmatprep.subr.bf16.mxu0 0
      %5397 = vmatpush1.bf16.msra.mxu0 0
      %5398 = vmatprep.subr.bf16.mxu0 0
      %5399 = vmatpush1.bf16.msra.mxu0 0
      %5400 = vmatprep.subr.bf16.mxu0 0
      %5401 = vmatpush1.bf16.msra.mxu0 0
      %5402 = vmatprep.subr.bf16.mxu0 0
      %5403 = vmatpush1.bf16.msra.mxu0 0
      %5404 = vmatprep.subr.bf16.mxu0 0
      %5405 = vmatpush1.bf16.msra.mxu0 0
      %5406 = vmatprep.subr.bf16.mxu0 0
      %5407 = vmatpush1.bf16.msra.mxu0 0
      %5408 = vmatprep.subr.bf16.mxu0 0
      %5409 = vmatpush1.bf16.msra.mxu0 0
      %5410 = vmatprep.subr.bf16.mxu0 0
      %5411 = vmatpush1.bf16.msra.mxu0 0
      %5412 = vmatprep.mubr.bf16.mxu0 0
      %5413 = vmatmul.mubr.bf16.gmra.mrb[0].mxu0 %v5333
      %v5414 = vpop.f32.mrb[0].mxu0
      %v5415 = vadd.f32 0.0, %v5414
      %v5416 = vpop.f32.mrb[0].mxu0
      %v5417 = vpop.f32.mrb[0].mxu0
      %v5418 = vadd.f32 0.0, %v5417
      %v5419 = vpop.f32.mrb[0].mxu0
      %5420 = vmatprep.mubr.bf16.mxu0 0
      %5421 = vmatmul.mubr.bf16.gmra.mrb[0].mxu0 %v5336
      %v5422 = vpop.f32.mrb[0].mxu0
      %v5423 = vadd.f32 0.0, %v5422
      %v5424 = vpop.f32.mrb[0].mxu0
      %v5425 = vpop.f32.mrb[0].mxu0
      %v5426 = vadd.f32 0.0, %v5425
      %v5427 = vpop.f32.mrb[0].mxu0
      %5428 = vmatprep.mubr.bf16.mxu0 0
      %5429 = vmatmul.mubr.bf16.gmra.mrb[0].mxu0 %v5339
      %v5430 = vpop.f32.mrb[0].mxu0
      %v5431 = vadd.f32 0.0, %v5430
      %v5432 = vpop.f32.mrb[0].mxu0
      %v5433 = vpop.f32.mrb[0].mxu0
      %v5434 = vadd.f32 0.0, %v5433
      %v5435 = vpop.f32.mrb[0].mxu0
      %5436 = vmatprep.mubr.bf16.mxu0 0
      %5437 = vmatmul.mubr.bf16.gmra.mrb[0].mxu0 %v5342
      %v5438 = vpop.f32.mrb[0].mxu0
      %v5439 = vadd.f32 0.0, %v5438
      %v5440 = vpop.f32.mrb[0].mxu0
      %v5441 = vpop.f32.mrb[0].mxu0
      %v5442 = vadd.f32 0.0, %v5441
      %v5443 = vpop.f32.mrb[0].mxu0
      %5444 = vmatprep.mubr.bf16.mxu0 0
      %5445 = vmatmul.mubr.bf16.gmra.mrb[0].mxu0 %v5345
      %v5446 = vpop.f32.mrb[0].mxu0
      %v5447 = vadd.f32 0.0, %v5446
      %v5448 = vpop.f32.mrb[0].mxu0
      %v5449 = vpop.f32.mrb[0].mxu0
      %v5450 = vadd.f32 0.0, %v5449
      %v5451 = vpop.f32.mrb[0].mxu0
      %5452 = vmatprep.mubr.bf16.mxu0 0
      %5453 = vmatmul.mubr.bf16.gmra.mrb[0].mxu0 %v5348
      %v5454 = vpop.f32.mrb[0].mxu0
      %v5455 = vadd.f32 0.0, %v5454
      %v5456 = vpop.f32.mrb[0].mxu0
      %v5457 = vpop.f32.mrb[0].mxu0
      %v5458 = vadd.f32 0.0, %v5457
      %v5459 = vpop.f32.mrb[0].mxu0
      %5460 = vmatprep.mubr.bf16.mxu0 0
      %5461 = vmatmul.mubr.bf16.gmra.mrb[0].mxu0 %v5351
      %v5462 = vpop.f32.mrb[0].mxu0
      %v5463 = vadd.f32 0.0, %v5462
      %v5464 = vpop.f32.mrb[0].mxu0
      %v5465 = vpop.f32.mrb[0].mxu0
      %v5466 = vadd.f32 0.0, %v5465
      %v5467 = vpop.f32.mrb[0].mxu0
      %5468 = vmatprep.mubr.bf16.mxu0 0
      %5469 = vmatmul.mubr.bf16.gmra.mrb[0].mxu0 %v5354
      %v5470 = vpop.f32.mrb[0].mxu0
      %v5471 = vadd.f32 0.0, %v5470
      %v5472 = vpop.f32.mrb[0].mxu0
      %v5473 = vpop.f32.mrb[0].mxu0
      %v5474 = vadd.f32 0.0, %v5473
      %v5475 = vpop.f32.mrb[0].mxu0
      %5476 = vmatprep.mubr.bf16.mxu0 0
      %5477 = vmatmul.mubr.bf16.gmra.mrb[0].mxu0 %v5357
      %v5478 = vpop.f32.mrb[0].mxu0
      %v5479 = vadd.f32 0.0, %v5478
      %v5480 = vpop.f32.mrb[0].mxu0
      %v5481 = vpop.f32.mrb[0].mxu0
      %v5482 = vadd.f32 0.0, %v5481
      %v5483 = vpop.f32.mrb[0].mxu0
      %5484 = vmatprep.mubr.bf16.mxu0 0
      %5485 = vmatmul.mubr.bf16.gmra.mrb[0].mxu0 %v5360
      %v5486 = vpop.f32.mrb[0].mxu0
      %v5487 = vadd.f32 0.0, %v5486
      %v5488 = vpop.f32.mrb[0].mxu0
      %v5489 = vpop.f32.mrb[0].mxu0
      %v5490 = vadd.f32 0.0, %v5489
      %v5491 = vpop.f32.mrb[0].mxu0
      %5492 = vmatprep.mubr.bf16.mxu0 0
      %5493 = vmatmul.mubr.bf16.gmra.mrb[0].mxu0 %v5363
      %v5494 = vpop.f32.mrb[0].mxu0
      %v5495 = vadd.f32 0.0, %v5494
      %v5496 = vpop.f32.mrb[0].mxu0
      %v5497 = vpop.f32.mrb[0].mxu0
      %v5498 = vadd.f32 0.0, %v5497
      %v5499 = vpop.f32.mrb[0].mxu0
      %5500 = vmatprep.mubr.bf16.mxu0 0
      %5501 = vmatmul.mubr.bf16.gmra.mrb[0].mxu0 %v5366
      %v5502 = vpop.f32.mrb[0].mxu0
      %v5503 = vadd.f32 0.0, %v5502
      %v5504 = vpop.f32.mrb[0].mxu0
      %v5505 = vpop.f32.mrb[0].mxu0
      %v5506 = vadd.f32 0.0, %v5505
      %v5507 = vpop.f32.mrb[0].mxu0
      %5508 = vmatprep.mubr.bf16.mxu0 0
      %5509 = vmatmul.mubr.bf16.gmra.mrb[0].mxu0 %v5369
      %v5510 = vpop.f32.mrb[0].mxu0
      %v5511 = vadd.f32 0.0, %v5510
      %v5512 = vpop.f32.mrb[0].mxu0
      %v5513 = vpop.f32.mrb[0].mxu0
      %v5514 = vadd.f32 0.0, %v5513
      %v5515 = vpop.f32.mrb[0].mxu0
      %5516 = vmatprep.mubr.bf16.mxu0 0
      %5517 = vmatmul.mubr.bf16.gmra.mrb[0].mxu0 %v5372
      %v5518 = vpop.f32.mrb[0].mxu0
      %v5519 = vadd.f32 0.0, %v5518
      %v5520 = vpop.f32.mrb[0].mxu0
      %v5521 = vpop.f32.mrb[0].mxu0
      %v5522 = vadd.f32 0.0, %v5521
      %v5523 = vpop.f32.mrb[0].mxu0
      %5524 = vmatprep.mubr.bf16.mxu0 0
      %5525 = vmatmul.mubr.bf16.gmra.mrb[0].mxu0 %v5375
      %v5526 = vpop.f32.mrb[0].mxu0
      %v5527 = vadd.f32 0.0, %v5526
      %v5528 = vpop.f32.mrb[0].mxu0
      %v5529 = vpop.f32.mrb[0].mxu0
      %v5530 = vadd.f32 0.0, %v5529
      %v5531 = vpop.f32.mrb[0].mxu0
      %5532 = vmatprep.mubr.bf16.mxu0 0
      %5533 = vmatmul.mubr.bf16.gmra.mrb[0].mxu0 %v5378
      %v5534 = vpop.f32.mrb[0].mxu0
      %v5535 = vadd.f32 0.0, %v5534
      %v5536 = vpop.f32.mrb[0].mxu0
      %v5537 = vpop.f32.mrb[0].mxu0
      %v5538 = vadd.f32 0.0, %v5537
      %v5539 = vpop.f32.mrb[0].mxu0
      %5540 = vdwg.mxu0
      %v5541 = vadd.f32 %v4788, %v5415
      %v5542 = vadd.f32 %v4789, %v5418
      %v5543 = vadd.f32 %v4790, %v5423
      %v5544 = vadd.f32 %v4791, %v5426
      %v5545 = vadd.f32 %v4792, %v5431
      %v5546 = vadd.f32 %v4793, %v5434
      %v5547 = vadd.f32 %v4794, %v5439
      %v5548 = vadd.f32 %v4795, %v5442
      %v5549 = vadd.f32 %v4796, %v5447
      %v5550 = vadd.f32 %v4797, %v5450
      %v5551 = vadd.f32 %v4798, %v5455
      %v5552 = vadd.f32 %v4799, %v5458
      %v5553 = vadd.f32 %v4800, %v5463
      %v5554 = vadd.f32 %v4801, %v5466
      %v5555 = vadd.f32 %v4802, %v5471
      %v5556 = vadd.f32 %v4803, %v5474
      %v5557 = vadd.f32 %v4804, %v5479
      %v5558 = vadd.f32 %v4805, %v5482
      %v5559 = vadd.f32 %v4806, %v5487
      %v5560 = vadd.f32 %v4807, %v5490
      %v5561 = vadd.f32 %v4808, %v5495
      %v5562 = vadd.f32 %v4809, %v5498
      %v5563 = vadd.f32 %v4810, %v5503
      %v5564 = vadd.f32 %v4811, %v5506
      %v5565 = vadd.f32 %v4812, %v5511
      %v5566 = vadd.f32 %v4813, %v5514
      %v5567 = vadd.f32 %v4814, %v5519
      %v5568 = vadd.f32 %v4815, %v5522
      %v5569 = vadd.f32 %v4816, %v5527
      %v5570 = vadd.f32 %v4817, %v5530
      %v5571 = vadd.f32 %v4818, %v5535
      %v5572 = vadd.f32 %v4819, %v5538
      %v5573 = vld [vmem:[%s4434] sm:$0xe]
      %v5574 = vld [vmem:[%s4434 + $0xc] sm:$0xe]
      %v5575 = vld [vmem:[%s4434 + $0x18] sm:$0xe]
      %v5576 = vld [vmem:[%s4434 + $0x24] sm:$0xe]
      %v5577 = vld [vmem:[%s4434 + $0x30] sm:$0xe]
      %v5578 = vld [vmem:[%s4434 + $0x3c] sm:$0xe]
      %v5579 = vld [vmem:[%s4434 + $0x48] sm:$0xe]
      %v5580 = vld [vmem:[%s4434 + $0x54] sm:$0xe]
      %v5581 = vld [vmem:[%s4434 + $0x60] sm:$0xe]
      %v5582 = vld [vmem:[%s4434 + $0x6c] sm:$0xe]
      %v5583 = vld [vmem:[%s4434 + $0x78] sm:$0xe]
      %v5584 = vld [vmem:[%s4434 + $0x84] sm:$0xe]
      %v5585 = vld [vmem:[%s4434 + $0x90] sm:$0xe]
      %v5586 = vld [vmem:[%s4434 + $0x9c] sm:$0xe]
      %v5587 = vld [vmem:[%s4434 + $0xa8] sm:$0xe]
      %v5588 = vld [vmem:[%s4434 + $0xb4] sm:$0xe]
      %v5637 = vrot.slane %v5573, 5
      %v5638 = vrot.slane %v5637, 4
      %v5639 = vrot.slane %v4821, 5
      %v5640 = vsel %vm2365, %v5638, %v5639
      %v5641 = vrot.slane %v5639, 4
      %v5642 = vrot.slane %v4822, 5
      %v5643 = vsel %vm2365, %v5641, %v5642
      %v5644 = vrot.slane %v5574, 5
      %v5645 = vrot.slane %v5644, 4
      %v5646 = vrot.slane %v4824, 5
      %v5647 = vsel %vm2365, %v5645, %v5646
      %v5648 = vrot.slane %v5646, 4
      %v5649 = vrot.slane %v4825, 5
      %v5650 = vsel %vm2365, %v5648, %v5649
      %v5651 = vrot.slane %v5575, 5
      %v5652 = vrot.slane %v5651, 4
      %v5653 = vrot.slane %v4827, 5
      %v5654 = vsel %vm2365, %v5652, %v5653
      %v5655 = vrot.slane %v5653, 4
      %v5656 = vrot.slane %v4828, 5
      %v5657 = vsel %vm2365, %v5655, %v5656
      %v5658 = vrot.slane %v5576, 5
      %v5659 = vrot.slane %v5658, 4
      %v5660 = vrot.slane %v4830, 5
      %v5661 = vsel %vm2365, %v5659, %v5660
      %v5662 = vrot.slane %v5660, 4
      %v5663 = vrot.slane %v4831, 5
      %v5664 = vsel %vm2365, %v5662, %v5663
      %v5665 = vrot.slane %v5577, 5
      %v5666 = vrot.slane %v5665, 4
      %v5667 = vrot.slane %v4833, 5
      %v5668 = vsel %vm2365, %v5666, %v5667
      %v5669 = vrot.slane %v5667, 4
      %v5670 = vrot.slane %v4834, 5
      %v5671 = vsel %vm2365, %v5669, %v5670
      %v5672 = vrot.slane %v5578, 5
      %v5673 = vrot.slane %v5672, 4
      %v5674 = vrot.slane %v4836, 5
      %v5675 = vsel %vm2365, %v5673, %v5674
      %v5676 = vrot.slane %v5674, 4
      %v5677 = vrot.slane %v4837, 5
      %v5678 = vsel %vm2365, %v5676, %v5677
      %v5679 = vrot.slane %v5579, 5
      %v5680 = vrot.slane %v5679, 4
      %v5681 = vrot.slane %v4839, 5
      %v5682 = vsel %vm2365, %v5680, %v5681
      %v5683 = vrot.slane %v5681, 4
      %v5684 = vrot.slane %v4840, 5
      %v5685 = vsel %vm2365, %v5683, %v5684
      %v5686 = vrot.slane %v5580, 5
      %v5687 = vrot.slane %v5686, 4
      %v5688 = vrot.slane %v4842, 5
      %v5689 = vsel %vm2365, %v5687, %v5688
      %v5690 = vrot.slane %v5688, 4
      %v5691 = vrot.slane %v4843, 5
      %v5692 = vsel %vm2365, %v5690, %v5691
      %v5693 = vrot.slane %v5581, 5
      %v5694 = vrot.slane %v5693, 4
      %v5695 = vrot.slane %v4845, 5
      %v5696 = vsel %vm2365, %v5694, %v5695
      %v5697 = vrot.slane %v5695, 4
      %v5698 = vrot.slane %v4846, 5
      %v5699 = vsel %vm2365, %v5697, %v5698
      %v5700 = vrot.slane %v5582, 5
      %v5701 = vrot.slane %v5700, 4
      %v5702 = vrot.slane %v4848, 5
      %v5703 = vsel %vm2365, %v5701, %v5702
      %v5704 = vrot.slane %v5702, 4
      %v5705 = vrot.slane %v4849, 5
      %v5706 = vsel %vm2365, %v5704, %v5705
      %v5707 = vrot.slane %v5583, 5
      %v5708 = vrot.slane %v5707, 4
      %v5709 = vrot.slane %v4851, 5
      %v5710 = vsel %vm2365, %v5708, %v5709
      %v5711 = vrot.slane %v5709, 4
      %v5712 = vrot.slane %v4852, 5
      %v5713 = vsel %vm2365, %v5711, %v5712
      %v5714 = vrot.slane %v5584, 5
      %v5715 = vrot.slane %v5714, 4
      %v5716 = vrot.slane %v4854, 5
      %v5717 = vsel %vm2365, %v5715, %v5716
      %v5718 = vrot.slane %v5716, 4
      %v5719 = vrot.slane %v4855, 5
      %v5720 = vsel %vm2365, %v5718, %v5719
      %v5721 = vrot.slane %v5585, 5
      %v5722 = vrot.slane %v5721, 4
      %v5723 = vrot.slane %v4857, 5
      %v5724 = vsel %vm2365, %v5722, %v5723
      %v5725 = vrot.slane %v5723, 4
      %v5726 = vrot.slane %v4858, 5
      %v5727 = vsel %vm2365, %v5725, %v5726
      %v5728 = vrot.slane %v5586, 5
      %v5729 = vrot.slane %v5728, 4
      %v5730 = vrot.slane %v4860, 5
      %v5731 = vsel %vm2365, %v5729, %v5730
      %v5732 = vrot.slane %v5730, 4
      %v5733 = vrot.slane %v4861, 5
      %v5734 = vsel %vm2365, %v5732, %v5733
      %v5735 = vrot.slane %v5587, 5
      %v5736 = vrot.slane %v5735, 4
      %v5737 = vrot.slane %v4863, 5
      %v5738 = vsel %vm2365, %v5736, %v5737
      %v5739 = vrot.slane %v5737, 4
      %v5740 = vrot.slane %v4864, 5
      %v5741 = vsel %vm2365, %v5739, %v5740
      %v5742 = vrot.slane %v5588, 5
      %v5743 = vrot.slane %v5742, 4
      %v5744 = vrot.slane %v4866, 5
      %v5745 = vsel %vm2365, %v5743, %v5744
      %v5746 = vrot.slane %v5744, 4
      %v5747 = vrot.slane %v4867, 5
      %v5748 = vsel %vm2365, %v5746, %v5747
      %v5749 = vld [vmem:[%s5 + $0x100] sm:$0xf]
      %v5750 = vld [vmem:[%s5 + $0x104] sm:$0xf]
      %v5751 = vld [vmem:[%s5 + $0x108] sm:$0xf]
      %v5752 = vld [vmem:[%s5 + $0x10c] sm:$0xf]
      %v5753 = vld [vmem:[%s5 + $0x110] sm:$0xf]
      %v5754 = vld [vmem:[%s5 + $0x114] sm:$0xf]
      %v5755 = vld [vmem:[%s5 + $0x118] sm:$0xf]
      %v5756 = vld [vmem:[%s5 + $0x11c] sm:$0xf]
      %v5757 = vunpack.c.l.b16 %v5640
      %v5758 = vunpack.c.l.b16 %v5643
      %v5759 = vunpack.c.l.b16 %v5647
      %v5760 = vunpack.c.l.b16 %v5650
      %v5761 = vunpack.c.l.b16 %v5654
      %v5762 = vunpack.c.l.b16 %v5657
      %v5763 = vunpack.c.l.b16 %v5661
      %v5764 = vunpack.c.l.b16 %v5664
      %v5765 = vunpack.c.l.b16 %v5668
      %v5766 = vunpack.c.l.b16 %v5671
      %v5767 = vunpack.c.l.b16 %v5675
      %v5768 = vunpack.c.l.b16 %v5678
      %v5769 = vunpack.c.l.b16 %v5682
      %v5770 = vunpack.c.l.b16 %v5685
      %v5771 = vunpack.c.l.b16 %v5689
      %v5772 = vunpack.c.l.b16 %v5692
      %v5773 = vunpack.c.l.b16 %v5696
      %v5774 = vunpack.c.l.b16 %v5699
      %v5775 = vunpack.c.l.b16 %v5703
      %v5776 = vunpack.c.l.b16 %v5706
      %v5777 = vunpack.c.l.b16 %v5710
      %v5778 = vunpack.c.l.b16 %v5713
      %v5779 = vunpack.c.l.b16 %v5717
      %v5780 = vunpack.c.l.b16 %v5720
      %v5781 = vunpack.c.l.b16 %v5724
      %v5782 = vunpack.c.l.b16 %v5727
      %v5783 = vunpack.c.l.b16 %v5731
      %v5784 = vunpack.c.l.b16 %v5734
      %v5785 = vunpack.c.l.b16 %v5738
      %v5786 = vunpack.c.l.b16 %v5741
      %v5787 = vunpack.c.l.b16 %v5745
      %v5788 = vunpack.c.l.b16 %v5748
      %v5789 = vpack.c.b16 %v5758, %v5757
      %v5790 = vpack.c.b16 %v5760, %v5759
      %v5791 = vpack.c.b16 %v5762, %v5761
      %v5792 = vpack.c.b16 %v5764, %v5763
      %v5793 = vpack.c.b16 %v5766, %v5765
      %v5794 = vpack.c.b16 %v5768, %v5767
      %v5795 = vpack.c.b16 %v5770, %v5769
      %v5796 = vpack.c.b16 %v5772, %v5771
      %v5797 = vpack.c.b16 %v5774, %v5773
      %v5798 = vpack.c.b16 %v5776, %v5775
      %v5799 = vpack.c.b16 %v5778, %v5777
      %v5800 = vpack.c.b16 %v5780, %v5779
      %v5801 = vpack.c.b16 %v5782, %v5781
      %v5802 = vpack.c.b16 %v5784, %v5783
      %v5803 = vpack.c.b16 %v5786, %v5785
      %v5804 = vpack.c.b16 %v5788, %v5787
      %v5813 = vunpack.c.l.b16 %v5749
      %v5814 = vunpack.c.l.b16 %v5750
      %v5815 = vunpack.c.l.b16 %v5751
      %v5816 = vunpack.c.l.b16 %v5752
      %v5817 = vunpack.c.l.b16 %v5753
      %v5818 = vunpack.c.l.b16 %v5754
      %v5819 = vunpack.c.l.b16 %v5755
      %v5820 = vunpack.c.l.b16 %v5756
      %v5821 = vpack.c.b16 %v5814, %v5813
      %v5822 = vpack.c.b16 %v5816, %v5815
      %v5823 = vpack.c.b16 %v5818, %v5817
      %v5824 = vpack.c.b16 %v5820, %v5819
      %v5830 = vsel %vm1792, %v5789, 0
      %v5833 = vsel %vm1792, %v5790, 0
      %v5836 = vsel %vm1792, %v5791, 0
      %v5839 = vsel %vm1792, %v5792, 0
      %v5842 = vsel %vm1792, %v5793, 0
      %v5845 = vsel %vm1792, %v5794, 0
      %v5848 = vsel %vm1792, %v5795, 0
      %v5851 = vsel %vm1792, %v5796, 0
      %v5854 = vsel %vm1792, %v5797, 0
      %v5857 = vsel %vm1792, %v5798, 0
      %v5860 = vsel %vm1792, %v5799, 0
      %v5863 = vsel %vm1792, %v5800, 0
      %v5866 = vsel %vm1792, %v5801, 0
      %v5869 = vsel %vm1792, %v5802, 0
      %v5872 = vsel %vm1792, %v5803, 0
      %v5875 = vsel %vm1792, %v5804, 0
      %5877 = vmatprep.subr.bf16.mxu0 0
      %5878 = vmatpush1.bf16.msra.mxu0 %v5821
      %5879 = vmatprep.subr.bf16.mxu0 0
      %5880 = vmatpush1.bf16.msra.mxu0 %v5822
      %5881 = vmatprep.subr.bf16.mxu0 0
      %5882 = vmatpush1.bf16.msra.mxu0 %v5823
      %5883 = vmatprep.subr.bf16.mxu0 0
      %5884 = vmatpush1.bf16.msra.mxu0 %v5824
      %5885 = vmatprep.subr.bf16.mxu0 0
      %5886 = vmatpush1.bf16.msra.mxu0 0
      %5887 = vmatprep.subr.bf16.mxu0 0
      %5888 = vmatpush1.bf16.msra.mxu0 0
      %5889 = vmatprep.subr.bf16.mxu0 0
      %5890 = vmatpush1.bf16.msra.mxu0 0
      %5891 = vmatprep.subr.bf16.mxu0 0
      %5892 = vmatpush1.bf16.msra.mxu0 0
      %5893 = vmatprep.subr.bf16.mxu0 0
      %5894 = vmatpush1.bf16.msra.mxu0 0
      %5895 = vmatprep.subr.bf16.mxu0 0
      %5896 = vmatpush1.bf16.msra.mxu0 0
      %5897 = vmatprep.subr.bf16.mxu0 0
      %5898 = vmatpush1.bf16.msra.mxu0 0
      %5899 = vmatprep.subr.bf16.mxu0 0
      %5900 = vmatpush1.bf16.msra.mxu0 0
      %5901 = vmatprep.subr.bf16.mxu0 0
      %5902 = vmatpush1.bf16.msra.mxu0 0
      %5903 = vmatprep.subr.bf16.mxu0 0
      %5904 = vmatpush1.bf16.msra.mxu0 0
      %5905 = vmatprep.subr.bf16.mxu0 0
      %5906 = vmatpush1.bf16.msra.mxu0 0
      %5907 = vmatprep.subr.bf16.mxu0 0
      %5908 = vmatpush1.bf16.msra.mxu0 0
      %5909 = vmatprep.mubr.bf16.mxu0 0
      %5910 = vmatmul.mubr.bf16.gmra.mrb[0].mxu0 %v5830
      %v5911 = vpop.f32.mrb[0].mxu0
      %v5912 = vadd.f32 0.0, %v5911
      %v5913 = vpop.f32.mrb[0].mxu0
      %v5914 = vpop.f32.mrb[0].mxu0
      %v5915 = vadd.f32 0.0, %v5914
      %v5916 = vpop.f32.mrb[0].mxu0
      %5917 = vmatprep.mubr.bf16.mxu0 0
      %5918 = vmatmul.mubr.bf16.gmra.mrb[0].mxu0 %v5833
      %v5919 = vpop.f32.mrb[0].mxu0
      %v5920 = vadd.f32 0.0, %v5919
      %v5921 = vpop.f32.mrb[0].mxu0
      %v5922 = vpop.f32.mrb[0].mxu0
      %v5923 = vadd.f32 0.0, %v5922
      %v5924 = vpop.f32.mrb[0].mxu0
      %5925 = vmatprep.mubr.bf16.mxu0 0
      %5926 = vmatmul.mubr.bf16.gmra.mrb[0].mxu0 %v5836
      %v5927 = vpop.f32.mrb[0].mxu0
      %v5928 = vadd.f32 0.0, %v5927
      %v5929 = vpop.f32.mrb[0].mxu0
      %v5930 = vpop.f32.mrb[0].mxu0
      %v5931 = vadd.f32 0.0, %v5930
      %v5932 = vpop.f32.mrb[0].mxu0
      %5933 = vmatprep.mubr.bf16.mxu0 0
      %5934 = vmatmul.mubr.bf16.gmra.mrb[0].mxu0 %v5839
      %v5935 = vpop.f32.mrb[0].mxu0
      %v5936 = vadd.f32 0.0, %v5935
      %v5937 = vpop.f32.mrb[0].mxu0
      %v5938 = vpop.f32.mrb[0].mxu0
      %v5939 = vadd.f32 0.0, %v5938
      %v5940 = vpop.f32.mrb[0].mxu0
      %5941 = vmatprep.mubr.bf16.mxu0 0
      %5942 = vmatmul.mubr.bf16.gmra.mrb[0].mxu0 %v5842
      %v5943 = vpop.f32.mrb[0].mxu0
      %v5944 = vadd.f32 0.0, %v5943
      %v5945 = vpop.f32.mrb[0].mxu0
      %v5946 = vpop.f32.mrb[0].mxu0
      %v5947 = vadd.f32 0.0, %v5946
      %v5948 = vpop.f32.mrb[0].mxu0
      %5949 = vmatprep.mubr.bf16.mxu0 0
      %5950 = vmatmul.mubr.bf16.gmra.mrb[0].mxu0 %v5845
      %v5951 = vpop.f32.mrb[0].mxu0
      %v5952 = vadd.f32 0.0, %v5951
      %v5953 = vpop.f32.mrb[0].mxu0
      %v5954 = vpop.f32.mrb[0].mxu0
      %v5955 = vadd.f32 0.0, %v5954
      %v5956 = vpop.f32.mrb[0].mxu0
      %5957 = vmatprep.mubr.bf16.mxu0 0
      %5958 = vmatmul.mubr.bf16.gmra.mrb[0].mxu0 %v5848
      %v5959 = vpop.f32.mrb[0].mxu0
      %v5960 = vadd.f32 0.0, %v5959
      %v5961 = vpop.f32.mrb[0].mxu0
      %v5962 = vpop.f32.mrb[0].mxu0
      %v5963 = vadd.f32 0.0, %v5962
      %v5964 = vpop.f32.mrb[0].mxu0
      %5965 = vmatprep.mubr.bf16.mxu0 0
      %5966 = vmatmul.mubr.bf16.gmra.mrb[0].mxu0 %v5851
      %v5967 = vpop.f32.mrb[0].mxu0
      %v5968 = vadd.f32 0.0, %v5967
      %v5969 = vpop.f32.mrb[0].mxu0
      %v5970 = vpop.f32.mrb[0].mxu0
      %v5971 = vadd.f32 0.0, %v5970
      %v5972 = vpop.f32.mrb[0].mxu0
      %5973 = vmatprep.mubr.bf16.mxu0 0
      %5974 = vmatmul.mubr.bf16.gmra.mrb[0].mxu0 %v5854
      %v5975 = vpop.f32.mrb[0].mxu0
      %v5976 = vadd.f32 0.0, %v5975
      %v5977 = vpop.f32.mrb[0].mxu0
      %v5978 = vpop.f32.mrb[0].mxu0
      %v5979 = vadd.f32 0.0, %v5978
      %v5980 = vpop.f32.mrb[0].mxu0
      %5981 = vmatprep.mubr.bf16.mxu0 0
      %5982 = vmatmul.mubr.bf16.gmra.mrb[0].mxu0 %v5857
      %v5983 = vpop.f32.mrb[0].mxu0
      %v5984 = vadd.f32 0.0, %v5983
      %v5985 = vpop.f32.mrb[0].mxu0
      %v5986 = vpop.f32.mrb[0].mxu0
      %v5987 = vadd.f32 0.0, %v5986
      %v5988 = vpop.f32.mrb[0].mxu0
      %5989 = vmatprep.mubr.bf16.mxu0 0
      %5990 = vmatmul.mubr.bf16.gmra.mrb[0].mxu0 %v5860
      %v5991 = vpop.f32.mrb[0].mxu0
      %v5992 = vadd.f32 0.0, %v5991
      %v5993 = vpop.f32.mrb[0].mxu0
      %v5994 = vpop.f32.mrb[0].mxu0
      %v5995 = vadd.f32 0.0, %v5994
      %v5996 = vpop.f32.mrb[0].mxu0
      %5997 = vmatprep.mubr.bf16.mxu0 0
      %5998 = vmatmul.mubr.bf16.gmra.mrb[0].mxu0 %v5863
      %v5999 = vpop.f32.mrb[0].mxu0
      %v6000 = vadd.f32 0.0, %v5999
      %v6001 = vpop.f32.mrb[0].mxu0
      %v6002 = vpop.f32.mrb[0].mxu0
      %v6003 = vadd.f32 0.0, %v6002
      %v6004 = vpop.f32.mrb[0].mxu0
      %6005 = vmatprep.mubr.bf16.mxu0 0
      %6006 = vmatmul.mubr.bf16.gmra.mrb[0].mxu0 %v5866
      %v6007 = vpop.f32.mrb[0].mxu0
      %v6008 = vadd.f32 0.0, %v6007
      %v6009 = vpop.f32.mrb[0].mxu0
      %v6010 = vpop.f32.mrb[0].mxu0
      %v6011 = vadd.f32 0.0, %v6010
      %v6012 = vpop.f32.mrb[0].mxu0
      %6013 = vmatprep.mubr.bf16.mxu0 0
      %6014 = vmatmul.mubr.bf16.gmra.mrb[0].mxu0 %v5869
      %v6015 = vpop.f32.mrb[0].mxu0
      %v6016 = vadd.f32 0.0, %v6015
      %v6017 = vpop.f32.mrb[0].mxu0
      %v6018 = vpop.f32.mrb[0].mxu0
      %v6019 = vadd.f32 0.0, %v6018
      %v6020 = vpop.f32.mrb[0].mxu0
      %6021 = vmatprep.mubr.bf16.mxu0 0
      %6022 = vmatmul.mubr.bf16.gmra.mrb[0].mxu0 %v5872
      %v6023 = vpop.f32.mrb[0].mxu0
      %v6024 = vadd.f32 0.0, %v6023
      %v6025 = vpop.f32.mrb[0].mxu0
      %v6026 = vpop.f32.mrb[0].mxu0
      %v6027 = vadd.f32 0.0, %v6026
      %v6028 = vpop.f32.mrb[0].mxu0
      %6029 = vmatprep.mubr.bf16.mxu0 0
      %6030 = vmatmul.mubr.bf16.gmra.mrb[0].mxu0 %v5875
      %v6031 = vpop.f32.mrb[0].mxu0
      %v6032 = vadd.f32 0.0, %v6031
      %v6033 = vpop.f32.mrb[0].mxu0
      %v6034 = vpop.f32.mrb[0].mxu0
      %v6035 = vadd.f32 0.0, %v6034
      %v6036 = vpop.f32.mrb[0].mxu0
      %6037 = vdwg.mxu0
      %v6038 = vadd.f32 %v5541, %v5912
      %v6039 = vadd.f32 %v5542, %v5915
      %v6040 = vadd.f32 %v5543, %v5920
      %v6041 = vadd.f32 %v5544, %v5923
      %v6042 = vadd.f32 %v5545, %v5928
      %v6043 = vadd.f32 %v5546, %v5931
      %v6044 = vadd.f32 %v5547, %v5936
      %v6045 = vadd.f32 %v5548, %v5939
      %v6046 = vadd.f32 %v5549, %v5944
      %v6047 = vadd.f32 %v5550, %v5947
      %v6048 = vadd.f32 %v5551, %v5952
      %v6049 = vadd.f32 %v5552, %v5955
      %v6050 = vadd.f32 %v5553, %v5960
      %v6051 = vadd.f32 %v5554, %v5963
      %v6052 = vadd.f32 %v5555, %v5968
      %v6053 = vadd.f32 %v5556, %v5971
      %v6054 = vadd.f32 %v5557, %v5976
      %v6055 = vadd.f32 %v5558, %v5979
      %v6056 = vadd.f32 %v5559, %v5984
      %v6057 = vadd.f32 %v5560, %v5987
      %v6058 = vadd.f32 %v5561, %v5992
      %v6059 = vadd.f32 %v5562, %v5995
      %v6060 = vadd.f32 %v5563, %v6000
      %v6061 = vadd.f32 %v5564, %v6003
      %v6062 = vadd.f32 %v5565, %v6008
      %v6063 = vadd.f32 %v5566, %v6011
      %v6064 = vadd.f32 %v5567, %v6016
      %v6065 = vadd.f32 %v5568, %v6019
      %v6066 = vadd.f32 %v5569, %v6024
      %v6067 = vadd.f32 %v5570, %v6027
      %v6068 = vadd.f32 %v5571, %v6032
      %v6069 = vadd.f32 %v5572, %v6035
      %vm6070 = vcmask 130048
      %6071 = vst.msk [vmem:[%s251] sm:$0xff] %vm6070, %v6038
      %6072 = vst.msk [vmem:[%s251 + $0x8] sm:$0xff] %vm6070, %v6039
      %6073 = vst.msk [vmem:[%s251 + $0x10] sm:$0xff] %vm6070, %v6040
      %6074 = vst.msk [vmem:[%s251 + $0x18] sm:$0xff] %vm6070, %v6041
      %6075 = vst.msk [vmem:[%s251 + $0x20] sm:$0xff] %vm6070, %v6042
      %6076 = vst.msk [vmem:[%s251 + $0x28] sm:$0xff] %vm6070, %v6043
      %6077 = vst.msk [vmem:[%s251 + $0x30] sm:$0xff] %vm6070, %v6044
      %6078 = vst.msk [vmem:[%s251 + $0x38] sm:$0xff] %vm6070, %v6045
      %6079 = vst.msk [vmem:[%s251 + $0x40] sm:$0xff] %vm6070, %v6046
      %6080 = vst.msk [vmem:[%s251 + $0x48] sm:$0xff] %vm6070, %v6047
      %6081 = vst.msk [vmem:[%s251 + $0x50] sm:$0xff] %vm6070, %v6048
      %6082 = vst.msk [vmem:[%s251 + $0x58] sm:$0xff] %vm6070, %v6049
      %6083 = vst.msk [vmem:[%s251 + $0x60] sm:$0xff] %vm6070, %v6050
      %6084 = vst.msk [vmem:[%s251 + $0x68] sm:$0xff] %vm6070, %v6051
      %6085 = vst.msk [vmem:[%s251 + $0x70] sm:$0xff] %vm6070, %v6052
      %6086 = vst.msk [vmem:[%s251 + $0x78] sm:$0xff] %vm6070, %v6053
      %6087 = vst.msk [vmem:[%s251 + $0x80] sm:$0xff] %vm6070, %v6054
      %6088 = vst.msk [vmem:[%s251 + $0x88] sm:$0xff] %vm6070, %v6055
      %6089 = vst.msk [vmem:[%s251 + $0x90] sm:$0xff] %vm6070, %v6056
      %6090 = vst.msk [vmem:[%s251 + $0x98] sm:$0xff] %vm6070, %v6057
      %6091 = vst.msk [vmem:[%s251 + $0xa0] sm:$0xff] %vm6070, %v6058
      %6092 = vst.msk [vmem:[%s251 + $0xa8] sm:$0xff] %vm6070, %v6059
      %6093 = vst.msk [vmem:[%s251 + $0xb0] sm:$0xff] %vm6070, %v6060
      %6094 = vst.msk [vmem:[%s251 + $0xb8] sm:$0xff] %vm6070, %v6061
      %6095 = vst.msk [vmem:[%s251 + $0xc0] sm:$0xff] %vm6070, %v6062
      %6096 = vst.msk [vmem:[%s251 + $0xc8] sm:$0xff] %vm6070, %v6063
      %6097 = vst.msk [vmem:[%s251 + $0xd0] sm:$0xff] %vm6070, %v6064
      %6098 = vst.msk [vmem:[%s251 + $0xd8] sm:$0xff] %vm6070, %v6065
      %6099 = vst.msk [vmem:[%s251 + $0xe0] sm:$0xff] %vm6070, %v6066
      %6100 = vst.msk [vmem:[%s251 + $0xe8] sm:$0xff] %vm6070, %v6067
      %6101 = vst.msk [vmem:[%s251 + $0xf0] sm:$0xff] %vm6070, %v6068
      %6102 = vst.msk [vmem:[%s251 + $0xf8] sm:$0xff] %vm6070, %v6069
      %p6103 = scmp.lt.s32.totalorder %s17, 1
      %s6104 = scalar_select %p6103, %s17, 1
      %s6105 = smul.addr %s6104, 32
      %s6106 = smul.addr %s6105, 8
      %s6107 = scalar_lea.vmem %s6, %s6106
      // Predicated region
      $region45: #{bottleneck_densenet_forward.1} parent=43 // pred_check
        %p6108 = pneg %p166
      $region46: #{bottleneck_densenet_forward.1} parent=43 // pred_check_branch
        %6110 = sbr.rel (%p6108) target = $region48
      $region47: #{bottleneck_densenet_forward.1} parent=43 // pred_region
        _
      $region48: #{bottleneck_densenet_forward.1} parent=43 // pred_fallthru
        _
    $region44: #{bottleneck_densenet_forward.1} parent=5 // pred_fallthru
      _
    %p6111 = scmp.le.s32.totalorder 2, %s12
    // Predicated region
    $region49: #{bottleneck_densenet_forward.1} parent=5 // pred_check
      %p6112 = pneg %p6111
    $region50: #{bottleneck_densenet_forward.1} parent=5 // pred_check_branch
      %6114 = sbr.rel (%p6112) target = $region52
    $region51: #{bottleneck_densenet_forward.1} parent=5 // pred_region
      %s6115 = ssub.s32 %s12, 2
      // Predicated region
      $region53: #{bottleneck_densenet_forward.1} parent=51 // pred_check
        %p6116 = pneg %p172
      $region54: #{bottleneck_densenet_forward.1} parent=51 // pred_check_branch
        %6118 = sbr.rel (%p6116) target = $region56
      $region55: #{bottleneck_densenet_forward.1} parent=51 // pred_region
        %p6119 = scmp.lt.s32.totalorder %s18, 1
        %s6120 = scalar_select %p6119, %s18, 1
        %s6121 = smul.addr %s6120, 32
        %s6122 = smul.addr %s6121, 8
        %s6123 = scalar_lea.vmem %s6, %s6122
      $region56: #{bottleneck_densenet_forward.1} parent=51 // pred_fallthru
        _
    $region52: #{bottleneck_densenet_forward.1} parent=5 // pred_fallthru
      _
  $region6: #{bottleneck_densenet_forward.1} parent=0 // loop_footer
    %s16 = sadd.s32 1, %s12
  $region7: #{bottleneck_densenet_forward.1} parent=0 // loop_footer_branch
    %11 = sbr.rel target = $region3
  $region8: #{bottleneck_densenet_forward.1} parent=0 // loop_exit
    _

</llo_original>
